<compile_context>
chip_gen: v6e
topology: v6e:2x2x1
jax: 0.10.0
libtpu: 0.0.40
codegen_flags: <defaults>
</compile_context>

<pallas_src>
import jax
import jax.numpy as jnp
from jax import lax
from jax.experimental import pallas as pl
from jax.experimental.pallas import tpu as pltpu

BN_EPS = 1e-5
ITERNORM_EPS = 1e-5
ITERNORM_T = 5
LANE = 128


# ----------------------------------------------------------------------------
# Single fused kernel: linear1+BN+ReLU, linear2+BN+ReLU, linear3, IterNorm.
# Whole batch lives in VMEM (BN and IterNorm need full-batch statistics).
# Weights are pre-transposed to (in, out) bf16, so every matmul is `x @ W`.
# ----------------------------------------------------------------------------
def _projector_kernel(y_ref, w1_ref, b1_ref, w2_ref, b2_ref, w3_ref, b3_ref,
                      bmask_ref, out_ref):
    f32, bf16 = jnp.float32, jnp.bfloat16
    B = y_ref.shape[0]
    C = out_ref.shape[1]
    inv_b = 1.0 / B

    def mm(a, w):
        # activations cast to bf16 at the dot; weights already bf16; f32 accum.
        return jnp.dot(a.astype(bf16), w, preferred_element_type=f32)

    def bn_relu(h):
        # Fresh BatchNorm1d (train): batch mean + biased variance, gamma=1, beta=0.
        # (axis-0 reduces are cheap at small B; at B >= ~512 fold them into a
        #  ones-row matmul on the MXU instead.)
        mean = jnp.mean(h, axis=0, keepdims=True)
        var = jnp.mean(jnp.square(h - mean), axis=0, keepdims=True)
        return jnp.maximum((h - mean) * lax.rsqrt(var + BN_EPS), 0.0)

    # ------------------------- MLP hot path -------------------------
    h = bn_relu(mm(y_ref[...], w1_ref[...]) + b1_ref[...])
    h = bn_relu(mm(h, w2_ref[...]) + b2_ref[...])
    z = mm(h, w3_ref[...]) + b3_ref[...]                      # (B, C) f32

    # ------------------ IterNorm (training mode) --------------------
    # Per-group Newton-Schulz whitening, carried out on block-diagonal (C, C)
    # matrices (groups are contiguous channel chunks, so the block-diagonal
    # algebra reproduces the per-group math exactly). Dense path is fine for
    # small C / tiny nc; use a grouped (g, nc, nc) contraction for large C.
    bmask = bmask_ref[...]                                    # 1.0 inside a group block
    ri = lax.broadcasted_iota(jnp.int32, (C, C), 0)
    ci = lax.broadcasted_iota(jnp.int32, (C, C), 1)
    eye = (ri == ci).astype(f32)

    mean = jnp.mean(z, axis=0, keepdims=True)                 # (1, C)
    xc = z - mean                                             # (B, C)
    # cov = xc^T @ xc on the MXU, kept in f32 (statistics precision).
    cov = lax.dot_general(xc, xc, (((0,), (0,)), ((), ())),
                          preferred_element_type=f32)         # (C, C)
    sigma = bmask * (inv_b * cov) + ITERNORM_EPS * eye        # block-diag Sigma

    diag = jnp.sum(sigma * eye, axis=1, keepdims=True)        # (C, 1)  diag(Sigma)
    grp_trace = jnp.sum(bmask * diag, axis=0, keepdims=True)  # (1, C)  trace of own group
    r_tr = 1.0 / grp_trace                                    # (1, C)
    sigma_n = sigma * r_tr                                    # per-group scaling (cols)

    p = eye                                                   # P0 = I (block-diagonal)
    for _ in range(ITERNORM_T):                               # unrolled Newton-Schulz
        p3 = jnp.dot(jnp.dot(p, p, preferred_element_type=f32), p,
                     preferred_element_type=f32)
        p = 1.5 * p - 0.5 * jnp.dot(p3, sigma_n, preferred_element_type=f32)
    wm = p * jnp.sqrt(r_tr)                                   # block-diag whitening matrix

    # xn[b, i] = sum_j wm[i, j] * xc[b, j]  -> contract lane dims (trans-B matmul).
    xn = lax.dot_general(xc.astype(bf16), wm.astype(bf16),
                         (((1,), (1,)), ((), ())),
                         preferred_element_type=f32)          # (B, C)
    # IterNorm affine is weight=1 / bias=0 for a fresh module -> identity (elided).
    out_ref[...] = xn


def _full_specs(arrays):
    # every array = exactly one full-size block at grid point 0
    return [pl.BlockSpec(a.shape, lambda i, _nd=a.ndim: (0,) * _nd) for a in arrays]


def projector_forward(y_pad, params, bmask):
    """Fused forward. For production sizes (hid/out 2K-8K, B 256-1024) this
    whole-array design should be replaced by an N-tiled, weight-streaming grid
    (parallel feature axis for v7x's 2 TCs) and a grouped whitening contraction."""
    B = y_pad.shape[0]
    C = params["w3t"].shape[1]
    args = (y_pad, params["w1t"], params["b1"], params["w2t"], params["b2"],
            params["w3t"], params["b3"], bmask)
    return pl.pallas_call(
        _projector_kernel,
        out_shape=jax.ShapeDtypeStruct((B, C), jnp.float32),
        grid=(1,),
        in_specs=_full_specs(args),
        out_specs=pl.BlockSpec((B, C), lambda i: (0, 0)),
        compiler_params=pltpu.CompilerParams(
            dimension_semantics=("arbitrary",),
            vmem_limit_bytes=48 * 1024 * 1024,   # explicit; actual use is ~1 MiB here
        ),
    )(*args)


# ----------------------------------------------------------------------------
# IterNorm group config (exact PyTorch __init__ logic) + host-side helpers.
# ----------------------------------------------------------------------------
def iternorm_groups(num_features, num_groups=64, num_channels=None):
    if num_channels is None:
        num_channels = (num_features - 1) // num_groups + 1
    num_groups = num_features // num_channels
    while num_features % num_channels != 0:
        num_channels //= 2
        num_groups = num_features // num_channels
    assert num_groups > 0 and num_features % num_groups == 0
    return num_groups, num_channels


def make_blockmask(C, nc):
    gid = jnp.arange(C, dtype=jnp.int32) // nc
    return (gid[:, None] == gid[None, :]).astype(jnp.float32)   # (C, C)


def _round_up(n, m):
    return ((n + m - 1) // m) * m


# ----------------------------------------------------------------------------
# Deterministic parameter init (PyTorch-like uniform bounds; values synthetic).
# Weights pre-transposed to (in, out), zero-padded to 128 lanes, stored bf16.
# ----------------------------------------------------------------------------
def init_params(key, proj_in, proj_hid, proj_out):
    in_p, hid_p = _round_up(proj_in, LANE), _round_up(proj_hid, LANE)
    ks = jax.random.split(key, 6)

    def linear(kw, kb, fan_in, fan_out, rows_p, cols_p):
        bound = 1.0 / (fan_in ** 0.5)
        w = jax.random.uniform(kw, (fan_out, fan_in), jnp.float32, -bound, bound)
        b = jax.random.uniform(kb, (fan_out,), jnp.float32, -bound, bound)
        wt = jnp.zeros((rows_p, cols_p), jnp.float32).at[:fan_in, :fan_out].set(w.T)
        bp = jnp.zeros((1, cols_p), jnp.float32).at[:, :fan_out].set(b)
        return wt.astype(jnp.bfloat16), bp

    w1t, b1 = linear(ks[0], ks[1], proj_in, proj_hid, in_p, hid_p)
    w2t, b2 = linear(ks[2], ks[3], proj_hid, proj_hid, hid_p, hid_p)
    w3t, b3 = linear(ks[4], ks[5], proj_hid, proj_out, hid_p, proj_out)
    # BN gamma/beta and IterNorm affine are fresh-module identities -> not materialized.
    return dict(w1t=w1t, b1=b1, w2t=w2t, b2=b2, w3t=w3t, b3=b3), in_p


# ----------------------------------------------------------------------------
# Pure-JAX reference (literal PyTorch translation, grouped formulation) used to
# validate the in-kernel dense block-diagonal whitening.
# ----------------------------------------------------------------------------
def _iternorm_ref(z, g, nc, T=ITERNORM_T, eps=ITERNORM_EPS):
    B, C = z.shape
    hp = lax.Precision.HIGHEST
    x = z.T.reshape(g, nc, B)
    mean = x.mean(-1, keepdims=True)
    xc = x - mean
    eye = jnp.broadcast_to(jnp.eye(nc, dtype=z.dtype), (g, nc, nc))
    sigma = eps * eye + (1.0 / B) * jnp.einsum("gim,gjm->gij", xc, xc, precision=hp)
    r_tr = 1.0 / jnp.sum(sigma * eye, axis=(1, 2), keepdims=True)
    sigma_n = sigma * r_tr
    p = eye
    for _ in range(T):
        p3 = jnp.einsum("gij,gjk,gkl->gil", p, p, p, precision=hp)
        p = 1.5 * p - 0.5 * jnp.einsum("gij,gjk->gik", p3, sigma_n, precision=hp)
    wm = p * jnp.sqrt(r_tr)
    xn = jnp.einsum("gij,gjm->gim", wm.astype(jnp.bfloat16), xc.astype(jnp.bfloat16),
                    preferred_element_type=jnp.float32)
    return xn.reshape(C, B).T
    # TODO(synk): running_mean / running_wm (IterNorm) and running_mean /
    # running_var (BN) momentum buffer updates are training-mode side effects
    # not reproduced; they do not affect the forward output.


def projector_ref(y_pad, params, g, nc):
    bf16, f32 = jnp.bfloat16, jnp.float32

    def mm(a, w):
        return jnp.dot(a.astype(bf16), w, preferred_element_type=f32)

    def bn_relu(h):
        mean = h.mean(0, keepdims=True)
        var = jnp.mean(jnp.square(h - mean), 0, keepdims=True)
        return jnp.maximum((h - mean) * lax.rsqrt(var + BN_EPS), 0.0)

    h = bn_relu(mm(y_pad, params["w1t"]) + params["b1"])
    h = bn_relu(mm(h, params["w2t"]) + params["b2"])
    z = mm(h, params["w3t"]) + params["b3"]
    return _iternorm_ref(z, g, nc)


if __name__ == "__main__":
    # proj_out=128 -> IterNorm picks nc=2, g=64 (non-trivial group whitening)
    B, proj_in, proj_hid, proj_out = 8, 16, 32, 128
    key = jax.random.PRNGKey(0)
    k_x, k_p = jax.random.split(key)

    params, in_p = init_params(k_p, proj_in, proj_hid, proj_out)
    g, nc = iternorm_groups(proj_out)
    bmask = make_blockmask(proj_out, nc)

    y = jax.random.normal(k_x, (B, proj_in), jnp.float32)
    y_pad = jnp.zeros((B, in_p), jnp.float32).at[:, :proj_in].set(y)

    out = projector_forward(y_pad, params, bmask)
    out = jax.block_until_ready(out)

    assert out.shape == (B, proj_out) and out.dtype == jnp.float32
    assert bool(jnp.all(jnp.isfinite(out)))

    ref = projector_ref(y_pad, params, g, nc)
    max_err = float(jnp.max(jnp.abs(out - ref)))
    assert bool(jnp.allclose(out, ref, rtol=3e-2, atol=3e-2)), max_err

    print("KERNEL_OK")
</pallas_src>

<mosaic_0001>
module attributes {stable_mosaic.version = 11 : i64} {
  func.func @_projector_kernel(%arg0: i32, %arg1: memref<8x128xf32, #tpu.memory_space<vmem>>, %arg2: memref<128x128xbf16, #tpu.memory_space<vmem>>, %arg3: memref<1x128xf32, #tpu.memory_space<vmem>>, %arg4: memref<128x128xbf16, #tpu.memory_space<vmem>>, %arg5: memref<1x128xf32, #tpu.memory_space<vmem>>, %arg6: memref<128x128xbf16, #tpu.memory_space<vmem>>, %arg7: memref<1x128xf32, #tpu.memory_space<vmem>>, %arg8: memref<128x128xf32, #tpu.memory_space<vmem>>, %arg9: memref<8x128xf32, #tpu.memory_space<vmem>>) attributes {dimension_semantics = [#tpu.dimension_semantics<arbitrary>], iteration_bounds = array<i64: 1>, scalar_prefetch = 0 : i64, scratch_operands = 0 : i64, tpu.core_type = #tpu.core_type<tc>, window_params = [{pipeline_mode = #tpu.pipeline_mode<synchronous>, transform_indices = @transform_0, window_bounds = array<i64: 8, 128>}, {pipeline_mode = #tpu.pipeline_mode<synchronous>, transform_indices = @transform_1, window_bounds = array<i64: 128, 128>}, {pipeline_mode = #tpu.pipeline_mode<synchronous>, transform_indices = @transform_2, window_bounds = array<i64: 1, 128>}, {pipeline_mode = #tpu.pipeline_mode<synchronous>, transform_indices = @transform_3, window_bounds = array<i64: 128, 128>}, {pipeline_mode = #tpu.pipeline_mode<synchronous>, transform_indices = @transform_4, window_bounds = array<i64: 1, 128>}, {pipeline_mode = #tpu.pipeline_mode<synchronous>, transform_indices = @transform_5, window_bounds = array<i64: 128, 128>}, {pipeline_mode = #tpu.pipeline_mode<synchronous>, transform_indices = @transform_6, window_bounds = array<i64: 1, 128>}, {pipeline_mode = #tpu.pipeline_mode<synchronous>, transform_indices = @transform_7, window_bounds = array<i64: 128, 128>}, {pipeline_mode = #tpu.pipeline_mode<synchronous>, transform_indices = @transform_8, window_bounds = array<i64: 8, 128>}]} {
    %c0 = arith.constant 0 : index
    %c0_0 = arith.constant 0 : index
    %0 = vector.load %arg1[%c0, %c0_0] : memref<8x128xf32, #tpu.memory_space<vmem>>, vector<8x128xf32>
    %c0_1 = arith.constant 0 : index
    %c0_2 = arith.constant 0 : index
    %1 = vector.load %arg2[%c0_1, %c0_2] : memref<128x128xbf16, #tpu.memory_space<vmem>>, vector<128x128xbf16>
    %2 = arith.truncf %0 : vector<8x128xf32> to vector<8x128xbf16>
    %cst = arith.constant dense<0.000000e+00> : vector<8x128xf32>
    %3 = tpu.matmul %2, %1, %cst {dimension_numbers = #tpu.dot_dimension_numbers<[1], [0], [0], [1], [0, 0, 1, 1], [], []>} : vector<8x128xbf16>, vector<128x128xbf16>, vector<8x128xf32> -> vector<8x128xf32>
    %c0_3 = arith.constant 0 : index
    %c0_4 = arith.constant 0 : index
    %4 = vector.load %arg3[%c0_3, %c0_4] : memref<1x128xf32, #tpu.memory_space<vmem>>, vector<1x128xf32>
    %5 = vector.broadcast %4 : vector<1x128xf32> to vector<8x128xf32>
    %6 = arith.addf %3, %5 : vector<8x128xf32>
    %cst_5 = arith.constant dense<0.000000e+00> : vector<128xf32>
    %7 = vector.multi_reduction <add>, %6, %cst_5 [0] : vector<8x128xf32> to vector<128xf32>
    %8 = vector.shape_cast %7 : vector<128xf32> to vector<1x128xf32>
    %cst_6 = arith.constant 8.000000e+00 : f32
    %9 = vector.broadcast %cst_6 : f32 to vector<1x128xf32>
    %10 = arith.divf %8, %9 : vector<1x128xf32>
    %11 = vector.broadcast %10 : vector<1x128xf32> to vector<8x128xf32>
    %12 = arith.subf %6, %11 : vector<8x128xf32>
    %13 = arith.mulf %12, %12 : vector<8x128xf32>
    %cst_7 = arith.constant dense<0.000000e+00> : vector<128xf32>
    %14 = vector.multi_reduction <add>, %13, %cst_7 [0] : vector<8x128xf32> to vector<128xf32>
    %15 = vector.shape_cast %14 : vector<128xf32> to vector<1x128xf32>
    %cst_8 = arith.constant 8.000000e+00 : f32
    %16 = vector.broadcast %cst_8 : f32 to vector<1x128xf32>
    %17 = arith.divf %15, %16 : vector<1x128xf32>
    %18 = vector.broadcast %10 : vector<1x128xf32> to vector<8x128xf32>
    %19 = arith.subf %6, %18 : vector<8x128xf32>
    %cst_9 = arith.constant 9.99999974E-6 : f32
    %20 = vector.broadcast %cst_9 : f32 to vector<1x128xf32>
    %21 = arith.addf %17, %20 : vector<1x128xf32>
    %22 = math.rsqrt %21 : vector<1x128xf32>
    %23 = vector.broadcast %22 : vector<1x128xf32> to vector<8x128xf32>
    %24 = arith.mulf %19, %23 : vector<8x128xf32>
    %cst_10 = arith.constant 0.000000e+00 : f32
    %25 = vector.broadcast %cst_10 : f32 to vector<8x128xf32>
    %26 = arith.maximumf %24, %25 : vector<8x128xf32>
    %c0_11 = arith.constant 0 : index
    %c0_12 = arith.constant 0 : index
    %27 = vector.load %arg4[%c0_11, %c0_12] : memref<128x128xbf16, #tpu.memory_space<vmem>>, vector<128x128xbf16>
    %28 = arith.truncf %26 : vector<8x128xf32> to vector<8x128xbf16>
    %cst_13 = arith.constant dense<0.000000e+00> : vector<8x128xf32>
    %29 = tpu.matmul %28, %27, %cst_13 {dimension_numbers = #tpu.dot_dimension_numbers<[1], [0], [0], [1], [0, 0, 1, 1], [], []>} : vector<8x128xbf16>, vector<128x128xbf16>, vector<8x128xf32> -> vector<8x128xf32>
    %c0_14 = arith.constant 0 : index
    %c0_15 = arith.constant 0 : index
    %30 = vector.load %arg5[%c0_14, %c0_15] : memref<1x128xf32, #tpu.memory_space<vmem>>, vector<1x128xf32>
    %31 = vector.broadcast %30 : vector<1x128xf32> to vector<8x128xf32>
    %32 = arith.addf %29, %31 : vector<8x128xf32>
    %cst_16 = arith.constant dense<0.000000e+00> : vector<128xf32>
    %33 = vector.multi_reduction <add>, %32, %cst_16 [0] : vector<8x128xf32> to vector<128xf32>
    %34 = vector.shape_cast %33 : vector<128xf32> to vector<1x128xf32>
    %cst_17 = arith.constant 8.000000e+00 : f32
    %35 = vector.broadcast %cst_17 : f32 to vector<1x128xf32>
    %36 = arith.divf %34, %35 : vector<1x128xf32>
    %37 = vector.broadcast %36 : vector<1x128xf32> to vector<8x128xf32>
    %38 = arith.subf %32, %37 : vector<8x128xf32>
    %39 = arith.mulf %38, %38 : vector<8x128xf32>
    %cst_18 = arith.constant dense<0.000000e+00> : vector<128xf32>
    %40 = vector.multi_reduction <add>, %39, %cst_18 [0] : vector<8x128xf32> to vector<128xf32>
    %41 = vector.shape_cast %40 : vector<128xf32> to vector<1x128xf32>
    %cst_19 = arith.constant 8.000000e+00 : f32
    %42 = vector.broadcast %cst_19 : f32 to vector<1x128xf32>
    %43 = arith.divf %41, %42 : vector<1x128xf32>
    %44 = vector.broadcast %36 : vector<1x128xf32> to vector<8x128xf32>
    %45 = arith.subf %32, %44 : vector<8x128xf32>
    %cst_20 = arith.constant 9.99999974E-6 : f32
    %46 = vector.broadcast %cst_20 : f32 to vector<1x128xf32>
    %47 = arith.addf %43, %46 : vector<1x128xf32>
    %48 = math.rsqrt %47 : vector<1x128xf32>
    %49 = vector.broadcast %48 : vector<1x128xf32> to vector<8x128xf32>
    %50 = arith.mulf %45, %49 : vector<8x128xf32>
    %cst_21 = arith.constant 0.000000e+00 : f32
    %51 = vector.broadcast %cst_21 : f32 to vector<8x128xf32>
    %52 = arith.maximumf %50, %51 : vector<8x128xf32>
    %c0_22 = arith.constant 0 : index
    %c0_23 = arith.constant 0 : index
    %53 = vector.load %arg6[%c0_22, %c0_23] : memref<128x128xbf16, #tpu.memory_space<vmem>>, vector<128x128xbf16>
    %54 = arith.truncf %52 : vector<8x128xf32> to vector<8x128xbf16>
    %cst_24 = arith.constant dense<0.000000e+00> : vector<8x128xf32>
    %55 = tpu.matmul %54, %53, %cst_24 {dimension_numbers = #tpu.dot_dimension_numbers<[1], [0], [0], [1], [0, 0, 1, 1], [], []>} : vector<8x128xbf16>, vector<128x128xbf16>, vector<8x128xf32> -> vector<8x128xf32>
    %c0_25 = arith.constant 0 : index
    %c0_26 = arith.constant 0 : index
    %56 = vector.load %arg7[%c0_25, %c0_26] : memref<1x128xf32, #tpu.memory_space<vmem>>, vector<1x128xf32>
    %57 = vector.broadcast %56 : vector<1x128xf32> to vector<8x128xf32>
    %58 = arith.addf %55, %57 : vector<8x128xf32>
    %c0_27 = arith.constant 0 : index
    %c0_28 = arith.constant 0 : index
    %59 = vector.load %arg8[%c0_27, %c0_28] : memref<128x128xf32, #tpu.memory_space<vmem>>, vector<128x128xf32>
    %60 = tpu.iota {dimensions = array<i32: 0>} : vector<128x128xi32>
    %61 = tpu.iota {dimensions = array<i32: 1>} : vector<128x128xi32>
    %62 = arith.cmpi eq, %60, %61 : vector<128x128xi32>
    %63 = arith.extui %62 : vector<128x128xi1> to vector<128x128xi32>
    %64 = arith.sitofp %63 : vector<128x128xi32> to vector<128x128xf32>
    %cst_29 = arith.constant dense<0.000000e+00> : vector<128xf32>
    %65 = vector.multi_reduction <add>, %58, %cst_29 [0] : vector<8x128xf32> to vector<128xf32>
    %66 = vector.shape_cast %65 : vector<128xf32> to vector<1x128xf32>
    %cst_30 = arith.constant 8.000000e+00 : f32
    %67 = vector.broadcast %cst_30 : f32 to vector<1x128xf32>
    %68 = arith.divf %66, %67 : vector<1x128xf32>
    %69 = vector.broadcast %68 : vector<1x128xf32> to vector<8x128xf32>
    %70 = arith.subf %58, %69 : vector<8x128xf32>
    %cst_31 = arith.constant dense<0.000000e+00> : vector<128x128xf32>
    %71 = tpu.matmul %70, %70, %cst_31 {dimension_numbers = #tpu.dot_dimension_numbers<[0], [0], [1], [1], [0, 1, 1, 1], [], []>} : vector<8x128xf32>, vector<8x128xf32>, vector<128x128xf32> -> vector<128x128xf32>
    %cst_32 = arith.constant 1.250000e-01 : f32
    %72 = vector.broadcast %cst_32 : f32 to vector<128x128xf32>
    %73 = arith.mulf %72, %71 : vector<128x128xf32>
    %74 = arith.mulf %59, %73 : vector<128x128xf32>
    %cst_33 = arith.constant 9.99999974E-6 : f32
    %75 = vector.broadcast %cst_33 : f32 to vector<128x128xf32>
    %76 = arith.mulf %75, %64 : vector<128x128xf32>
    %77 = arith.addf %74, %76 : vector<128x128xf32>
    %78 = arith.mulf %77, %64 : vector<128x128xf32>
    %cst_34 = arith.constant dense<0.000000e+00> : vector<128xf32>
    %79 = vector.multi_reduction <add>, %78, %cst_34 [1] : vector<128x128xf32> to vector<128xf32>
    %80 = vector.shape_cast %79 : vector<128xf32> to vector<128x1xf32>
    %81 = vector.broadcast %80 : vector<128x1xf32> to vector<128x128xf32>
    %82 = arith.mulf %59, %81 : vector<128x128xf32>
    %cst_35 = arith.constant dense<0.000000e+00> : vector<128xf32>
    %83 = vector.multi_reduction <add>, %82, %cst_35 [0] : vector<128x128xf32> to vector<128xf32>
    %84 = vector.shape_cast %83 : vector<128xf32> to vector<1x128xf32>
    %cst_36 = arith.constant 1.000000e+00 : f32
    %85 = vector.broadcast %cst_36 : f32 to vector<1x128xf32>
    %86 = arith.divf %85, %84 : vector<1x128xf32>
    %87 = vector.broadcast %86 : vector<1x128xf32> to vector<128x128xf32>
    %88 = arith.mulf %77, %87 : vector<128x128xf32>
    %cst_37 = arith.constant dense<0.000000e+00> : vector<128x128xf32>
    %89 = tpu.matmul %64, %64, %cst_37 {dimension_numbers = #tpu.dot_dimension_numbers<[1], [0], [0], [1], [0, 0, 1, 1], [], []>} : vector<128x128xf32>, vector<128x128xf32>, vector<128x128xf32> -> vector<128x128xf32>
    %cst_38 = arith.constant dense<0.000000e+00> : vector<128x128xf32>
    %90 = tpu.matmul %89, %64, %cst_38 {dimension_numbers = #tpu.dot_dimension_numbers<[1], [0], [0], [1], [0, 0, 1, 1], [], []>} : vector<128x128xf32>, vector<128x128xf32>, vector<128x128xf32> -> vector<128x128xf32>
    %cst_39 = arith.constant 1.500000e+00 : f32
    %91 = vector.broadcast %cst_39 : f32 to vector<128x128xf32>
    %92 = arith.mulf %91, %64 : vector<128x128xf32>
    %cst_40 = arith.constant dense<0.000000e+00> : vector<128x128xf32>
    %93 = tpu.matmul %90, %88, %cst_40 {dimension_numbers = #tpu.dot_dimension_numbers<[1], [0], [0], [1], [0, 0, 1, 1], [], []>} : vector<128x128xf32>, vector<128x128xf32>, vector<128x128xf32> -> vector<128x128xf32>
    %cst_41 = arith.constant 5.000000e-01 : f32
    %94 = vector.broadcast %cst_41 : f32 to vector<128x128xf32>
    %95 = arith.mulf %94, %93 : vector<128x128xf32>
    %96 = arith.subf %92, %95 : vector<128x128xf32>
    %cst_42 = arith.constant dense<0.000000e+00> : vector<128x128xf32>
    %97 = tpu.matmul %96, %96, %cst_42 {dimension_numbers = #tpu.dot_dimension_numbers<[1], [0], [0], [1], [0, 0, 1, 1], [], []>} : vector<128x128xf32>, vector<128x128xf32>, vector<128x128xf32> -> vector<128x128xf32>
    %cst_43 = arith.constant dense<0.000000e+00> : vector<128x128xf32>
    %98 = tpu.matmul %97, %96, %cst_43 {dimension_numbers = #tpu.dot_dimension_numbers<[1], [0], [0], [1], [0, 0, 1, 1], [], []>} : vector<128x128xf32>, vector<128x128xf32>, vector<128x128xf32> -> vector<128x128xf32>
    %cst_44 = arith.constant 1.500000e+00 : f32
    %99 = vector.broadcast %cst_44 : f32 to vector<128x128xf32>
    %100 = arith.mulf %99, %96 : vector<128x128xf32>
    %cst_45 = arith.constant dense<0.000000e+00> : vector<128x128xf32>
    %101 = tpu.matmul %98, %88, %cst_45 {dimension_numbers = #tpu.dot_dimension_numbers<[1], [0], [0], [1], [0, 0, 1, 1], [], []>} : vector<128x128xf32>, vector<128x128xf32>, vector<128x128xf32> -> vector<128x128xf32>
    %cst_46 = arith.constant 5.000000e-01 : f32
    %102 = vector.broadcast %cst_46 : f32 to vector<128x128xf32>
    %103 = arith.mulf %102, %101 : vector<128x128xf32>
    %104 = arith.subf %100, %103 : vector<128x128xf32>
    %cst_47 = arith.constant dense<0.000000e+00> : vector<128x128xf32>
    %105 = tpu.matmul %104, %104, %cst_47 {dimension_numbers = #tpu.dot_dimension_numbers<[1], [0], [0], [1], [0, 0, 1, 1], [], []>} : vector<128x128xf32>, vector<128x128xf32>, vector<128x128xf32> -> vector<128x128xf32>
    %cst_48 = arith.constant dense<0.000000e+00> : vector<128x128xf32>
    %106 = tpu.matmul %105, %104, %cst_48 {dimension_numbers = #tpu.dot_dimension_numbers<[1], [0], [0], [1], [0, 0, 1, 1], [], []>} : vector<128x128xf32>, vector<128x128xf32>, vector<128x128xf32> -> vector<128x128xf32>
    %cst_49 = arith.constant 1.500000e+00 : f32
    %107 = vector.broadcast %cst_49 : f32 to vector<128x128xf32>
    %108 = arith.mulf %107, %104 : vector<128x128xf32>
    %cst_50 = arith.constant dense<0.000000e+00> : vector<128x128xf32>
    %109 = tpu.matmul %106, %88, %cst_50 {dimension_numbers = #tpu.dot_dimension_numbers<[1], [0], [0], [1], [0, 0, 1, 1], [], []>} : vector<128x128xf32>, vector<128x128xf32>, vector<128x128xf32> -> vector<128x128xf32>
    %cst_51 = arith.constant 5.000000e-01 : f32
    %110 = vector.broadcast %cst_51 : f32 to vector<128x128xf32>
    %111 = arith.mulf %110, %109 : vector<128x128xf32>
    %112 = arith.subf %108, %111 : vector<128x128xf32>
    %cst_52 = arith.constant dense<0.000000e+00> : vector<128x128xf32>
    %113 = tpu.matmul %112, %112, %cst_52 {dimension_numbers = #tpu.dot_dimension_numbers<[1], [0], [0], [1], [0, 0, 1, 1], [], []>} : vector<128x128xf32>, vector<128x128xf32>, vector<128x128xf32> -> vector<128x128xf32>
    %cst_53 = arith.constant dense<0.000000e+00> : vector<128x128xf32>
    %114 = tpu.matmul %113, %112, %cst_53 {dimension_numbers = #tpu.dot_dimension_numbers<[1], [0], [0], [1], [0, 0, 1, 1], [], []>} : vector<128x128xf32>, vector<128x128xf32>, vector<128x128xf32> -> vector<128x128xf32>
    %cst_54 = arith.constant 1.500000e+00 : f32
    %115 = vector.broadcast %cst_54 : f32 to vector<128x128xf32>
    %116 = arith.mulf %115, %112 : vector<128x128xf32>
    %cst_55 = arith.constant dense<0.000000e+00> : vector<128x128xf32>
    %117 = tpu.matmul %114, %88, %cst_55 {dimension_numbers = #tpu.dot_dimension_numbers<[1], [0], [0], [1], [0, 0, 1, 1], [], []>} : vector<128x128xf32>, vector<128x128xf32>, vector<128x128xf32> -> vector<128x128xf32>
    %cst_56 = arith.constant 5.000000e-01 : f32
    %118 = vector.broadcast %cst_56 : f32 to vector<128x128xf32>
    %119 = arith.mulf %118, %117 : vector<128x128xf32>
    %120 = arith.subf %116, %119 : vector<128x128xf32>
    %cst_57 = arith.constant dense<0.000000e+00> : vector<128x128xf32>
    %121 = tpu.matmul %120, %120, %cst_57 {dimension_numbers = #tpu.dot_dimension_numbers<[1], [0], [0], [1], [0, 0, 1, 1], [], []>} : vector<128x128xf32>, vector<128x128xf32>, vector<128x128xf32> -> vector<128x128xf32>
    %cst_58 = arith.constant dense<0.000000e+00> : vector<128x128xf32>
    %122 = tpu.matmul %121, %120, %cst_58 {dimension_numbers = #tpu.dot_dimension_numbers<[1], [0], [0], [1], [0, 0, 1, 1], [], []>} : vector<128x128xf32>, vector<128x128xf32>, vector<128x128xf32> -> vector<128x128xf32>
    %cst_59 = arith.constant 1.500000e+00 : f32
    %123 = vector.broadcast %cst_59 : f32 to vector<128x128xf32>
    %124 = arith.mulf %123, %120 : vector<128x128xf32>
    %cst_60 = arith.constant dense<0.000000e+00> : vector<128x128xf32>
    %125 = tpu.matmul %122, %88, %cst_60 {dimension_numbers = #tpu.dot_dimension_numbers<[1], [0], [0], [1], [0, 0, 1, 1], [], []>} : vector<128x128xf32>, vector<128x128xf32>, vector<128x128xf32> -> vector<128x128xf32>
    %cst_61 = arith.constant 5.000000e-01 : f32
    %126 = vector.broadcast %cst_61 : f32 to vector<128x128xf32>
    %127 = arith.mulf %126, %125 : vector<128x128xf32>
    %128 = arith.subf %124, %127 : vector<128x128xf32>
    %129 = math.sqrt %86 : vector<1x128xf32>
    %130 = vector.broadcast %129 : vector<1x128xf32> to vector<128x128xf32>
    %131 = arith.mulf %128, %130 : vector<128x128xf32>
    %132 = arith.truncf %70 : vector<8x128xf32> to vector<8x128xbf16>
    %133 = arith.truncf %131 : vector<128x128xf32> to vector<128x128xbf16>
    %cst_62 = arith.constant dense<0.000000e+00> : vector<8x128xf32>
    %134 = tpu.matmul %132, %133, %cst_62 {dimension_numbers = #tpu.dot_dimension_numbers<[1], [1], [0], [0], [0, 0, 1, 0], [], []>} : vector<8x128xbf16>, vector<128x128xbf16>, vector<8x128xf32> -> vector<8x128xf32>
    %c0_63 = arith.constant 0 : index
    %c0_64 = arith.constant 0 : index
    %135 = vector.load %arg9[%c0_63, %c0_64] : memref<8x128xf32, #tpu.memory_space<vmem>>, vector<8x128xf32>
    tpu.vector_store %arg9[%c0_63, %c0_64], %134 {strides = array<i32>} : memref<8x128xf32, #tpu.memory_space<vmem>>, vector<8x128xf32>,
    return
  }
  func.func @transform_0(%arg0: i32) -> (i32, i32) {
    %c0_i32 = arith.constant 0 : i32
    %c0_i32_0 = arith.constant 0 : i32
    %c0_i32_1 = arith.constant 0 : i32
    return %c0_i32, %c0_i32_0 : i32, i32
  }
  func.func @transform_1(%arg0: i32) -> (i32, i32) {
    %c0_i32 = arith.constant 0 : i32
    %c0_i32_0 = arith.constant 0 : i32
    %c0_i32_1 = arith.constant 0 : i32
    return %c0_i32, %c0_i32_0 : i32, i32
  }
  func.func @transform_2(%arg0: i32) -> (i32, i32) {
    %c0_i32 = arith.constant 0 : i32
    %c0_i32_0 = arith.constant 0 : i32
    %c0_i32_1 = arith.constant 0 : i32
    return %c0_i32, %c0_i32_0 : i32, i32
  }
  func.func @transform_3(%arg0: i32) -> (i32, i32) {
    %c0_i32 = arith.constant 0 : i32
    %c0_i32_0 = arith.constant 0 : i32
    %c0_i32_1 = arith.constant 0 : i32
    return %c0_i32, %c0_i32_0 : i32, i32
  }
  func.func @transform_4(%arg0: i32) -> (i32, i32) {
    %c0_i32 = arith.constant 0 : i32
    %c0_i32_0 = arith.constant 0 : i32
    %c0_i32_1 = arith.constant 0 : i32
    return %c0_i32, %c0_i32_0 : i32, i32
  }
  func.func @transform_5(%arg0: i32) -> (i32, i32) {
    %c0_i32 = arith.constant 0 : i32
    %c0_i32_0 = arith.constant 0 : i32
    %c0_i32_1 = arith.constant 0 : i32
    return %c0_i32, %c0_i32_0 : i32, i32
  }
  func.func @transform_6(%arg0: i32) -> (i32, i32) {
    %c0_i32 = arith.constant 0 : i32
    %c0_i32_0 = arith.constant 0 : i32
    %c0_i32_1 = arith.constant 0 : i32
    return %c0_i32, %c0_i32_0 : i32, i32
  }
  func.func @transform_7(%arg0: i32) -> (i32, i32) {
    %c0_i32 = arith.constant 0 : i32
    %c0_i32_0 = arith.constant 0 : i32
    %c0_i32_1 = arith.constant 0 : i32
    return %c0_i32, %c0_i32_0 : i32, i32
  }
  func.func @transform_8(%arg0: i32) -> (i32, i32) {
    %c0_i32 = arith.constant 0 : i32
    %c0_i32_0 = arith.constant 0 : i32
    %c0_i32_1 = arith.constant 0 : i32
    return %c0_i32, %c0_i32_0 : i32, i32
  }
}

</mosaic_0001>

<llo_original>
// kernel: tpu_custom_call.1
$region0: #{tpu_custom_call.1}
  #allocation0 [shape = 'u32[]', space=smem, size = 0x4, offset = 0x4, fixed_abs, tag = 'smem constant byte address 0x4 - core index']
  #allocation1 [shape = 'u32[144,128]{1,0:T(1,128)}', space=vmem, size = 0x12000, scoped, tag = 'internal scratch']
  %s0 = inlined_call_operand.hbm [shape: f32[8,128], index: 0, kind: input, shape index: {}]
  %s1 = inlined_call_operand.hbm [shape: bf16[128,128], index: 1, kind: input, shape index: {}]
  %s2 = inlined_call_operand.vmem [shape: f32[1,128], index: 2, kind: input, shape index: {}]
  %s3 = inlined_call_operand.hbm [shape: bf16[128,128], index: 3, kind: input, shape index: {}]
  %s4 = inlined_call_operand.vmem [shape: f32[1,128], index: 4, kind: input, shape index: {}]
  %s5 = inlined_call_operand.hbm [shape: bf16[128,128], index: 5, kind: input, shape index: {}]
  %s6 = inlined_call_operand.vmem [shape: f32[1,128], index: 6, kind: input, shape index: {}]
  %s7 = inlined_call_operand.hbm [shape: f32[128,128], index: 7, kind: input, shape index: {}]
  %s8 = inlined_call_operand.hbm [shape: f32[8,128], index: 8, kind: output, shape index: {}]
  %s9 = sld [smem:[#allocation0]]
  $region62: #{tpu_custom_call.1} parent=0
    _
  %s11 = ssub.s32 1, %s9
  %s12 = scalar_select 0, %s11, %s9
  $region1: #{tpu_custom_call.1} parent=0
    #allocation2 [shape = 'u8[4096]{0}', space=vmem, size = 0x1000, scoped, tag = 'input window, operand 0, single buffered']
    #allocation3 [shape = 's32[1]{0}', space=sflag, size = 0x4, scoped, tag = 'scoped memory for tpu_custom_call.1']
    #allocation4 [shape = 's32[1]{0}', space=sflag, size = 0x4, scoped, tag = 'scoped memory for tpu_custom_call.1']
    #allocation5 [shape = 'u8[32768]{0}', space=vmem, size = 0x8000, scoped, tag = 'input window, operand 1, single buffered']
    #allocation6 [shape = 's32[1]{0}', space=sflag, size = 0x4, scoped, tag = 'scoped memory for tpu_custom_call.1']
    #allocation7 [shape = 'u8[32768]{0}', space=vmem, size = 0x8000, scoped, tag = 'input window, operand 3, single buffered']
    #allocation8 [shape = 'u8[32768]{0}', space=vmem, size = 0x8000, scoped, tag = 'input window, operand 5, single buffered']
    #allocation9 [shape = 's32[1]{0}', space=sflag, size = 0x4, scoped, tag = 'scoped memory for tpu_custom_call.1']
    #allocation10 [shape = 'u8[65536]{0}', space=vmem, size = 0x10000, scoped, tag = 'input window, operand 7, single buffered']
    #allocation11 [shape = 'u8[4096]{0}', space=vmem, size = 0x1000, scoped, tag = 'output window, operand 0, single buffered']
    %13 = vsyncpa [#allocation3], 0
    %14 = vsyncpa [#allocation6], 0
    %15 = vsyncpa [#allocation9], 0
    %16 = vsyncpa [#allocation4], 0
    // Predicated region
    $region2: #{tpu_custom_call.1} parent=1 // pred_check
      _
    $region3: #{tpu_custom_call.1} parent=1 // pred_check_branch
      %18 = sbr.rel (0) target = $region5
    $region4: #{tpu_custom_call.1} parent=1 // pred_region
      %s20 = ssub.s32 128, 128
      %21 = vsyncadd [#allocation3], %s20
      %s23 = sshll.u32 [#allocation2], 4
      %s24 = int_to_ptr.vmem [resolvable:$true] %s23
      %26 = dma.hbm_to_vmem [thread:$0]  %s0, 128, %s24, [#allocation3]
    $region5: #{tpu_custom_call.1} parent=1 // pred_fallthru
      _
    // Predicated region
    $region6: #{tpu_custom_call.1} parent=1 // pred_check
      _
    $region7: #{tpu_custom_call.1} parent=1 // pred_check_branch
      %28 = sbr.rel (0) target = $region9
    $region8: #{tpu_custom_call.1} parent=1 // pred_region
      %s30 = ssub.s32 1024, 1024
      %31 = vsyncadd [#allocation6], %s30
      %s32 = sshll.u32 [#allocation5], 4
      %s33 = int_to_ptr.vmem [resolvable:$true] %s32
      %38 = dma.hbm_to_vmem [thread:$0]  %s1, 1024, %s33, [#allocation6], 64, 64, 4
    $region9: #{tpu_custom_call.1} parent=1 // pred_fallthru
      _
    // Predicated region
    $region10: #{tpu_custom_call.1} parent=1 // pred_check
      _
    $region11: #{tpu_custom_call.1} parent=1 // pred_check_branch
      %40 = sbr.rel (0) target = $region13
    $region12: #{tpu_custom_call.1} parent=1 // pred_region
      _
    $region13: #{tpu_custom_call.1} parent=1 // pred_fallthru
      _
    // Predicated region
    $region14: #{tpu_custom_call.1} parent=1 // pred_check
      _
    $region15: #{tpu_custom_call.1} parent=1 // pred_check_branch
      %42 = sbr.rel (0) target = $region17
    $region16: #{tpu_custom_call.1} parent=1 // pred_region
      %s44 = ssub.s32 1024, 1024
      %45 = vsyncadd [#allocation6], %s44
      %s46 = sshll.u32 [#allocation7], 4
      %s47 = int_to_ptr.vmem [resolvable:$true] %s46
      %52 = dma.hbm_to_vmem [thread:$0]  %s3, 1024, %s47, [#allocation6], 64, 64, 4
    $region17: #{tpu_custom_call.1} parent=1 // pred_fallthru
      _
    // Predicated region
    $region18: #{tpu_custom_call.1} parent=1 // pred_check
      _
    $region19: #{tpu_custom_call.1} parent=1 // pred_check_branch
      %54 = sbr.rel (0) target = $region21
    $region20: #{tpu_custom_call.1} parent=1 // pred_region
      _
    $region21: #{tpu_custom_call.1} parent=1 // pred_fallthru
      _
    // Predicated region
    $region22: #{tpu_custom_call.1} parent=1 // pred_check
      _
    $region23: #{tpu_custom_call.1} parent=1 // pred_check_branch
      %56 = sbr.rel (0) target = $region25
    $region24: #{tpu_custom_call.1} parent=1 // pred_region
      %s58 = ssub.s32 1024, 1024
      %59 = vsyncadd [#allocation9], %s58
      %s60 = sshll.u32 [#allocation8], 4
      %s61 = int_to_ptr.vmem [resolvable:$true] %s60
      %66 = dma.hbm_to_vmem [thread:$0]  %s5, 1024, %s61, [#allocation9], 64, 64, 4
    $region25: #{tpu_custom_call.1} parent=1 // pred_fallthru
      _
    // Predicated region
    $region26: #{tpu_custom_call.1} parent=1 // pred_check
      _
    $region27: #{tpu_custom_call.1} parent=1 // pred_check_branch
      %68 = sbr.rel (0) target = $region29
    $region28: #{tpu_custom_call.1} parent=1 // pred_region
      _
    $region29: #{tpu_custom_call.1} parent=1 // pred_fallthru
      _
    // Predicated region
    $region30: #{tpu_custom_call.1} parent=1 // pred_check
      _
    $region31: #{tpu_custom_call.1} parent=1 // pred_check_branch
      %70 = sbr.rel (0) target = $region33
    $region32: #{tpu_custom_call.1} parent=1 // pred_region
      %s72 = ssub.s32 2048, 2048
      %73 = vsyncadd [#allocation9], %s72
      %s74 = sshll.u32 [#allocation10], 4
      %s75 = int_to_ptr.vmem [resolvable:$true] %s74
      %80 = dma.hbm_to_vmem [thread:$0]  %s7, 2048, %s75, [#allocation9], 128, 128, 8
    $region33: #{tpu_custom_call.1} parent=1 // pred_fallthru
      _
    // Predicated region
    $region34: #{tpu_custom_call.1} parent=1 // pred_check
      _
    $region35: #{tpu_custom_call.1} parent=1 // pred_check_branch
      %82 = sbr.rel (0) target = $region37
    $region36: #{tpu_custom_call.1} parent=1 // pred_region
      %83 = dma.done [#allocation3], 128
    $region37: #{tpu_custom_call.1} parent=1 // pred_fallthru
      _
    // Predicated region
    $region38: #{tpu_custom_call.1} parent=1 // pred_check
      _
    $region39: #{tpu_custom_call.1} parent=1 // pred_check_branch
      %85 = sbr.rel (0) target = $region41
    $region40: #{tpu_custom_call.1} parent=1 // pred_region
      %86 = dma.done [#allocation6], 1024
    $region41: #{tpu_custom_call.1} parent=1 // pred_fallthru
      _
    // Predicated region
    $region42: #{tpu_custom_call.1} parent=1 // pred_check
      _
    $region43: #{tpu_custom_call.1} parent=1 // pred_check_branch
      %88 = sbr.rel (0) target = $region45
    $region44: #{tpu_custom_call.1} parent=1 // pred_region
      %89 = dma.done [#allocation6], 1024
    $region45: #{tpu_custom_call.1} parent=1 // pred_fallthru
      _
    // Predicated region
    $region46: #{tpu_custom_call.1} parent=1 // pred_check
      _
    $region47: #{tpu_custom_call.1} parent=1 // pred_check_branch
      %91 = sbr.rel (0) target = $region49
    $region48: #{tpu_custom_call.1} parent=1 // pred_region
      %92 = dma.done [#allocation9], 1024
    $region49: #{tpu_custom_call.1} parent=1 // pred_fallthru
      _
    // Predicated region
    $region50: #{tpu_custom_call.1} parent=1 // pred_check
      _
    $region51: #{tpu_custom_call.1} parent=1 // pred_check_branch
      %94 = sbr.rel (0) target = $region53
    $region52: #{tpu_custom_call.1} parent=1 // pred_region
      %95 = dma.done [#allocation9], 2048
    $region53: #{tpu_custom_call.1} parent=1 // pred_fallthru
      _
    %v97 = vld [vmem:[#allocation2] sm:$0xff]
    %v98 = vld [vmem:[#allocation5] sm:$0xf]
    %v99 = vld [vmem:[#allocation5 + $0x4] sm:$0xf]
    %v100 = vld [vmem:[#allocation5 + $0x8] sm:$0xf]
    %v101 = vld [vmem:[#allocation5 + $0xc] sm:$0xf]
    %v102 = vld [vmem:[#allocation5 + $0x10] sm:$0xf]
    %v103 = vld [vmem:[#allocation5 + $0x14] sm:$0xf]
    %v104 = vld [vmem:[#allocation5 + $0x18] sm:$0xf]
    %v105 = vld [vmem:[#allocation5 + $0x1c] sm:$0xf]
    %v106 = vld [vmem:[#allocation5 + $0x20] sm:$0xf]
    %v107 = vld [vmem:[#allocation5 + $0x24] sm:$0xf]
    %v108 = vld [vmem:[#allocation5 + $0x28] sm:$0xf]
    %v109 = vld [vmem:[#allocation5 + $0x2c] sm:$0xf]
    %v110 = vld [vmem:[#allocation5 + $0x30] sm:$0xf]
    %v111 = vld [vmem:[#allocation5 + $0x34] sm:$0xf]
    %v112 = vld [vmem:[#allocation5 + $0x38] sm:$0xf]
    %v113 = vld [vmem:[#allocation5 + $0x3c] sm:$0xf]
    %v114 = vpack.c.bf16 %v97, %v97
    %v115 = vld [vmem:[%s2] sm:$0x1]
    %v117 = vlaneseq
    %v118 = vshrl.u32 %v117, 7
    %v119 = vsub.s32 0, %v118
    %v120 = vrot.slane %v115, %v119
    %v138 = vunpack.c.l.b16 %v98
    %v139 = vunpack.c.l.b16 %v99
    %v140 = vunpack.c.l.b16 %v100
    %v141 = vunpack.c.l.b16 %v101
    %v142 = vunpack.c.l.b16 %v102
    %v143 = vunpack.c.l.b16 %v103
    %v144 = vunpack.c.l.b16 %v104
    %v145 = vunpack.c.l.b16 %v105
    %v146 = vunpack.c.l.b16 %v106
    %v147 = vunpack.c.l.b16 %v107
    %v148 = vunpack.c.l.b16 %v108
    %v149 = vunpack.c.l.b16 %v109
    %v150 = vunpack.c.l.b16 %v110
    %v151 = vunpack.c.l.b16 %v111
    %v152 = vunpack.c.l.b16 %v112
    %v153 = vunpack.c.l.b16 %v113
    %v154 = vpack.c.b16 %v139, %v138
    %v155 = vpack.c.b16 %v141, %v140
    %v156 = vpack.c.b16 %v143, %v142
    %v157 = vpack.c.b16 %v145, %v144
    %v158 = vpack.c.b16 %v147, %v146
    %v159 = vpack.c.b16 %v149, %v148
    %v160 = vpack.c.b16 %v151, %v150
    %v161 = vpack.c.b16 %v153, %v152
    %170 = vmatprep.subr.bf16.mxu0 0
    %171 = vmatpush1.bf16.msra.mxu0 %v161
    %172 = vmatprep.subr.bf16.mxu0 0
    %173 = vmatpush1.bf16.msra.mxu0 %v160
    %174 = vmatprep.subr.bf16.mxu0 0
    %175 = vmatpush1.bf16.msra.mxu0 %v159
    %176 = vmatprep.subr.bf16.mxu0 0
    %177 = vmatpush1.bf16.msra.mxu0 %v158
    %178 = vmatprep.subr.bf16.mxu0 0
    %179 = vmatpush1.bf16.msra.mxu0 %v157
    %180 = vmatprep.subr.bf16.mxu0 0
    %181 = vmatpush1.bf16.msra.mxu0 %v156
    %182 = vmatprep.subr.bf16.mxu0 0
    %183 = vmatpush1.bf16.msra.mxu0 %v155
    %184 = vmatprep.subr.bf16.mxu0 0
    %185 = vmatpush1.bf16.msra.mxu0 %v154
    %186 = vmatprep.subr.bf16.mxu0 0
    %187 = vmatpush2.bf16.msra.mxu0 0
    %188 = vmatprep.subr.bf16.mxu0 0
    %189 = vmatpush2.bf16.msra.mxu0 0
    %190 = vmatprep.subr.bf16.mxu0 0
    %191 = vmatpush2.bf16.msra.mxu0 0
    %192 = vmatprep.subr.bf16.mxu0 0
    %193 = vmatpush2.bf16.msra.mxu0 0
    %194 = vmatprep.subr.bf16.mxu0 0
    %195 = vmatpush2.bf16.msra.mxu0 0
    %196 = vmatprep.subr.bf16.mxu0 0
    %197 = vmatpush2.bf16.msra.mxu0 0
    %198 = vmatprep.subr.bf16.mxu0 0
    %199 = vmatpush2.bf16.msra.mxu0 0
    %200 = vmatprep.subr.bf16.mxu0 0
    %201 = vmatpush2.bf16.msra.mxu0 0
    %202 = vmatprep.mubr.bf16.mxu0 0
    %203 = vmatmul.mubr.bf16.gmra.mxu0 %v114
    %v204 = vpop.f32.mrf.mxu0
    %v205 = vadd.f32 %v120, %v204
    %v206 = vpop.f32.mrf.mxu0
    %v207 = vpop.f32.mrf.mxu0
    %v208 = vpop.f32.mrf.mxu0
    %209 = vdwg.mxu0
    %v210 = vrot.slane %v205, 4
    %v211 = vadd.f32 %v205, %v210
    %v212 = vrot.slane %v211, 2
    %v213 = vadd.f32 %v211, %v212
    %v214 = vrot.slane %v213, 1
    %v215 = vadd.f32 %v213, %v214
    %v216 = vrcp.pop 8.0
    %v217 = vmul.f32 %v215, %v216
    %v218 = vsub.f32 %v205, %v217
    %v219 = vmul.f32 %v218, %v218
    %v220 = vrot.slane %v219, 4
    %v221 = vadd.f32 %v219, %v220
    %v222 = vrot.slane %v221, 2
    %v223 = vadd.f32 %v221, %v222
    %v224 = vrot.slane %v223, 1
    %v225 = vadd.f32 %v223, %v224
    %v226 = vmul.f32 %v225, %v216
    %v227 = vadd.f32 %v226, 1e-05
    %v228 = vrsqrt.pop %v227
    %v229 = vmul.f32 %v218, %v228
    %v230 = vmax.f32 %v229, 0.0
    %v231 = vld [vmem:[#allocation7] sm:$0xf]
    %v232 = vld [vmem:[#allocation7 + $0x4] sm:$0xf]
    %v233 = vld [vmem:[#allocation7 + $0x8] sm:$0xf]
    %v234 = vld [vmem:[#allocation7 + $0xc] sm:$0xf]
    %v235 = vld [vmem:[#allocation7 + $0x10] sm:$0xf]
    %v236 = vld [vmem:[#allocation7 + $0x14] sm:$0xf]
    %v237 = vld [vmem:[#allocation7 + $0x18] sm:$0xf]
    %v238 = vld [vmem:[#allocation7 + $0x1c] sm:$0xf]
    %v239 = vld [vmem:[#allocation7 + $0x20] sm:$0xf]
    %v240 = vld [vmem:[#allocation7 + $0x24] sm:$0xf]
    %v241 = vld [vmem:[#allocation7 + $0x28] sm:$0xf]
    %v242 = vld [vmem:[#allocation7 + $0x2c] sm:$0xf]
    %v243 = vld [vmem:[#allocation7 + $0x30] sm:$0xf]
    %v244 = vld [vmem:[#allocation7 + $0x34] sm:$0xf]
    %v245 = vld [vmem:[#allocation7 + $0x38] sm:$0xf]
    %v246 = vld [vmem:[#allocation7 + $0x3c] sm:$0xf]
    %v247 = vpack.c.bf16 %v230, %v230
    %v248 = vld [vmem:[%s4] sm:$0x1]
    %v250 = vlaneseq
    %v251 = vshrl.u32 %v250, 7
    %v252 = vsub.s32 0, %v251
    %v253 = vrot.slane %v248, %v252
    %v271 = vunpack.c.l.b16 %v231
    %v272 = vunpack.c.l.b16 %v232
    %v273 = vunpack.c.l.b16 %v233
    %v274 = vunpack.c.l.b16 %v234
    %v275 = vunpack.c.l.b16 %v235
    %v276 = vunpack.c.l.b16 %v236
    %v277 = vunpack.c.l.b16 %v237
    %v278 = vunpack.c.l.b16 %v238
    %v279 = vunpack.c.l.b16 %v239
    %v280 = vunpack.c.l.b16 %v240
    %v281 = vunpack.c.l.b16 %v241
    %v282 = vunpack.c.l.b16 %v242
    %v283 = vunpack.c.l.b16 %v243
    %v284 = vunpack.c.l.b16 %v244
    %v285 = vunpack.c.l.b16 %v245
    %v286 = vunpack.c.l.b16 %v246
    %v287 = vpack.c.b16 %v272, %v271
    %v288 = vpack.c.b16 %v274, %v273
    %v289 = vpack.c.b16 %v276, %v275
    %v290 = vpack.c.b16 %v278, %v277
    %v291 = vpack.c.b16 %v280, %v279
    %v292 = vpack.c.b16 %v282, %v281
    %v293 = vpack.c.b16 %v284, %v283
    %v294 = vpack.c.b16 %v286, %v285
    %303 = vmatprep.subr.bf16.mxu0 0
    %304 = vmatpush1.bf16.msra.mxu0 %v294
    %305 = vmatprep.subr.bf16.mxu0 0
    %306 = vmatpush1.bf16.msra.mxu0 %v293
    %307 = vmatprep.subr.bf16.mxu0 0
    %308 = vmatpush1.bf16.msra.mxu0 %v292
    %309 = vmatprep.subr.bf16.mxu0 0
    %310 = vmatpush1.bf16.msra.mxu0 %v291
    %311 = vmatprep.subr.bf16.mxu0 0
    %312 = vmatpush1.bf16.msra.mxu0 %v290
    %313 = vmatprep.subr.bf16.mxu0 0
    %314 = vmatpush1.bf16.msra.mxu0 %v289
    %315 = vmatprep.subr.bf16.mxu0 0
    %316 = vmatpush1.bf16.msra.mxu0 %v288
    %317 = vmatprep.subr.bf16.mxu0 0
    %318 = vmatpush1.bf16.msra.mxu0 %v287
    %319 = vmatprep.subr.bf16.mxu0 0
    %320 = vmatpush2.bf16.msra.mxu0 0
    %321 = vmatprep.subr.bf16.mxu0 0
    %322 = vmatpush2.bf16.msra.mxu0 0
    %323 = vmatprep.subr.bf16.mxu0 0
    %324 = vmatpush2.bf16.msra.mxu0 0
    %325 = vmatprep.subr.bf16.mxu0 0
    %326 = vmatpush2.bf16.msra.mxu0 0
    %327 = vmatprep.subr.bf16.mxu0 0
    %328 = vmatpush2.bf16.msra.mxu0 0
    %329 = vmatprep.subr.bf16.mxu0 0
    %330 = vmatpush2.bf16.msra.mxu0 0
    %331 = vmatprep.subr.bf16.mxu0 0
    %332 = vmatpush2.bf16.msra.mxu0 0
    %333 = vmatprep.subr.bf16.mxu0 0
    %334 = vmatpush2.bf16.msra.mxu0 0
    %335 = vmatprep.mubr.bf16.mxu0 0
    %336 = vmatmul.mubr.bf16.gmra.mxu0 %v247
    %v337 = vpop.f32.mrf.mxu0
    %v338 = vadd.f32 %v253, %v337
    %v339 = vpop.f32.mrf.mxu0
    %v340 = vpop.f32.mrf.mxu0
    %v341 = vpop.f32.mrf.mxu0
    %342 = vdwg.mxu0
    %v343 = vrot.slane %v338, 4
    %v344 = vadd.f32 %v338, %v343
    %v345 = vrot.slane %v344, 2
    %v346 = vadd.f32 %v344, %v345
    %v347 = vrot.slane %v346, 1
    %v348 = vadd.f32 %v346, %v347
    %v349 = vmul.f32 %v348, %v216
    %v350 = vsub.f32 %v338, %v349
    %v351 = vmul.f32 %v350, %v350
    %v352 = vrot.slane %v351, 4
    %v353 = vadd.f32 %v351, %v352
    %v354 = vrot.slane %v353, 2
    %v355 = vadd.f32 %v353, %v354
    %v356 = vrot.slane %v355, 1
    %v357 = vadd.f32 %v355, %v356
    %v358 = vmul.f32 %v357, %v216
    %v359 = vadd.f32 %v358, 1e-05
    %v360 = vrsqrt.pop %v359
    %v361 = vmul.f32 %v350, %v360
    %v362 = vmax.f32 %v361, 0.0
    %v363 = vld [vmem:[#allocation8] sm:$0xf]
    %v364 = vld [vmem:[#allocation8 + $0x4] sm:$0xf]
    %v365 = vld [vmem:[#allocation8 + $0x8] sm:$0xf]
    %v366 = vld [vmem:[#allocation8 + $0xc] sm:$0xf]
    %v367 = vld [vmem:[#allocation8 + $0x10] sm:$0xf]
    %v368 = vld [vmem:[#allocation8 + $0x14] sm:$0xf]
    %v369 = vld [vmem:[#allocation8 + $0x18] sm:$0xf]
    %v370 = vld [vmem:[#allocation8 + $0x1c] sm:$0xf]
    %v371 = vld [vmem:[#allocation8 + $0x20] sm:$0xf]
    %v372 = vld [vmem:[#allocation8 + $0x24] sm:$0xf]
    %v373 = vld [vmem:[#allocation8 + $0x28] sm:$0xf]
    %v374 = vld [vmem:[#allocation8 + $0x2c] sm:$0xf]
    %v375 = vld [vmem:[#allocation8 + $0x30] sm:$0xf]
    %v376 = vld [vmem:[#allocation8 + $0x34] sm:$0xf]
    %v377 = vld [vmem:[#allocation8 + $0x38] sm:$0xf]
    %v378 = vld [vmem:[#allocation8 + $0x3c] sm:$0xf]
    %v379 = vpack.c.bf16 %v362, %v362
    %v380 = vld [vmem:[%s6] sm:$0x1]
    %v382 = vlaneseq
    %v383 = vshrl.u32 %v382, 7
    %v384 = vsub.s32 0, %v383
    %v385 = vrot.slane %v380, %v384
    %v403 = vunpack.c.l.b16 %v363
    %v404 = vunpack.c.l.b16 %v364
    %v405 = vunpack.c.l.b16 %v365
    %v406 = vunpack.c.l.b16 %v366
    %v407 = vunpack.c.l.b16 %v367
    %v408 = vunpack.c.l.b16 %v368
    %v409 = vunpack.c.l.b16 %v369
    %v410 = vunpack.c.l.b16 %v370
    %v411 = vunpack.c.l.b16 %v371
    %v412 = vunpack.c.l.b16 %v372
    %v413 = vunpack.c.l.b16 %v373
    %v414 = vunpack.c.l.b16 %v374
    %v415 = vunpack.c.l.b16 %v375
    %v416 = vunpack.c.l.b16 %v376
    %v417 = vunpack.c.l.b16 %v377
    %v418 = vunpack.c.l.b16 %v378
    %v419 = vpack.c.b16 %v404, %v403
    %v420 = vpack.c.b16 %v406, %v405
    %v421 = vpack.c.b16 %v408, %v407
    %v422 = vpack.c.b16 %v410, %v409
    %v423 = vpack.c.b16 %v412, %v411
    %v424 = vpack.c.b16 %v414, %v413
    %v425 = vpack.c.b16 %v416, %v415
    %v426 = vpack.c.b16 %v418, %v417
    %435 = vmatprep.subr.bf16.mxu0 0
    %436 = vmatpush1.bf16.msra.mxu0 %v426
    %437 = vmatprep.subr.bf16.mxu0 0
    %438 = vmatpush1.bf16.msra.mxu0 %v425
    %439 = vmatprep.subr.bf16.mxu0 0
    %440 = vmatpush1.bf16.msra.mxu0 %v424
    %441 = vmatprep.subr.bf16.mxu0 0
    %442 = vmatpush1.bf16.msra.mxu0 %v423
    %443 = vmatprep.subr.bf16.mxu0 0
    %444 = vmatpush1.bf16.msra.mxu0 %v422
    %445 = vmatprep.subr.bf16.mxu0 0
    %446 = vmatpush1.bf16.msra.mxu0 %v421
    %447 = vmatprep.subr.bf16.mxu0 0
    %448 = vmatpush1.bf16.msra.mxu0 %v420
    %449 = vmatprep.subr.bf16.mxu0 0
    %450 = vmatpush1.bf16.msra.mxu0 %v419
    %451 = vmatprep.subr.bf16.mxu0 0
    %452 = vmatpush2.bf16.msra.mxu0 0
    %453 = vmatprep.subr.bf16.mxu0 0
    %454 = vmatpush2.bf16.msra.mxu0 0
    %455 = vmatprep.subr.bf16.mxu0 0
    %456 = vmatpush2.bf16.msra.mxu0 0
    %457 = vmatprep.subr.bf16.mxu0 0
    %458 = vmatpush2.bf16.msra.mxu0 0
    %459 = vmatprep.subr.bf16.mxu0 0
    %460 = vmatpush2.bf16.msra.mxu0 0
    %461 = vmatprep.subr.bf16.mxu0 0
    %462 = vmatpush2.bf16.msra.mxu0 0
    %463 = vmatprep.subr.bf16.mxu0 0
    %464 = vmatpush2.bf16.msra.mxu0 0
    %465 = vmatprep.subr.bf16.mxu0 0
    %466 = vmatpush2.bf16.msra.mxu0 0
    %467 = vmatprep.mubr.bf16.mxu0 0
    %468 = vmatmul.mubr.bf16.gmra.mxu0 %v379
    %v469 = vpop.f32.mrf.mxu0
    %v470 = vadd.f32 %v385, %v469
    %v471 = vpop.f32.mrf.mxu0
    %v472 = vpop.f32.mrf.mxu0
    %v473 = vpop.f32.mrf.mxu0
    %474 = vdwg.mxu0
    %v475 = vld [vmem:[#allocation10] sm:$0xff]
    %v476 = vld [vmem:[#allocation10 + $0x8] sm:$0xff]
    %v477 = vld [vmem:[#allocation10 + $0x10] sm:$0xff]
    %v478 = vld [vmem:[#allocation10 + $0x18] sm:$0xff]
    %v479 = vld [vmem:[#allocation10 + $0x20] sm:$0xff]
    %v480 = vld [vmem:[#allocation10 + $0x28] sm:$0xff]
    %v481 = vld [vmem:[#allocation10 + $0x30] sm:$0xff]
    %v482 = vld [vmem:[#allocation10 + $0x38] sm:$0xff]
    %v483 = vld [vmem:[#allocation10 + $0x40] sm:$0xff]
    %v484 = vld [vmem:[#allocation10 + $0x48] sm:$0xff]
    %v485 = vld [vmem:[#allocation10 + $0x50] sm:$0xff]
    %v486 = vld [vmem:[#allocation10 + $0x58] sm:$0xff]
    %v487 = vld [vmem:[#allocation10 + $0x60] sm:$0xff]
    %v488 = vld [vmem:[#allocation10 + $0x68] sm:$0xff]
    %v489 = vld [vmem:[#allocation10 + $0x70] sm:$0xff]
    %v490 = vld [vmem:[#allocation10 + $0x78] sm:$0xff]
    %v491 = vlaneseq
    %v492 = vshrl.u32 %v491, 7
    %v493 = vadd.s32 %v492, 8
    %v494 = vadd.s32 %v492, 16
    %v495 = vadd.s32 %v492, 24
    %v496 = vadd.s32 %v492, 32
    %v497 = vadd.s32 %v492, 40
    %v498 = vadd.s32 %v492, 48
    %v499 = vadd.s32 %v492, 56
    %v500 = vadd.s32 %v492, 64
    %v501 = vadd.s32 %v492, 72
    %v502 = vadd.s32 %v492, 80
    %v503 = vadd.s32 %v492, 88
    %v504 = vadd.s32 %v492, 96
    %v505 = vadd.s32 %v492, 104
    %v506 = vadd.s32 %v492, 112
    %v507 = vadd.s32 %v492, 120
    %v508 = vlaneseq
    %v509 = vand.u32 %v508, 127
    %vm510 = vcmp.eq.s32.totalorder %v492, %v509
    %vm511 = vcmp.eq.s32.totalorder %v493, %v509
    %vm512 = vcmp.eq.s32.totalorder %v494, %v509
    %vm513 = vcmp.eq.s32.totalorder %v495, %v509
    %vm514 = vcmp.eq.s32.totalorder %v496, %v509
    %vm515 = vcmp.eq.s32.totalorder %v497, %v509
    %vm516 = vcmp.eq.s32.totalorder %v498, %v509
    %vm517 = vcmp.eq.s32.totalorder %v499, %v509
    %vm518 = vcmp.eq.s32.totalorder %v500, %v509
    %vm519 = vcmp.eq.s32.totalorder %v501, %v509
    %vm520 = vcmp.eq.s32.totalorder %v502, %v509
    %vm521 = vcmp.eq.s32.totalorder %v503, %v509
    %vm522 = vcmp.eq.s32.totalorder %v504, %v509
    %vm523 = vcmp.eq.s32.totalorder %v505, %v509
    %vm524 = vcmp.eq.s32.totalorder %v506, %v509
    %vm525 = vcmp.eq.s32.totalorder %v507, %v509
    %v526 = vsel %vm510, 1, 0
    %v527 = vsel %vm511, 1, 0
    %v528 = vsel %vm512, 1, 0
    %v529 = vsel %vm513, 1, 0
    %v530 = vsel %vm514, 1, 0
    %v531 = vsel %vm515, 1, 0
    %v532 = vsel %vm516, 1, 0
    %v533 = vsel %vm517, 1, 0
    %v534 = vsel %vm518, 1, 0
    %v535 = vsel %vm519, 1, 0
    %v536 = vsel %vm520, 1, 0
    %v537 = vsel %vm521, 1, 0
    %v538 = vsel %vm522, 1, 0
    %v539 = vsel %vm523, 1, 0
    %v540 = vsel %vm524, 1, 0
    %v541 = vsel %vm525, 1, 0
    %v542 = vcvt.s32.f32 %v526
    %v543 = vcvt.s32.f32 %v527
    %v544 = vcvt.s32.f32 %v528
    %v545 = vcvt.s32.f32 %v529
    %v546 = vcvt.s32.f32 %v530
    %v547 = vcvt.s32.f32 %v531
    %v548 = vcvt.s32.f32 %v532
    %v549 = vcvt.s32.f32 %v533
    %v550 = vcvt.s32.f32 %v534
    %v551 = vcvt.s32.f32 %v535
    %v552 = vcvt.s32.f32 %v536
    %v553 = vcvt.s32.f32 %v537
    %v554 = vcvt.s32.f32 %v538
    %v555 = vcvt.s32.f32 %v539
    %v556 = vcvt.s32.f32 %v540
    %v557 = vcvt.s32.f32 %v541
    %v558 = vrot.slane %v470, 4
    %v559 = vadd.f32 %v470, %v558
    %v560 = vrot.slane %v559, 2
    %v561 = vadd.f32 %v559, %v560
    %v562 = vrot.slane %v561, 1
    %v563 = vadd.f32 %v561, %v562
    %v564 = vmul.f32 %v563, %v216
    %v565 = vsub.f32 %v470, %v564
    %566 = vxpose.xlu0.b32.start [1/16] %v565, 128
    %567 = vxpose.xlu0.b32.cont [2/16] 0.0, 128
    %568 = vxpose.xlu0.b32.cont [3/16] 0.0, 128
    %569 = vxpose.xlu0.b32.cont [4/16] 0.0, 128
    %570 = vxpose.xlu0.b32.cont [5/16] 0.0, 128
    %571 = vxpose.xlu0.b32.cont [6/16] 0.0, 128
    %572 = vxpose.xlu0.b32.cont [7/16] 0.0, 128
    %573 = vxpose.xlu0.b32.cont [8/16] 0.0, 128
    %574 = vxpose.xlu0.b32.cont [9/16] 0.0, 128
    %575 = vxpose.xlu0.b32.cont [10/16] 0.0, 128
    %576 = vxpose.xlu0.b32.cont [11/16] 0.0, 128
    %577 = vxpose.xlu0.b32.cont [12/16] 0.0, 128
    %578 = vxpose.xlu0.b32.cont [13/16] 0.0, 128
    %579 = vxpose.xlu0.b32.cont [14/16] 0.0, 128
    %580 = vxpose.xlu0.b32.cont [15/16] 0.0, 128
    %581 = vxpose.xlu0.b32.end [16/16] 0.0, 128
    %v582 = vpop.trf.xlu0
    %v583 = vpop.trf.xlu0
    %v584 = vpop.trf.xlu0
    %v585 = vpop.trf.xlu0
    %v586 = vpop.trf.xlu0
    %v587 = vpop.trf.xlu0
    %v588 = vpop.trf.xlu0
    %v589 = vpop.trf.xlu0
    %v590 = vpop.trf.xlu0
    %v591 = vpop.trf.xlu0
    %v592 = vpop.trf.xlu0
    %v593 = vpop.trf.xlu0
    %v594 = vpop.trf.xlu0
    %v595 = vpop.trf.xlu0
    %v596 = vpop.trf.xlu0
    %v597 = vpop.trf.xlu0
    %vm598 = vcmask 64512
    %v600 = vsel %vm598, %v582, 0
    %v603 = vsel %vm598, %v583, 0
    %v606 = vsel %vm598, %v584, 0
    %v609 = vsel %vm598, %v585, 0
    %v612 = vsel %vm598, %v586, 0
    %v615 = vsel %vm598, %v587, 0
    %v618 = vsel %vm598, %v588, 0
    %v621 = vsel %vm598, %v589, 0
    %v624 = vsel %vm598, %v590, 0
    %v627 = vsel %vm598, %v591, 0
    %v630 = vsel %vm598, %v592, 0
    %v633 = vsel %vm598, %v593, 0
    %v636 = vsel %vm598, %v594, 0
    %v639 = vsel %vm598, %v595, 0
    %v642 = vsel %vm598, %v596, 0
    %v645 = vsel %vm598, %v597, 0
    %647 = vmatprep.subr.mxu0 0.0
    %648 = vmatpush1.msra.mxu0 0.0
    %649 = vmatprep.subr.mxu0 0.0
    %650 = vmatpush1.msra.mxu0 0.0
    %651 = vmatprep.subr.mxu0 0.0
    %652 = vmatpush1.msra.mxu0 0.0
    %653 = vmatprep.subr.mxu0 0.0
    %654 = vmatpush1.msra.mxu0 0.0
    %655 = vmatprep.subr.mxu0 0.0
    %656 = vmatpush1.msra.mxu0 0.0
    %657 = vmatprep.subr.mxu0 0.0
    %658 = vmatpush1.msra.mxu0 0.0
    %659 = vmatprep.subr.mxu0 0.0
    %660 = vmatpush1.msra.mxu0 0.0
    %661 = vmatprep.subr.mxu0 0.0
    %662 = vmatpush1.msra.mxu0 0.0
    %663 = vmatprep.subr.mxu0 0.0
    %664 = vmatpush1.msra.mxu0 0.0
    %665 = vmatprep.subr.mxu0 0.0
    %666 = vmatpush1.msra.mxu0 0.0
    %667 = vmatprep.subr.mxu0 0.0
    %668 = vmatpush1.msra.mxu0 0.0
    %669 = vmatprep.subr.mxu0 0.0
    %670 = vmatpush1.msra.mxu0 0.0
    %671 = vmatprep.subr.mxu0 0.0
    %672 = vmatpush1.msra.mxu0 0.0
    %673 = vmatprep.subr.mxu0 0.0
    %674 = vmatpush1.msra.mxu0 0.0
    %675 = vmatprep.subr.mxu0 0.0
    %676 = vmatpush1.msra.mxu0 0.0
    %677 = vmatprep.subr.mxu0 0.0
    %678 = vmatpush1.msra.mxu0 %v565
    %679 = vmatprep.subr.mxu0 0.0
    %680 = vmatpush2.msra.mxu0 0.0
    %681 = vmatprep.subr.mxu0 0.0
    %682 = vmatpush2.msra.mxu0 0.0
    %683 = vmatprep.subr.mxu0 0.0
    %684 = vmatpush2.msra.mxu0 0.0
    %685 = vmatprep.subr.mxu0 0.0
    %686 = vmatpush2.msra.mxu0 0.0
    %687 = vmatprep.subr.mxu0 0.0
    %688 = vmatpush2.msra.mxu0 0.0
    %689 = vmatprep.subr.mxu0 0.0
    %690 = vmatpush2.msra.mxu0 0.0
    %691 = vmatprep.subr.mxu0 0.0
    %692 = vmatpush2.msra.mxu0 0.0
    %693 = vmatprep.subr.mxu0 0.0
    %694 = vmatpush2.msra.mxu0 0.0
    %695 = vmatprep.subr.mxu0 0.0
    %696 = vmatpush2.msra.mxu0 0.0
    %697 = vmatprep.subr.mxu0 0.0
    %698 = vmatpush2.msra.mxu0 0.0
    %699 = vmatprep.subr.mxu0 0.0
    %700 = vmatpush2.msra.mxu0 0.0
    %701 = vmatprep.subr.mxu0 0.0
    %702 = vmatpush2.msra.mxu0 0.0
    %703 = vmatprep.subr.mxu0 0.0
    %704 = vmatpush2.msra.mxu0 0.0
    %705 = vmatprep.subr.mxu0 0.0
    %706 = vmatpush2.msra.mxu0 0.0
    %707 = vmatprep.subr.mxu0 0.0
    %708 = vmatpush2.msra.mxu0 0.0
    %709 = vmatprep.subr.mxu0 0.0
    %710 = vmatpush2.msra.mxu0 0.0
    %711 = vmatprep.mubr.f32.mxu0 0.0
    %712 = vmatmul.mubr.f32.gmra.mxu0 %v600
    %v713 = vpop.f32.mrf.mxu0
    %v714 = vadd.f32 0.0, %v713
    %v715 = vpop.f32.mrf.mxu0
    %716 = vmatprep.mubr.f32.mxu0 0.0
    %717 = vmatmul.mubr.f32.gmra.mxu0 %v603
    %v718 = vpop.f32.mrf.mxu0
    %v719 = vadd.f32 0.0, %v718
    %v720 = vpop.f32.mrf.mxu0
    %721 = vmatprep.mubr.f32.mxu0 0.0
    %722 = vmatmul.mubr.f32.gmra.mxu0 %v606
    %v723 = vpop.f32.mrf.mxu0
    %v724 = vadd.f32 0.0, %v723
    %v725 = vpop.f32.mrf.mxu0
    %726 = vmatprep.mubr.f32.mxu0 0.0
    %727 = vmatmul.mubr.f32.gmra.mxu0 %v609
    %v728 = vpop.f32.mrf.mxu0
    %v729 = vadd.f32 0.0, %v728
    %v730 = vpop.f32.mrf.mxu0
    %731 = vmatprep.mubr.f32.mxu0 0.0
    %732 = vmatmul.mubr.f32.gmra.mxu0 %v612
    %v733 = vpop.f32.mrf.mxu0
    %v734 = vadd.f32 0.0, %v733
    %v735 = vpop.f32.mrf.mxu0
    %736 = vmatprep.mubr.f32.mxu0 0.0
    %737 = vmatmul.mubr.f32.gmra.mxu0 %v615
    %v738 = vpop.f32.mrf.mxu0
    %v739 = vadd.f32 0.0, %v738
    %v740 = vpop.f32.mrf.mxu0
    %741 = vmatprep.mubr.f32.mxu0 0.0
    %742 = vmatmul.mubr.f32.gmra.mxu0 %v618
    %v743 = vpop.f32.mrf.mxu0
    %v744 = vadd.f32 0.0, %v743
    %v745 = vpop.f32.mrf.mxu0
    %746 = vmatprep.mubr.f32.mxu0 0.0
    %747 = vmatmul.mubr.f32.gmra.mxu0 %v621
    %v748 = vpop.f32.mrf.mxu0
    %v749 = vadd.f32 0.0, %v748
    %v750 = vpop.f32.mrf.mxu0
    %751 = vmatprep.mubr.f32.mxu0 0.0
    %752 = vmatmul.mubr.f32.gmra.mxu0 %v624
    %v753 = vpop.f32.mrf.mxu0
    %v754 = vadd.f32 0.0, %v753
    %v755 = vpop.f32.mrf.mxu0
    %756 = vmatprep.mubr.f32.mxu0 0.0
    %757 = vmatmul.mubr.f32.gmra.mxu0 %v627
    %v758 = vpop.f32.mrf.mxu0
    %v759 = vadd.f32 0.0, %v758
    %v760 = vpop.f32.mrf.mxu0
    %761 = vmatprep.mubr.f32.mxu0 0.0
    %762 = vmatmul.mubr.f32.gmra.mxu0 %v630
    %v763 = vpop.f32.mrf.mxu0
    %v764 = vadd.f32 0.0, %v763
    %v765 = vpop.f32.mrf.mxu0
    %766 = vmatprep.mubr.f32.mxu0 0.0
    %767 = vmatmul.mubr.f32.gmra.mxu0 %v633
    %v768 = vpop.f32.mrf.mxu0
    %v769 = vadd.f32 0.0, %v768
    %v770 = vpop.f32.mrf.mxu0
    %771 = vmatprep.mubr.f32.mxu0 0.0
    %772 = vmatmul.mubr.f32.gmra.mxu0 %v636
    %v773 = vpop.f32.mrf.mxu0
    %v774 = vadd.f32 0.0, %v773
    %v775 = vpop.f32.mrf.mxu0
    %776 = vmatprep.mubr.f32.mxu0 0.0
    %777 = vmatmul.mubr.f32.gmra.mxu0 %v639
    %v778 = vpop.f32.mrf.mxu0
    %v779 = vadd.f32 0.0, %v778
    %v780 = vpop.f32.mrf.mxu0
    %781 = vmatprep.mubr.f32.mxu0 0.0
    %782 = vmatmul.mubr.f32.gmra.mxu0 %v642
    %v783 = vpop.f32.mrf.mxu0
    %v784 = vadd.f32 0.0, %v783
    %v785 = vpop.f32.mrf.mxu0
    %786 = vmatprep.mubr.f32.mxu0 0.0
    %787 = vmatmul.mubr.f32.gmra.mxu0 %v645
    %v788 = vpop.f32.mrf.mxu0
    %v789 = vadd.f32 0.0, %v788
    %v790 = vpop.f32.mrf.mxu0
    %791 = vdwg.mxu0
    %v792 = vmul.f32 %v714, 0.125
    %v793 = vmul.f32 %v719, 0.125
    %v794 = vmul.f32 %v724, 0.125
    %v795 = vmul.f32 %v729, 0.125
    %v796 = vmul.f32 %v734, 0.125
    %v797 = vmul.f32 %v739, 0.125
    %v798 = vmul.f32 %v744, 0.125
    %v799 = vmul.f32 %v749, 0.125
    %v800 = vmul.f32 %v754, 0.125
    %v801 = vmul.f32 %v759, 0.125
    %v802 = vmul.f32 %v764, 0.125
    %v803 = vmul.f32 %v769, 0.125
    %v804 = vmul.f32 %v774, 0.125
    %v805 = vmul.f32 %v779, 0.125
    %v806 = vmul.f32 %v784, 0.125
    %v807 = vmul.f32 %v789, 0.125
    %v808 = vmul.f32 %v475, %v792
    %v809 = vmul.f32 %v476, %v793
    %v810 = vmul.f32 %v477, %v794
    %v811 = vmul.f32 %v478, %v795
    %v812 = vmul.f32 %v479, %v796
    %v813 = vmul.f32 %v480, %v797
    %v814 = vmul.f32 %v481, %v798
    %v815 = vmul.f32 %v482, %v799
    %v816 = vmul.f32 %v483, %v800
    %v817 = vmul.f32 %v484, %v801
    %v818 = vmul.f32 %v485, %v802
    %v819 = vmul.f32 %v486, %v803
    %v820 = vmul.f32 %v487, %v804
    %v821 = vmul.f32 %v488, %v805
    %v822 = vmul.f32 %v489, %v806
    %v823 = vmul.f32 %v490, %v807
    %v824 = vmul.f32 %v542, 1e-05
    %v825 = vmul.f32 %v543, 1e-05
    %v826 = vmul.f32 %v544, 1e-05
    %v827 = vmul.f32 %v545, 1e-05
    %v828 = vmul.f32 %v546, 1e-05
    %v829 = vmul.f32 %v547, 1e-05
    %v830 = vmul.f32 %v548, 1e-05
    %v831 = vmul.f32 %v549, 1e-05
    %v832 = vmul.f32 %v550, 1e-05
    %v833 = vmul.f32 %v551, 1e-05
    %v834 = vmul.f32 %v552, 1e-05
    %v835 = vmul.f32 %v553, 1e-05
    %v836 = vmul.f32 %v554, 1e-05
    %v837 = vmul.f32 %v555, 1e-05
    %v838 = vmul.f32 %v556, 1e-05
    %v839 = vmul.f32 %v557, 1e-05
    %v840 = vadd.f32 %v808, %v824
    %v841 = vadd.f32 %v809, %v825
    %v842 = vadd.f32 %v810, %v826
    %v843 = vadd.f32 %v811, %v827
    %v844 = vadd.f32 %v812, %v828
    %v845 = vadd.f32 %v813, %v829
    %v846 = vadd.f32 %v814, %v830
    %v847 = vadd.f32 %v815, %v831
    %v848 = vadd.f32 %v816, %v832
    %v849 = vadd.f32 %v817, %v833
    %v850 = vadd.f32 %v818, %v834
    %v851 = vadd.f32 %v819, %v835
    %v852 = vadd.f32 %v820, %v836
    %v853 = vadd.f32 %v821, %v837
    %v854 = vadd.f32 %v822, %v838
    %v855 = vadd.f32 %v823, %v839
    %v856 = vmul.f32 %v840, %v542
    %v857 = vmul.f32 %v841, %v543
    %v858 = vmul.f32 %v842, %v544
    %v859 = vmul.f32 %v843, %v545
    %v860 = vmul.f32 %v844, %v546
    %v861 = vmul.f32 %v845, %v547
    %v862 = vmul.f32 %v846, %v548
    %v863 = vmul.f32 %v847, %v549
    %v864 = vmul.f32 %v848, %v550
    %v865 = vmul.f32 %v849, %v551
    %v866 = vmul.f32 %v850, %v552
    %v867 = vmul.f32 %v851, %v553
    %v868 = vmul.f32 %v852, %v554
    %v869 = vmul.f32 %v853, %v555
    %v870 = vmul.f32 %v854, %v556
    %v871 = vmul.f32 %v855, %v557
    %872 = vadd.xlane.f32.xlu0 %v856
    %v873 = vpop.xlane.xlu0 %872
    %874 = vadd.xlane.f32.xlu0 %v857
    %v875 = vpop.xlane.xlu0 %874
    %876 = vadd.xlane.f32.xlu0 %v858
    %v877 = vpop.xlane.xlu0 %876
    %878 = vadd.xlane.f32.xlu0 %v859
    %v879 = vpop.xlane.xlu0 %878
    %880 = vadd.xlane.f32.xlu0 %v860
    %v881 = vpop.xlane.xlu0 %880
    %882 = vadd.xlane.f32.xlu0 %v861
    %v883 = vpop.xlane.xlu0 %882
    %884 = vadd.xlane.f32.xlu0 %v862
    %v885 = vpop.xlane.xlu0 %884
    %886 = vadd.xlane.f32.xlu0 %v863
    %v887 = vpop.xlane.xlu0 %886
    %888 = vadd.xlane.f32.xlu0 %v864
    %v889 = vpop.xlane.xlu0 %888
    %890 = vadd.xlane.f32.xlu0 %v865
    %v891 = vpop.xlane.xlu0 %890
    %892 = vadd.xlane.f32.xlu0 %v866
    %v893 = vpop.xlane.xlu0 %892
    %894 = vadd.xlane.f32.xlu0 %v867
    %v895 = vpop.xlane.xlu0 %894
    %896 = vadd.xlane.f32.xlu0 %v868
    %v897 = vpop.xlane.xlu0 %896
    %898 = vadd.xlane.f32.xlu0 %v869
    %v899 = vpop.xlane.xlu0 %898
    %900 = vadd.xlane.f32.xlu0 %v870
    %v901 = vpop.xlane.xlu0 %900
    %902 = vadd.xlane.f32.xlu0 %v871
    %v903 = vpop.xlane.xlu0 %902
    %v904 = vmul.f32 %v475, %v873
    %v905 = vmul.f32 %v476, %v875
    %v906 = vmul.f32 %v477, %v877
    %v907 = vmul.f32 %v478, %v879
    %v908 = vmul.f32 %v479, %v881
    %v909 = vmul.f32 %v480, %v883
    %v910 = vmul.f32 %v481, %v885
    %v911 = vmul.f32 %v482, %v887
    %v912 = vmul.f32 %v483, %v889
    %v913 = vmul.f32 %v484, %v891
    %v914 = vmul.f32 %v485, %v893
    %v915 = vmul.f32 %v486, %v895
    %v916 = vmul.f32 %v487, %v897
    %v917 = vmul.f32 %v488, %v899
    %v918 = vmul.f32 %v489, %v901
    %v919 = vmul.f32 %v490, %v903
    %v920 = vadd.f32 %v904, %v905
    %v921 = vadd.f32 %v920, %v906
    %v922 = vadd.f32 %v921, %v907
    %v923 = vadd.f32 %v922, %v908
    %v924 = vadd.f32 %v923, %v909
    %v925 = vadd.f32 %v924, %v910
    %v926 = vadd.f32 %v925, %v911
    %v927 = vadd.f32 %v926, %v912
    %v928 = vadd.f32 %v927, %v913
    %v929 = vadd.f32 %v928, %v914
    %v930 = vadd.f32 %v929, %v915
    %v931 = vadd.f32 %v930, %v916
    %v932 = vadd.f32 %v931, %v917
    %v933 = vadd.f32 %v932, %v918
    %v934 = vadd.f32 %v933, %v919
    %v935 = vrot.slane %v934, 4
    %v936 = vadd.f32 %v934, %v935
    %v937 = vrot.slane %v936, 2
    %v938 = vadd.f32 %v936, %v937
    %v939 = vrot.slane %v938, 1
    %v940 = vadd.f32 %v938, %v939
    %v941 = vrcp.pop %v940
    %v942 = vmul.f32 1.0, %v941
    %v943 = vmul.f32 %v840, %v942
    %v944 = vmul.f32 %v841, %v942
    %v945 = vmul.f32 %v842, %v942
    %v946 = vmul.f32 %v843, %v942
    %v947 = vmul.f32 %v844, %v942
    %v948 = vmul.f32 %v845, %v942
    %v949 = vmul.f32 %v846, %v942
    %v950 = vmul.f32 %v847, %v942
    %v951 = vmul.f32 %v848, %v942
    %v952 = vmul.f32 %v849, %v942
    %v953 = vmul.f32 %v850, %v942
    %v954 = vmul.f32 %v851, %v942
    %v955 = vmul.f32 %v852, %v942
    %v956 = vmul.f32 %v853, %v942
    %v957 = vmul.f32 %v854, %v942
    %v958 = vmul.f32 %v855, %v942
    %959 = vmatprep.subr.mxu0 0.0
    %960 = vmatpush1.msra.mxu0 %v557
    %961 = vmatprep.subr.mxu0 0.0
    %962 = vmatpush1.msra.mxu0 %v556
    %963 = vmatprep.subr.mxu0 0.0
    %964 = vmatpush1.msra.mxu0 %v555
    %965 = vmatprep.subr.mxu0 0.0
    %966 = vmatpush1.msra.mxu0 %v554
    %967 = vmatprep.subr.mxu0 0.0
    %968 = vmatpush1.msra.mxu0 %v553
    %969 = vmatprep.subr.mxu0 0.0
    %970 = vmatpush1.msra.mxu0 %v552
    %971 = vmatprep.subr.mxu0 0.0
    %972 = vmatpush1.msra.mxu0 %v551
    %973 = vmatprep.subr.mxu0 0.0
    %974 = vmatpush1.msra.mxu0 %v550
    %975 = vmatprep.subr.mxu0 0.0
    %976 = vmatpush1.msra.mxu0 %v549
    %977 = vmatprep.subr.mxu0 0.0
    %978 = vmatpush1.msra.mxu0 %v548
    %979 = vmatprep.subr.mxu0 0.0
    %980 = vmatpush1.msra.mxu0 %v547
    %981 = vmatprep.subr.mxu0 0.0
    %982 = vmatpush1.msra.mxu0 %v546
    %983 = vmatprep.subr.mxu0 0.0
    %984 = vmatpush1.msra.mxu0 %v545
    %985 = vmatprep.subr.mxu0 0.0
    %986 = vmatpush1.msra.mxu0 %v544
    %987 = vmatprep.subr.mxu0 0.0
    %988 = vmatpush1.msra.mxu0 %v543
    %989 = vmatprep.subr.mxu0 0.0
    %990 = vmatpush1.msra.mxu0 %v542
    %991 = vmatprep.subr.mxu0 0.0
    %992 = vmatpush2.msra.mxu0 0.0
    %993 = vmatprep.subr.mxu0 0.0
    %994 = vmatpush2.msra.mxu0 0.0
    %995 = vmatprep.subr.mxu0 0.0
    %996 = vmatpush2.msra.mxu0 0.0
    %997 = vmatprep.subr.mxu0 0.0
    %998 = vmatpush2.msra.mxu0 0.0
    %999 = vmatprep.subr.mxu0 0.0
    %1000 = vmatpush2.msra.mxu0 0.0
    %1001 = vmatprep.subr.mxu0 0.0
    %1002 = vmatpush2.msra.mxu0 0.0
    %1003 = vmatprep.subr.mxu0 0.0
    %1004 = vmatpush2.msra.mxu0 0.0
    %1005 = vmatprep.subr.mxu0 0.0
    %1006 = vmatpush2.msra.mxu0 0.0
    %1007 = vmatprep.subr.mxu0 0.0
    %1008 = vmatpush2.msra.mxu0 0.0
    %1009 = vmatprep.subr.mxu0 0.0
    %1010 = vmatpush2.msra.mxu0 0.0
    %1011 = vmatprep.subr.mxu0 0.0
    %1012 = vmatpush2.msra.mxu0 0.0
    %1013 = vmatprep.subr.mxu0 0.0
    %1014 = vmatpush2.msra.mxu0 0.0
    %1015 = vmatprep.subr.mxu0 0.0
    %1016 = vmatpush2.msra.mxu0 0.0
    %1017 = vmatprep.subr.mxu0 0.0
    %1018 = vmatpush2.msra.mxu0 0.0
    %1019 = vmatprep.subr.mxu0 0.0
    %1020 = vmatpush2.msra.mxu0 0.0
    %1021 = vmatprep.subr.mxu0 0.0
    %1022 = vmatpush2.msra.mxu0 0.0
    %1023 = vmatprep.mubr.f32.mxu0 0.0
    %1024 = vmatmul.mubr.f32.gmra.mxu0 %v542
    %v1025 = vpop.f32.mrf.mxu0
    %v1026 = vadd.f32 0.0, %v1025
    %v1027 = vpop.f32.mrf.mxu0
    %1028 = vmatprep.mubr.f32.mxu0 0.0
    %1029 = vmatmul.mubr.f32.gmra.mxu0 %v543
    %v1030 = vpop.f32.mrf.mxu0
    %v1031 = vadd.f32 0.0, %v1030
    %v1032 = vpop.f32.mrf.mxu0
    %1033 = vmatprep.mubr.f32.mxu0 0.0
    %1034 = vmatmul.mubr.f32.gmra.mxu0 %v544
    %v1035 = vpop.f32.mrf.mxu0
    %v1036 = vadd.f32 0.0, %v1035
    %v1037 = vpop.f32.mrf.mxu0
    %1038 = vmatprep.mubr.f32.mxu0 0.0
    %1039 = vmatmul.mubr.f32.gmra.mxu0 %v545
    %v1040 = vpop.f32.mrf.mxu0
    %v1041 = vadd.f32 0.0, %v1040
    %v1042 = vpop.f32.mrf.mxu0
    %1043 = vmatprep.mubr.f32.mxu0 0.0
    %1044 = vmatmul.mubr.f32.gmra.mxu0 %v546
    %v1045 = vpop.f32.mrf.mxu0
    %v1046 = vadd.f32 0.0, %v1045
    %v1047 = vpop.f32.mrf.mxu0
    %1048 = vmatprep.mubr.f32.mxu0 0.0
    %1049 = vmatmul.mubr.f32.gmra.mxu0 %v547
    %v1050 = vpop.f32.mrf.mxu0
    %v1051 = vadd.f32 0.0, %v1050
    %v1052 = vpop.f32.mrf.mxu0
    %1053 = vmatprep.mubr.f32.mxu0 0.0
    %1054 = vmatmul.mubr.f32.gmra.mxu0 %v548
    %v1055 = vpop.f32.mrf.mxu0
    %v1056 = vadd.f32 0.0, %v1055
    %v1057 = vpop.f32.mrf.mxu0
    %1058 = vmatprep.mubr.f32.mxu0 0.0
    %1059 = vmatmul.mubr.f32.gmra.mxu0 %v549
    %v1060 = vpop.f32.mrf.mxu0
    %v1061 = vadd.f32 0.0, %v1060
    %v1062 = vpop.f32.mrf.mxu0
    %1063 = vmatprep.mubr.f32.mxu0 0.0
    %1064 = vmatmul.mubr.f32.gmra.mxu0 %v550
    %v1065 = vpop.f32.mrf.mxu0
    %v1066 = vadd.f32 0.0, %v1065
    %v1067 = vpop.f32.mrf.mxu0
    %1068 = vmatprep.mubr.f32.mxu0 0.0
    %1069 = vmatmul.mubr.f32.gmra.mxu0 %v551
    %v1070 = vpop.f32.mrf.mxu0
    %v1071 = vadd.f32 0.0, %v1070
    %v1072 = vpop.f32.mrf.mxu0
    %1073 = vmatprep.mubr.f32.mxu0 0.0
    %1074 = vmatmul.mubr.f32.gmra.mxu0 %v552
    %v1075 = vpop.f32.mrf.mxu0
    %v1076 = vadd.f32 0.0, %v1075
    %v1077 = vpop.f32.mrf.mxu0
    %1078 = vmatprep.mubr.f32.mxu0 0.0
    %1079 = vmatmul.mubr.f32.gmra.mxu0 %v553
    %v1080 = vpop.f32.mrf.mxu0
    %v1081 = vadd.f32 0.0, %v1080
    %v1082 = vpop.f32.mrf.mxu0
    %1083 = vmatprep.mubr.f32.mxu0 0.0
    %1084 = vmatmul.mubr.f32.gmra.mxu0 %v554
    %v1085 = vpop.f32.mrf.mxu0
    %v1086 = vadd.f32 0.0, %v1085
    %v1087 = vpop.f32.mrf.mxu0
    %1088 = vmatprep.mubr.f32.mxu0 0.0
    %1089 = vmatmul.mubr.f32.gmra.mxu0 %v555
    %v1090 = vpop.f32.mrf.mxu0
    %v1091 = vadd.f32 0.0, %v1090
    %v1092 = vpop.f32.mrf.mxu0
    %1093 = vmatprep.mubr.f32.mxu0 0.0
    %1094 = vmatmul.mubr.f32.gmra.mxu0 %v556
    %v1095 = vpop.f32.mrf.mxu0
    %v1096 = vadd.f32 0.0, %v1095
    %v1097 = vpop.f32.mrf.mxu0
    %1098 = vmatprep.mubr.f32.mxu0 0.0
    %1099 = vmatmul.mubr.f32.gmra.mxu0 %v557
    %v1100 = vpop.f32.mrf.mxu0
    %v1101 = vadd.f32 0.0, %v1100
    %v1102 = vpop.f32.mrf.mxu0
    %1103 = vdwg.mxu0
    %1104 = vmatprep.subr.mxu0 0.0
    %1105 = vmatpush1.msra.mxu0 %v557
    %1106 = vmatprep.subr.mxu0 0.0
    %1107 = vmatpush1.msra.mxu0 %v556
    %1108 = vmatprep.subr.mxu0 0.0
    %1109 = vmatpush1.msra.mxu0 %v555
    %1110 = vmatprep.subr.mxu0 0.0
    %1111 = vmatpush1.msra.mxu0 %v554
    %1112 = vmatprep.subr.mxu0 0.0
    %1113 = vmatpush1.msra.mxu0 %v553
    %1114 = vmatprep.subr.mxu0 0.0
    %1115 = vmatpush1.msra.mxu0 %v552
    %1116 = vmatprep.subr.mxu0 0.0
    %1117 = vmatpush1.msra.mxu0 %v551
    %1118 = vmatprep.subr.mxu0 0.0
    %1119 = vmatpush1.msra.mxu0 %v550
    %1120 = vmatprep.subr.mxu0 0.0
    %1121 = vmatpush1.msra.mxu0 %v549
    %1122 = vmatprep.subr.mxu0 0.0
    %1123 = vmatpush1.msra.mxu0 %v548
    %1124 = vmatprep.subr.mxu0 0.0
    %1125 = vmatpush1.msra.mxu0 %v547
    %1126 = vmatprep.subr.mxu0 0.0
    %1127 = vmatpush1.msra.mxu0 %v546
    %1128 = vmatprep.subr.mxu0 0.0
    %1129 = vmatpush1.msra.mxu0 %v545
    %1130 = vmatprep.subr.mxu0 0.0
    %1131 = vmatpush1.msra.mxu0 %v544
    %1132 = vmatprep.subr.mxu0 0.0
    %1133 = vmatpush1.msra.mxu0 %v543
    %1134 = vmatprep.subr.mxu0 0.0
    %1135 = vmatpush1.msra.mxu0 %v542
    %1136 = vmatprep.subr.mxu0 0.0
    %1137 = vmatpush2.msra.mxu0 0.0
    %1138 = vmatprep.subr.mxu0 0.0
    %1139 = vmatpush2.msra.mxu0 0.0
    %1140 = vmatprep.subr.mxu0 0.0
    %1141 = vmatpush2.msra.mxu0 0.0
    %1142 = vmatprep.subr.mxu0 0.0
    %1143 = vmatpush2.msra.mxu0 0.0
    %1144 = vmatprep.subr.mxu0 0.0
    %1145 = vmatpush2.msra.mxu0 0.0
    %1146 = vmatprep.subr.mxu0 0.0
    %1147 = vmatpush2.msra.mxu0 0.0
    %1148 = vmatprep.subr.mxu0 0.0
    %1149 = vmatpush2.msra.mxu0 0.0
    %1150 = vmatprep.subr.mxu0 0.0
    %1151 = vmatpush2.msra.mxu0 0.0
    %1152 = vmatprep.subr.mxu0 0.0
    %1153 = vmatpush2.msra.mxu0 0.0
    %1154 = vmatprep.subr.mxu0 0.0
    %1155 = vmatpush2.msra.mxu0 0.0
    %1156 = vmatprep.subr.mxu0 0.0
    %1157 = vmatpush2.msra.mxu0 0.0
    %1158 = vmatprep.subr.mxu0 0.0
    %1159 = vmatpush2.msra.mxu0 0.0
    %1160 = vmatprep.subr.mxu0 0.0
    %1161 = vmatpush2.msra.mxu0 0.0
    %1162 = vmatprep.subr.mxu0 0.0
    %1163 = vmatpush2.msra.mxu0 0.0
    %1164 = vmatprep.subr.mxu0 0.0
    %1165 = vmatpush2.msra.mxu0 0.0
    %1166 = vmatprep.subr.mxu0 0.0
    %1167 = vmatpush2.msra.mxu0 0.0
    %1168 = vmatprep.mubr.f32.mxu0 0.0
    %1169 = vmatmul.mubr.f32.gmra.mxu0 %v1026
    %v1170 = vpop.f32.mrf.mxu0
    %v1171 = vadd.f32 0.0, %v1170
    %v1172 = vpop.f32.mrf.mxu0
    %1173 = vmatprep.mubr.f32.mxu0 0.0
    %1174 = vmatmul.mubr.f32.gmra.mxu0 %v1031
    %v1175 = vpop.f32.mrf.mxu0
    %v1176 = vadd.f32 0.0, %v1175
    %v1177 = vpop.f32.mrf.mxu0
    %1178 = vmatprep.mubr.f32.mxu0 0.0
    %1179 = vmatmul.mubr.f32.gmra.mxu0 %v1036
    %v1180 = vpop.f32.mrf.mxu0
    %v1181 = vadd.f32 0.0, %v1180
    %v1182 = vpop.f32.mrf.mxu0
    %1183 = vmatprep.mubr.f32.mxu0 0.0
    %1184 = vmatmul.mubr.f32.gmra.mxu0 %v1041
    %v1185 = vpop.f32.mrf.mxu0
    %v1186 = vadd.f32 0.0, %v1185
    %v1187 = vpop.f32.mrf.mxu0
    %1188 = vmatprep.mubr.f32.mxu0 0.0
    %1189 = vmatmul.mubr.f32.gmra.mxu0 %v1046
    %v1190 = vpop.f32.mrf.mxu0
    %v1191 = vadd.f32 0.0, %v1190
    %v1192 = vpop.f32.mrf.mxu0
    %1193 = vmatprep.mubr.f32.mxu0 0.0
    %1194 = vmatmul.mubr.f32.gmra.mxu0 %v1051
    %v1195 = vpop.f32.mrf.mxu0
    %v1196 = vadd.f32 0.0, %v1195
    %v1197 = vpop.f32.mrf.mxu0
    %1198 = vmatprep.mubr.f32.mxu0 0.0
    %1199 = vmatmul.mubr.f32.gmra.mxu0 %v1056
    %v1200 = vpop.f32.mrf.mxu0
    %v1201 = vadd.f32 0.0, %v1200
    %v1202 = vpop.f32.mrf.mxu0
    %1203 = vmatprep.mubr.f32.mxu0 0.0
    %1204 = vmatmul.mubr.f32.gmra.mxu0 %v1061
    %v1205 = vpop.f32.mrf.mxu0
    %v1206 = vadd.f32 0.0, %v1205
    %v1207 = vpop.f32.mrf.mxu0
    %1208 = vmatprep.mubr.f32.mxu0 0.0
    %1209 = vmatmul.mubr.f32.gmra.mxu0 %v1066
    %v1210 = vpop.f32.mrf.mxu0
    %v1211 = vadd.f32 0.0, %v1210
    %v1212 = vpop.f32.mrf.mxu0
    %1213 = vmatprep.mubr.f32.mxu0 0.0
    %1214 = vmatmul.mubr.f32.gmra.mxu0 %v1071
    %v1215 = vpop.f32.mrf.mxu0
    %v1216 = vadd.f32 0.0, %v1215
    %v1217 = vpop.f32.mrf.mxu0
    %1218 = vmatprep.mubr.f32.mxu0 0.0
    %1219 = vmatmul.mubr.f32.gmra.mxu0 %v1076
    %v1220 = vpop.f32.mrf.mxu0
    %v1221 = vadd.f32 0.0, %v1220
    %v1222 = vpop.f32.mrf.mxu0
    %1223 = vmatprep.mubr.f32.mxu0 0.0
    %1224 = vmatmul.mubr.f32.gmra.mxu0 %v1081
    %v1225 = vpop.f32.mrf.mxu0
    %v1226 = vadd.f32 0.0, %v1225
    %v1227 = vpop.f32.mrf.mxu0
    %1228 = vmatprep.mubr.f32.mxu0 0.0
    %1229 = vmatmul.mubr.f32.gmra.mxu0 %v1086
    %v1230 = vpop.f32.mrf.mxu0
    %v1231 = vadd.f32 0.0, %v1230
    %v1232 = vpop.f32.mrf.mxu0
    %1233 = vmatprep.mubr.f32.mxu0 0.0
    %1234 = vmatmul.mubr.f32.gmra.mxu0 %v1091
    %v1235 = vpop.f32.mrf.mxu0
    %v1236 = vadd.f32 0.0, %v1235
    %v1237 = vpop.f32.mrf.mxu0
    %1238 = vmatprep.mubr.f32.mxu0 0.0
    %1239 = vmatmul.mubr.f32.gmra.mxu0 %v1096
    %v1240 = vpop.f32.mrf.mxu0
    %v1241 = vadd.f32 0.0, %v1240
    %v1242 = vpop.f32.mrf.mxu0
    %1243 = vmatprep.mubr.f32.mxu0 0.0
    %1244 = vmatmul.mubr.f32.gmra.mxu0 %v1101
    %v1245 = vpop.f32.mrf.mxu0
    %v1246 = vadd.f32 0.0, %v1245
    %v1247 = vpop.f32.mrf.mxu0
    %1248 = vdwg.mxu0
    %v1249 = vmul.f32 %v542, 1.5
    %v1250 = vmul.f32 %v543, 1.5
    %v1251 = vmul.f32 %v544, 1.5
    %v1252 = vmul.f32 %v545, 1.5
    %v1253 = vmul.f32 %v546, 1.5
    %v1254 = vmul.f32 %v547, 1.5
    %v1255 = vmul.f32 %v548, 1.5
    %v1256 = vmul.f32 %v549, 1.5
    %v1257 = vmul.f32 %v550, 1.5
    %v1258 = vmul.f32 %v551, 1.5
    %v1259 = vmul.f32 %v552, 1.5
    %v1260 = vmul.f32 %v553, 1.5
    %v1261 = vmul.f32 %v554, 1.5
    %v1262 = vmul.f32 %v555, 1.5
    %v1263 = vmul.f32 %v556, 1.5
    %v1264 = vmul.f32 %v557, 1.5
    %1265 = vmatprep.subr.mxu0 0.0
    %1266 = vmatpush1.msra.mxu0 %v958
    %1267 = vmatprep.subr.mxu0 0.0
    %1268 = vmatpush1.msra.mxu0 %v957
    %1269 = vmatprep.subr.mxu0 0.0
    %1270 = vmatpush1.msra.mxu0 %v956
    %1271 = vmatprep.subr.mxu0 0.0
    %1272 = vmatpush1.msra.mxu0 %v955
    %1273 = vmatprep.subr.mxu0 0.0
    %1274 = vmatpush1.msra.mxu0 %v954
    %1275 = vmatprep.subr.mxu0 0.0
    %1276 = vmatpush1.msra.mxu0 %v953
    %1277 = vmatprep.subr.mxu0 0.0
    %1278 = vmatpush1.msra.mxu0 %v952
    %1279 = vmatprep.subr.mxu0 0.0
    %1280 = vmatpush1.msra.mxu0 %v951
    %1281 = vmatprep.subr.mxu0 0.0
    %1282 = vmatpush1.msra.mxu0 %v950
    %1283 = vmatprep.subr.mxu0 0.0
    %1284 = vmatpush1.msra.mxu0 %v949
    %1285 = vmatprep.subr.mxu0 0.0
    %1286 = vmatpush1.msra.mxu0 %v948
    %1287 = vmatprep.subr.mxu0 0.0
    %1288 = vmatpush1.msra.mxu0 %v947
    %1289 = vmatprep.subr.mxu0 0.0
    %1290 = vmatpush1.msra.mxu0 %v946
    %1291 = vmatprep.subr.mxu0 0.0
    %1292 = vmatpush1.msra.mxu0 %v945
    %1293 = vmatprep.subr.mxu0 0.0
    %1294 = vmatpush1.msra.mxu0 %v944
    %1295 = vmatprep.subr.mxu0 0.0
    %1296 = vmatpush1.msra.mxu0 %v943
    %1297 = vmatprep.subr.mxu0 0.0
    %1298 = vmatpush2.msra.mxu0 0.0
    %1299 = vmatprep.subr.mxu0 0.0
    %1300 = vmatpush2.msra.mxu0 0.0
    %1301 = vmatprep.subr.mxu0 0.0
    %1302 = vmatpush2.msra.mxu0 0.0
    %1303 = vmatprep.subr.mxu0 0.0
    %1304 = vmatpush2.msra.mxu0 0.0
    %1305 = vmatprep.subr.mxu0 0.0
    %1306 = vmatpush2.msra.mxu0 0.0
    %1307 = vmatprep.subr.mxu0 0.0
    %1308 = vmatpush2.msra.mxu0 0.0
    %1309 = vmatprep.subr.mxu0 0.0
    %1310 = vmatpush2.msra.mxu0 0.0
    %1311 = vmatprep.subr.mxu0 0.0
    %1312 = vmatpush2.msra.mxu0 0.0
    %1313 = vmatprep.subr.mxu0 0.0
    %1314 = vmatpush2.msra.mxu0 0.0
    %1315 = vmatprep.subr.mxu0 0.0
    %1316 = vmatpush2.msra.mxu0 0.0
    %1317 = vmatprep.subr.mxu0 0.0
    %1318 = vmatpush2.msra.mxu0 0.0
    %1319 = vmatprep.subr.mxu0 0.0
    %1320 = vmatpush2.msra.mxu0 0.0
    %1321 = vmatprep.subr.mxu0 0.0
    %1322 = vmatpush2.msra.mxu0 0.0
    %1323 = vmatprep.subr.mxu0 0.0
    %1324 = vmatpush2.msra.mxu0 0.0
    %1325 = vmatprep.subr.mxu0 0.0
    %1326 = vmatpush2.msra.mxu0 0.0
    %1327 = vmatprep.subr.mxu0 0.0
    %1328 = vmatpush2.msra.mxu0 0.0
    %1329 = vmatprep.mubr.f32.mxu0 0.0
    %1330 = vmatmul.mubr.f32.gmra.mxu0 %v1171
    %v1331 = vpop.f32.mrf.mxu0
    %v1332 = vadd.f32 0.0, %v1331
    %v1333 = vpop.f32.mrf.mxu0
    %1334 = vmatprep.mubr.f32.mxu0 0.0
    %1335 = vmatmul.mubr.f32.gmra.mxu0 %v1176
    %v1336 = vpop.f32.mrf.mxu0
    %v1337 = vadd.f32 0.0, %v1336
    %v1338 = vpop.f32.mrf.mxu0
    %1339 = vmatprep.mubr.f32.mxu0 0.0
    %1340 = vmatmul.mubr.f32.gmra.mxu0 %v1181
    %v1341 = vpop.f32.mrf.mxu0
    %v1342 = vadd.f32 0.0, %v1341
    %v1343 = vpop.f32.mrf.mxu0
    %1344 = vmatprep.mubr.f32.mxu0 0.0
    %1345 = vmatmul.mubr.f32.gmra.mxu0 %v1186
    %v1346 = vpop.f32.mrf.mxu0
    %v1347 = vadd.f32 0.0, %v1346
    %v1348 = vpop.f32.mrf.mxu0
    %1349 = vmatprep.mubr.f32.mxu0 0.0
    %1350 = vmatmul.mubr.f32.gmra.mxu0 %v1191
    %v1351 = vpop.f32.mrf.mxu0
    %v1352 = vadd.f32 0.0, %v1351
    %v1353 = vpop.f32.mrf.mxu0
    %1354 = vmatprep.mubr.f32.mxu0 0.0
    %1355 = vmatmul.mubr.f32.gmra.mxu0 %v1196
    %v1356 = vpop.f32.mrf.mxu0
    %v1357 = vadd.f32 0.0, %v1356
    %v1358 = vpop.f32.mrf.mxu0
    %1359 = vmatprep.mubr.f32.mxu0 0.0
    %1360 = vmatmul.mubr.f32.gmra.mxu0 %v1201
    %v1361 = vpop.f32.mrf.mxu0
    %v1362 = vadd.f32 0.0, %v1361
    %v1363 = vpop.f32.mrf.mxu0
    %1364 = vmatprep.mubr.f32.mxu0 0.0
    %1365 = vmatmul.mubr.f32.gmra.mxu0 %v1206
    %v1366 = vpop.f32.mrf.mxu0
    %v1367 = vadd.f32 0.0, %v1366
    %v1368 = vpop.f32.mrf.mxu0
    %1369 = vmatprep.mubr.f32.mxu0 0.0
    %1370 = vmatmul.mubr.f32.gmra.mxu0 %v1211
    %v1371 = vpop.f32.mrf.mxu0
    %v1372 = vadd.f32 0.0, %v1371
    %v1373 = vpop.f32.mrf.mxu0
    %1374 = vmatprep.mubr.f32.mxu0 0.0
    %1375 = vmatmul.mubr.f32.gmra.mxu0 %v1216
    %v1376 = vpop.f32.mrf.mxu0
    %v1377 = vadd.f32 0.0, %v1376
    %v1378 = vpop.f32.mrf.mxu0
    %1379 = vmatprep.mubr.f32.mxu0 0.0
    %1380 = vmatmul.mubr.f32.gmra.mxu0 %v1221
    %v1381 = vpop.f32.mrf.mxu0
    %v1382 = vadd.f32 0.0, %v1381
    %v1383 = vpop.f32.mrf.mxu0
    %1384 = vmatprep.mubr.f32.mxu0 0.0
    %1385 = vmatmul.mubr.f32.gmra.mxu0 %v1226
    %v1386 = vpop.f32.mrf.mxu0
    %v1387 = vadd.f32 0.0, %v1386
    %v1388 = vpop.f32.mrf.mxu0
    %1389 = vmatprep.mubr.f32.mxu0 0.0
    %1390 = vmatmul.mubr.f32.gmra.mxu0 %v1231
    %v1391 = vpop.f32.mrf.mxu0
    %v1392 = vadd.f32 0.0, %v1391
    %v1393 = vpop.f32.mrf.mxu0
    %1394 = vmatprep.mubr.f32.mxu0 0.0
    %1395 = vmatmul.mubr.f32.gmra.mxu0 %v1236
    %v1396 = vpop.f32.mrf.mxu0
    %v1397 = vadd.f32 0.0, %v1396
    %v1398 = vpop.f32.mrf.mxu0
    %1399 = vmatprep.mubr.f32.mxu0 0.0
    %1400 = vmatmul.mubr.f32.gmra.mxu0 %v1241
    %v1401 = vpop.f32.mrf.mxu0
    %v1402 = vadd.f32 0.0, %v1401
    %v1403 = vpop.f32.mrf.mxu0
    %1404 = vmatprep.mubr.f32.mxu0 0.0
    %1405 = vmatmul.mubr.f32.gmra.mxu0 %v1246
    %v1406 = vpop.f32.mrf.mxu0
    %v1407 = vadd.f32 0.0, %v1406
    %v1408 = vpop.f32.mrf.mxu0
    %1409 = vdwg.mxu0
    %v1410 = vmul.f32 %v1332, 0.5
    %v1411 = vmul.f32 %v1337, 0.5
    %v1412 = vmul.f32 %v1342, 0.5
    %v1413 = vmul.f32 %v1347, 0.5
    %v1414 = vmul.f32 %v1352, 0.5
    %v1415 = vmul.f32 %v1357, 0.5
    %v1416 = vmul.f32 %v1362, 0.5
    %v1417 = vmul.f32 %v1367, 0.5
    %v1418 = vmul.f32 %v1372, 0.5
    %v1419 = vmul.f32 %v1377, 0.5
    %v1420 = vmul.f32 %v1382, 0.5
    %v1421 = vmul.f32 %v1387, 0.5
    %v1422 = vmul.f32 %v1392, 0.5
    %v1423 = vmul.f32 %v1397, 0.5
    %v1424 = vmul.f32 %v1402, 0.5
    %v1425 = vmul.f32 %v1407, 0.5
    %v1426 = vsub.f32 %v1249, %v1410
    %v1427 = vsub.f32 %v1250, %v1411
    %v1428 = vsub.f32 %v1251, %v1412
    %v1429 = vsub.f32 %v1252, %v1413
    %v1430 = vsub.f32 %v1253, %v1414
    %v1431 = vsub.f32 %v1254, %v1415
    %v1432 = vsub.f32 %v1255, %v1416
    %v1433 = vsub.f32 %v1256, %v1417
    %v1434 = vsub.f32 %v1257, %v1418
    %v1435 = vsub.f32 %v1258, %v1419
    %v1436 = vsub.f32 %v1259, %v1420
    %v1437 = vsub.f32 %v1260, %v1421
    %v1438 = vsub.f32 %v1261, %v1422
    %v1439 = vsub.f32 %v1262, %v1423
    %v1440 = vsub.f32 %v1263, %v1424
    %v1441 = vsub.f32 %v1264, %v1425
    %1442 = vmatprep.subr.mxu0 0.0
    %1443 = vmatpush1.msra.mxu0 %v1441
    %1444 = vmatprep.subr.mxu0 0.0
    %1445 = vmatpush1.msra.mxu0 %v1440
    %1446 = vmatprep.subr.mxu0 0.0
    %1447 = vmatpush1.msra.mxu0 %v1439
    %1448 = vmatprep.subr.mxu0 0.0
    %1449 = vmatpush1.msra.mxu0 %v1438
    %1450 = vmatprep.subr.mxu0 0.0
    %1451 = vmatpush1.msra.mxu0 %v1437
    %1452 = vmatprep.subr.mxu0 0.0
    %1453 = vmatpush1.msra.mxu0 %v1436
    %1454 = vmatprep.subr.mxu0 0.0
    %1455 = vmatpush1.msra.mxu0 %v1435
    %1456 = vmatprep.subr.mxu0 0.0
    %1457 = vmatpush1.msra.mxu0 %v1434
    %1458 = vmatprep.subr.mxu0 0.0
    %1459 = vmatpush1.msra.mxu0 %v1433
    %1460 = vmatprep.subr.mxu0 0.0
    %1461 = vmatpush1.msra.mxu0 %v1432
    %1462 = vmatprep.subr.mxu0 0.0
    %1463 = vmatpush1.msra.mxu0 %v1431
    %1464 = vmatprep.subr.mxu0 0.0
    %1465 = vmatpush1.msra.mxu0 %v1430
    %1466 = vmatprep.subr.mxu0 0.0
    %1467 = vmatpush1.msra.mxu0 %v1429
    %1468 = vmatprep.subr.mxu0 0.0
    %1469 = vmatpush1.msra.mxu0 %v1428
    %1470 = vmatprep.subr.mxu0 0.0
    %1471 = vmatpush1.msra.mxu0 %v1427
    %1472 = vmatprep.subr.mxu0 0.0
    %1473 = vmatpush1.msra.mxu0 %v1426
    %1474 = vmatprep.subr.mxu0 0.0
    %1475 = vmatpush2.msra.mxu0 0.0
    %1476 = vmatprep.subr.mxu0 0.0
    %1477 = vmatpush2.msra.mxu0 0.0
    %1478 = vmatprep.subr.mxu0 0.0
    %1479 = vmatpush2.msra.mxu0 0.0
    %1480 = vmatprep.subr.mxu0 0.0
    %1481 = vmatpush2.msra.mxu0 0.0
    %1482 = vmatprep.subr.mxu0 0.0
    %1483 = vmatpush2.msra.mxu0 0.0
    %1484 = vmatprep.subr.mxu0 0.0
    %1485 = vmatpush2.msra.mxu0 0.0
    %1486 = vmatprep.subr.mxu0 0.0
    %1487 = vmatpush2.msra.mxu0 0.0
    %1488 = vmatprep.subr.mxu0 0.0
    %1489 = vmatpush2.msra.mxu0 0.0
    %1490 = vmatprep.subr.mxu0 0.0
    %1491 = vmatpush2.msra.mxu0 0.0
    %1492 = vmatprep.subr.mxu0 0.0
    %1493 = vmatpush2.msra.mxu0 0.0
    %1494 = vmatprep.subr.mxu0 0.0
    %1495 = vmatpush2.msra.mxu0 0.0
    %1496 = vmatprep.subr.mxu0 0.0
    %1497 = vmatpush2.msra.mxu0 0.0
    %1498 = vmatprep.subr.mxu0 0.0
    %1499 = vmatpush2.msra.mxu0 0.0
    %1500 = vmatprep.subr.mxu0 0.0
    %1501 = vmatpush2.msra.mxu0 0.0
    %1502 = vmatprep.subr.mxu0 0.0
    %1503 = vmatpush2.msra.mxu0 0.0
    %1504 = vmatprep.subr.mxu0 0.0
    %1505 = vmatpush2.msra.mxu0 0.0
    %1506 = vmatprep.mubr.f32.mxu0 0.0
    %1507 = vmatmul.mubr.f32.gmra.mxu0 %v1426
    %v1508 = vpop.f32.mrf.mxu0
    %v1509 = vadd.f32 0.0, %v1508
    %v1510 = vpop.f32.mrf.mxu0
    %1511 = vmatprep.mubr.f32.mxu0 0.0
    %1512 = vmatmul.mubr.f32.gmra.mxu0 %v1427
    %v1513 = vpop.f32.mrf.mxu0
    %v1514 = vadd.f32 0.0, %v1513
    %v1515 = vpop.f32.mrf.mxu0
    %1516 = vmatprep.mubr.f32.mxu0 0.0
    %1517 = vmatmul.mubr.f32.gmra.mxu0 %v1428
    %v1518 = vpop.f32.mrf.mxu0
    %v1519 = vadd.f32 0.0, %v1518
    %v1520 = vpop.f32.mrf.mxu0
    %1521 = vmatprep.mubr.f32.mxu0 0.0
    %1522 = vmatmul.mubr.f32.gmra.mxu0 %v1429
    %v1523 = vpop.f32.mrf.mxu0
    %v1524 = vadd.f32 0.0, %v1523
    %v1525 = vpop.f32.mrf.mxu0
    %1526 = vmatprep.mubr.f32.mxu0 0.0
    %1527 = vmatmul.mubr.f32.gmra.mxu0 %v1430
    %v1528 = vpop.f32.mrf.mxu0
    %v1529 = vadd.f32 0.0, %v1528
    %v1530 = vpop.f32.mrf.mxu0
    %1531 = vmatprep.mubr.f32.mxu0 0.0
    %1532 = vmatmul.mubr.f32.gmra.mxu0 %v1431
    %v1533 = vpop.f32.mrf.mxu0
    %v1534 = vadd.f32 0.0, %v1533
    %v1535 = vpop.f32.mrf.mxu0
    %1536 = vmatprep.mubr.f32.mxu0 0.0
    %1537 = vmatmul.mubr.f32.gmra.mxu0 %v1432
    %v1538 = vpop.f32.mrf.mxu0
    %v1539 = vadd.f32 0.0, %v1538
    %v1540 = vpop.f32.mrf.mxu0
    %1541 = vmatprep.mubr.f32.mxu0 0.0
    %1542 = vmatmul.mubr.f32.gmra.mxu0 %v1433
    %v1543 = vpop.f32.mrf.mxu0
    %v1544 = vadd.f32 0.0, %v1543
    %v1545 = vpop.f32.mrf.mxu0
    %1546 = vmatprep.mubr.f32.mxu0 0.0
    %1547 = vmatmul.mubr.f32.gmra.mxu0 %v1434
    %v1548 = vpop.f32.mrf.mxu0
    %v1549 = vadd.f32 0.0, %v1548
    %v1550 = vpop.f32.mrf.mxu0
    %1551 = vmatprep.mubr.f32.mxu0 0.0
    %1552 = vmatmul.mubr.f32.gmra.mxu0 %v1435
    %v1553 = vpop.f32.mrf.mxu0
    %v1554 = vadd.f32 0.0, %v1553
    %v1555 = vpop.f32.mrf.mxu0
    %1556 = vmatprep.mubr.f32.mxu0 0.0
    %1557 = vmatmul.mubr.f32.gmra.mxu0 %v1436
    %v1558 = vpop.f32.mrf.mxu0
    %v1559 = vadd.f32 0.0, %v1558
    %v1560 = vpop.f32.mrf.mxu0
    %1561 = vmatprep.mubr.f32.mxu0 0.0
    %1562 = vmatmul.mubr.f32.gmra.mxu0 %v1437
    %v1563 = vpop.f32.mrf.mxu0
    %v1564 = vadd.f32 0.0, %v1563
    %v1565 = vpop.f32.mrf.mxu0
    %1566 = vmatprep.mubr.f32.mxu0 0.0
    %1567 = vmatmul.mubr.f32.gmra.mxu0 %v1438
    %v1568 = vpop.f32.mrf.mxu0
    %v1569 = vadd.f32 0.0, %v1568
    %v1570 = vpop.f32.mrf.mxu0
    %1571 = vmatprep.mubr.f32.mxu0 0.0
    %1572 = vmatmul.mubr.f32.gmra.mxu0 %v1439
    %v1573 = vpop.f32.mrf.mxu0
    %v1574 = vadd.f32 0.0, %v1573
    %v1575 = vpop.f32.mrf.mxu0
    %1576 = vmatprep.mubr.f32.mxu0 0.0
    %1577 = vmatmul.mubr.f32.gmra.mxu0 %v1440
    %v1578 = vpop.f32.mrf.mxu0
    %v1579 = vadd.f32 0.0, %v1578
    %v1580 = vpop.f32.mrf.mxu0
    %1581 = vmatprep.mubr.f32.mxu0 0.0
    %1582 = vmatmul.mubr.f32.gmra.mxu0 %v1441
    %v1583 = vpop.f32.mrf.mxu0
    %v1584 = vadd.f32 0.0, %v1583
    %v1585 = vpop.f32.mrf.mxu0
    %1586 = vdwg.mxu0
    %1587 = vmatprep.subr.mxu0 0.0
    %1588 = vmatpush1.msra.mxu0 %v1441
    %1589 = vmatprep.subr.mxu0 0.0
    %1590 = vmatpush1.msra.mxu0 %v1440
    %1591 = vmatprep.subr.mxu0 0.0
    %1592 = vmatpush1.msra.mxu0 %v1439
    %1593 = vmatprep.subr.mxu0 0.0
    %1594 = vmatpush1.msra.mxu0 %v1438
    %1595 = vmatprep.subr.mxu0 0.0
    %1596 = vmatpush1.msra.mxu0 %v1437
    %1597 = vmatprep.subr.mxu0 0.0
    %1598 = vmatpush1.msra.mxu0 %v1436
    %1599 = vmatprep.subr.mxu0 0.0
    %1600 = vmatpush1.msra.mxu0 %v1435
    %1601 = vmatprep.subr.mxu0 0.0
    %1602 = vmatpush1.msra.mxu0 %v1434
    %1603 = vmatprep.subr.mxu0 0.0
    %1604 = vmatpush1.msra.mxu0 %v1433
    %1605 = vmatprep.subr.mxu0 0.0
    %1606 = vmatpush1.msra.mxu0 %v1432
    %1607 = vmatprep.subr.mxu0 0.0
    %1608 = vmatpush1.msra.mxu0 %v1431
    %1609 = vmatprep.subr.mxu0 0.0
    %1610 = vmatpush1.msra.mxu0 %v1430
    %1611 = vmatprep.subr.mxu0 0.0
    %1612 = vmatpush1.msra.mxu0 %v1429
    %1613 = vmatprep.subr.mxu0 0.0
    %1614 = vmatpush1.msra.mxu0 %v1428
    %1615 = vmatprep.subr.mxu0 0.0
    %1616 = vmatpush1.msra.mxu0 %v1427
    %1617 = vmatprep.subr.mxu0 0.0
    %1618 = vmatpush1.msra.mxu0 %v1426
    %1619 = vmatprep.subr.mxu0 0.0
    %1620 = vmatpush2.msra.mxu0 0.0
    %1621 = vmatprep.subr.mxu0 0.0
    %1622 = vmatpush2.msra.mxu0 0.0
    %1623 = vmatprep.subr.mxu0 0.0
    %1624 = vmatpush2.msra.mxu0 0.0
    %1625 = vmatprep.subr.mxu0 0.0
    %1626 = vmatpush2.msra.mxu0 0.0
    %1627 = vmatprep.subr.mxu0 0.0
    %1628 = vmatpush2.msra.mxu0 0.0
    %1629 = vmatprep.subr.mxu0 0.0
    %1630 = vmatpush2.msra.mxu0 0.0
    %1631 = vmatprep.subr.mxu0 0.0
    %1632 = vmatpush2.msra.mxu0 0.0
    %1633 = vmatprep.subr.mxu0 0.0
    %1634 = vmatpush2.msra.mxu0 0.0
    %1635 = vmatprep.subr.mxu0 0.0
    %1636 = vmatpush2.msra.mxu0 0.0
    %1637 = vmatprep.subr.mxu0 0.0
    %1638 = vmatpush2.msra.mxu0 0.0
    %1639 = vmatprep.subr.mxu0 0.0
    %1640 = vmatpush2.msra.mxu0 0.0
    %1641 = vmatprep.subr.mxu0 0.0
    %1642 = vmatpush2.msra.mxu0 0.0
    %1643 = vmatprep.subr.mxu0 0.0
    %1644 = vmatpush2.msra.mxu0 0.0
    %1645 = vmatprep.subr.mxu0 0.0
    %1646 = vmatpush2.msra.mxu0 0.0
    %1647 = vmatprep.subr.mxu0 0.0
    %1648 = vmatpush2.msra.mxu0 0.0
    %1649 = vmatprep.subr.mxu0 0.0
    %1650 = vmatpush2.msra.mxu0 0.0
    %1651 = vmatprep.mubr.f32.mxu0 0.0
    %1652 = vmatmul.mubr.f32.gmra.mxu0 %v1509
    %v1653 = vpop.f32.mrf.mxu0
    %v1654 = vadd.f32 0.0, %v1653
    %v1655 = vpop.f32.mrf.mxu0
    %1656 = vmatprep.mubr.f32.mxu0 0.0
    %1657 = vmatmul.mubr.f32.gmra.mxu0 %v1514
    %v1658 = vpop.f32.mrf.mxu0
    %v1659 = vadd.f32 0.0, %v1658
    %v1660 = vpop.f32.mrf.mxu0
    %1661 = vmatprep.mubr.f32.mxu0 0.0
    %1662 = vmatmul.mubr.f32.gmra.mxu0 %v1519
    %v1663 = vpop.f32.mrf.mxu0
    %v1664 = vadd.f32 0.0, %v1663
    %v1665 = vpop.f32.mrf.mxu0
    %1666 = vmatprep.mubr.f32.mxu0 0.0
    %1667 = vmatmul.mubr.f32.gmra.mxu0 %v1524
    %v1668 = vpop.f32.mrf.mxu0
    %v1669 = vadd.f32 0.0, %v1668
    %v1670 = vpop.f32.mrf.mxu0
    %1671 = vmatprep.mubr.f32.mxu0 0.0
    %1672 = vmatmul.mubr.f32.gmra.mxu0 %v1529
    %v1673 = vpop.f32.mrf.mxu0
    %v1674 = vadd.f32 0.0, %v1673
    %v1675 = vpop.f32.mrf.mxu0
    %1676 = vmatprep.mubr.f32.mxu0 0.0
    %1677 = vmatmul.mubr.f32.gmra.mxu0 %v1534
    %v1678 = vpop.f32.mrf.mxu0
    %v1679 = vadd.f32 0.0, %v1678
    %v1680 = vpop.f32.mrf.mxu0
    %1681 = vmatprep.mubr.f32.mxu0 0.0
    %1682 = vmatmul.mubr.f32.gmra.mxu0 %v1539
    %v1683 = vpop.f32.mrf.mxu0
    %v1684 = vadd.f32 0.0, %v1683
    %v1685 = vpop.f32.mrf.mxu0
    %1686 = vmatprep.mubr.f32.mxu0 0.0
    %1687 = vmatmul.mubr.f32.gmra.mxu0 %v1544
    %v1688 = vpop.f32.mrf.mxu0
    %v1689 = vadd.f32 0.0, %v1688
    %v1690 = vpop.f32.mrf.mxu0
    %1691 = vmatprep.mubr.f32.mxu0 0.0
    %1692 = vmatmul.mubr.f32.gmra.mxu0 %v1549
    %v1693 = vpop.f32.mrf.mxu0
    %v1694 = vadd.f32 0.0, %v1693
    %v1695 = vpop.f32.mrf.mxu0
    %1696 = vmatprep.mubr.f32.mxu0 0.0
    %1697 = vmatmul.mubr.f32.gmra.mxu0 %v1554
    %v1698 = vpop.f32.mrf.mxu0
    %v1699 = vadd.f32 0.0, %v1698
    %v1700 = vpop.f32.mrf.mxu0
    %1701 = vmatprep.mubr.f32.mxu0 0.0
    %1702 = vmatmul.mubr.f32.gmra.mxu0 %v1559
    %v1703 = vpop.f32.mrf.mxu0
    %v1704 = vadd.f32 0.0, %v1703
    %v1705 = vpop.f32.mrf.mxu0
    %1706 = vmatprep.mubr.f32.mxu0 0.0
    %1707 = vmatmul.mubr.f32.gmra.mxu0 %v1564
    %v1708 = vpop.f32.mrf.mxu0
    %v1709 = vadd.f32 0.0, %v1708
    %v1710 = vpop.f32.mrf.mxu0
    %1711 = vmatprep.mubr.f32.mxu0 0.0
    %1712 = vmatmul.mubr.f32.gmra.mxu0 %v1569
    %v1713 = vpop.f32.mrf.mxu0
    %v1714 = vadd.f32 0.0, %v1713
    %v1715 = vpop.f32.mrf.mxu0
    %1716 = vmatprep.mubr.f32.mxu0 0.0
    %1717 = vmatmul.mubr.f32.gmra.mxu0 %v1574
    %v1718 = vpop.f32.mrf.mxu0
    %v1719 = vadd.f32 0.0, %v1718
    %v1720 = vpop.f32.mrf.mxu0
    %1721 = vmatprep.mubr.f32.mxu0 0.0
    %1722 = vmatmul.mubr.f32.gmra.mxu0 %v1579
    %v1723 = vpop.f32.mrf.mxu0
    %v1724 = vadd.f32 0.0, %v1723
    %v1725 = vpop.f32.mrf.mxu0
    %1726 = vmatprep.mubr.f32.mxu0 0.0
    %1727 = vmatmul.mubr.f32.gmra.mxu0 %v1584
    %v1728 = vpop.f32.mrf.mxu0
    %v1729 = vadd.f32 0.0, %v1728
    %v1730 = vpop.f32.mrf.mxu0
    %1731 = vdwg.mxu0
    %v1732 = vmul.f32 %v1426, 1.5
    %v1733 = vmul.f32 %v1427, 1.5
    %v1734 = vmul.f32 %v1428, 1.5
    %v1735 = vmul.f32 %v1429, 1.5
    %v1736 = vmul.f32 %v1430, 1.5
    %v1737 = vmul.f32 %v1431, 1.5
    %v1738 = vmul.f32 %v1432, 1.5
    %v1739 = vmul.f32 %v1433, 1.5
    %v1740 = vmul.f32 %v1434, 1.5
    %v1741 = vmul.f32 %v1435, 1.5
    %v1742 = vmul.f32 %v1436, 1.5
    %v1743 = vmul.f32 %v1437, 1.5
    %v1744 = vmul.f32 %v1438, 1.5
    %v1745 = vmul.f32 %v1439, 1.5
    %v1746 = vmul.f32 %v1440, 1.5
    %v1747 = vmul.f32 %v1441, 1.5
    %1748 = vmatprep.subr.mxu0 0.0
    %1749 = vmatpush1.msra.mxu0 %v958
    %1750 = vmatprep.subr.mxu0 0.0
    %1751 = vmatpush1.msra.mxu0 %v957
    %1752 = vmatprep.subr.mxu0 0.0
    %1753 = vmatpush1.msra.mxu0 %v956
    %1754 = vmatprep.subr.mxu0 0.0
    %1755 = vmatpush1.msra.mxu0 %v955
    %1756 = vmatprep.subr.mxu0 0.0
    %1757 = vmatpush1.msra.mxu0 %v954
    %1758 = vmatprep.subr.mxu0 0.0
    %1759 = vmatpush1.msra.mxu0 %v953
    %1760 = vmatprep.subr.mxu0 0.0
    %1761 = vmatpush1.msra.mxu0 %v952
    %1762 = vmatprep.subr.mxu0 0.0
    %1763 = vmatpush1.msra.mxu0 %v951
    %1764 = vmatprep.subr.mxu0 0.0
    %1765 = vmatpush1.msra.mxu0 %v950
    %1766 = vmatprep.subr.mxu0 0.0
    %1767 = vmatpush1.msra.mxu0 %v949
    %1768 = vmatprep.subr.mxu0 0.0
    %1769 = vmatpush1.msra.mxu0 %v948
    %1770 = vmatprep.subr.mxu0 0.0
    %1771 = vmatpush1.msra.mxu0 %v947
    %1772 = vmatprep.subr.mxu0 0.0
    %1773 = vmatpush1.msra.mxu0 %v946
    %1774 = vmatprep.subr.mxu0 0.0
    %1775 = vmatpush1.msra.mxu0 %v945
    %1776 = vmatprep.subr.mxu0 0.0
    %1777 = vmatpush1.msra.mxu0 %v944
    %1778 = vmatprep.subr.mxu0 0.0
    %1779 = vmatpush1.msra.mxu0 %v943
    %1780 = vmatprep.subr.mxu0 0.0
    %1781 = vmatpush2.msra.mxu0 0.0
    %1782 = vmatprep.subr.mxu0 0.0
    %1783 = vmatpush2.msra.mxu0 0.0
    %1784 = vmatprep.subr.mxu0 0.0
    %1785 = vmatpush2.msra.mxu0 0.0
    %1786 = vmatprep.subr.mxu0 0.0
    %1787 = vmatpush2.msra.mxu0 0.0
    %1788 = vmatprep.subr.mxu0 0.0
    %1789 = vmatpush2.msra.mxu0 0.0
    %1790 = vmatprep.subr.mxu0 0.0
    %1791 = vmatpush2.msra.mxu0 0.0
    %1792 = vmatprep.subr.mxu0 0.0
    %1793 = vmatpush2.msra.mxu0 0.0
    %1794 = vmatprep.subr.mxu0 0.0
    %1795 = vmatpush2.msra.mxu0 0.0
    %1796 = vmatprep.subr.mxu0 0.0
    %1797 = vmatpush2.msra.mxu0 0.0
    %1798 = vmatprep.subr.mxu0 0.0
    %1799 = vmatpush2.msra.mxu0 0.0
    %1800 = vmatprep.subr.mxu0 0.0
    %1801 = vmatpush2.msra.mxu0 0.0
    %1802 = vmatprep.subr.mxu0 0.0
    %1803 = vmatpush2.msra.mxu0 0.0
    %1804 = vmatprep.subr.mxu0 0.0
    %1805 = vmatpush2.msra.mxu0 0.0
    %1806 = vmatprep.subr.mxu0 0.0
    %1807 = vmatpush2.msra.mxu0 0.0
    %1808 = vmatprep.subr.mxu0 0.0
    %1809 = vmatpush2.msra.mxu0 0.0
    %1810 = vmatprep.subr.mxu0 0.0
    %1811 = vmatpush2.msra.mxu0 0.0
    %1812 = vmatprep.mubr.f32.mxu0 0.0
    %1813 = vmatmul.mubr.f32.gmra.mxu0 %v1654
    %v1814 = vpop.f32.mrf.mxu0
    %v1815 = vadd.f32 0.0, %v1814
    %v1816 = vpop.f32.mrf.mxu0
    %1817 = vmatprep.mubr.f32.mxu0 0.0
    %1818 = vmatmul.mubr.f32.gmra.mxu0 %v1659
    %v1819 = vpop.f32.mrf.mxu0
    %v1820 = vadd.f32 0.0, %v1819
    %v1821 = vpop.f32.mrf.mxu0
    %1822 = vmatprep.mubr.f32.mxu0 0.0
    %1823 = vmatmul.mubr.f32.gmra.mxu0 %v1664
    %v1824 = vpop.f32.mrf.mxu0
    %v1825 = vadd.f32 0.0, %v1824
    %v1826 = vpop.f32.mrf.mxu0
    %1827 = vmatprep.mubr.f32.mxu0 0.0
    %1828 = vmatmul.mubr.f32.gmra.mxu0 %v1669
    %v1829 = vpop.f32.mrf.mxu0
    %v1830 = vadd.f32 0.0, %v1829
    %v1831 = vpop.f32.mrf.mxu0
    %1832 = vmatprep.mubr.f32.mxu0 0.0
    %1833 = vmatmul.mubr.f32.gmra.mxu0 %v1674
    %v1834 = vpop.f32.mrf.mxu0
    %v1835 = vadd.f32 0.0, %v1834
    %v1836 = vpop.f32.mrf.mxu0
    %1837 = vmatprep.mubr.f32.mxu0 0.0
    %1838 = vmatmul.mubr.f32.gmra.mxu0 %v1679
    %v1839 = vpop.f32.mrf.mxu0
    %v1840 = vadd.f32 0.0, %v1839
    %v1841 = vpop.f32.mrf.mxu0
    %1842 = vmatprep.mubr.f32.mxu0 0.0
    %1843 = vmatmul.mubr.f32.gmra.mxu0 %v1684
    %v1844 = vpop.f32.mrf.mxu0
    %v1845 = vadd.f32 0.0, %v1844
    %v1846 = vpop.f32.mrf.mxu0
    %1847 = vmatprep.mubr.f32.mxu0 0.0
    %1848 = vmatmul.mubr.f32.gmra.mxu0 %v1689
    %v1849 = vpop.f32.mrf.mxu0
    %v1850 = vadd.f32 0.0, %v1849
    %v1851 = vpop.f32.mrf.mxu0
    %1852 = vmatprep.mubr.f32.mxu0 0.0
    %1853 = vmatmul.mubr.f32.gmra.mxu0 %v1694
    %v1854 = vpop.f32.mrf.mxu0
    %v1855 = vadd.f32 0.0, %v1854
    %v1856 = vpop.f32.mrf.mxu0
    %1857 = vmatprep.mubr.f32.mxu0 0.0
    %1858 = vmatmul.mubr.f32.gmra.mxu0 %v1699
    %v1859 = vpop.f32.mrf.mxu0
    %v1860 = vadd.f32 0.0, %v1859
    %v1861 = vpop.f32.mrf.mxu0
    %1862 = vmatprep.mubr.f32.mxu0 0.0
    %1863 = vmatmul.mubr.f32.gmra.mxu0 %v1704
    %v1864 = vpop.f32.mrf.mxu0
    %v1865 = vadd.f32 0.0, %v1864
    %v1866 = vpop.f32.mrf.mxu0
    %1867 = vmatprep.mubr.f32.mxu0 0.0
    %1868 = vmatmul.mubr.f32.gmra.mxu0 %v1709
    %v1869 = vpop.f32.mrf.mxu0
    %v1870 = vadd.f32 0.0, %v1869
    %v1871 = vpop.f32.mrf.mxu0
    %1872 = vmatprep.mubr.f32.mxu0 0.0
    %1873 = vmatmul.mubr.f32.gmra.mxu0 %v1714
    %v1874 = vpop.f32.mrf.mxu0
    %v1875 = vadd.f32 0.0, %v1874
    %v1876 = vpop.f32.mrf.mxu0
    %1877 = vmatprep.mubr.f32.mxu0 0.0
    %1878 = vmatmul.mubr.f32.gmra.mxu0 %v1719
    %v1879 = vpop.f32.mrf.mxu0
    %v1880 = vadd.f32 0.0, %v1879
    %v1881 = vpop.f32.mrf.mxu0
    %1882 = vmatprep.mubr.f32.mxu0 0.0
    %1883 = vmatmul.mubr.f32.gmra.mxu0 %v1724
    %v1884 = vpop.f32.mrf.mxu0
    %v1885 = vadd.f32 0.0, %v1884
    %v1886 = vpop.f32.mrf.mxu0
    %1887 = vmatprep.mubr.f32.mxu0 0.0
    %1888 = vmatmul.mubr.f32.gmra.mxu0 %v1729
    %v1889 = vpop.f32.mrf.mxu0
    %v1890 = vadd.f32 0.0, %v1889
    %v1891 = vpop.f32.mrf.mxu0
    %1892 = vdwg.mxu0
    %v1893 = vmul.f32 %v1815, 0.5
    %v1894 = vmul.f32 %v1820, 0.5
    %v1895 = vmul.f32 %v1825, 0.5
    %v1896 = vmul.f32 %v1830, 0.5
    %v1897 = vmul.f32 %v1835, 0.5
    %v1898 = vmul.f32 %v1840, 0.5
    %v1899 = vmul.f32 %v1845, 0.5
    %v1900 = vmul.f32 %v1850, 0.5
    %v1901 = vmul.f32 %v1855, 0.5
    %v1902 = vmul.f32 %v1860, 0.5
    %v1903 = vmul.f32 %v1865, 0.5
    %v1904 = vmul.f32 %v1870, 0.5
    %v1905 = vmul.f32 %v1875, 0.5
    %v1906 = vmul.f32 %v1880, 0.5
    %v1907 = vmul.f32 %v1885, 0.5
    %v1908 = vmul.f32 %v1890, 0.5
    %v1909 = vsub.f32 %v1732, %v1893
    %v1910 = vsub.f32 %v1733, %v1894
    %v1911 = vsub.f32 %v1734, %v1895
    %v1912 = vsub.f32 %v1735, %v1896
    %v1913 = vsub.f32 %v1736, %v1897
    %v1914 = vsub.f32 %v1737, %v1898
    %v1915 = vsub.f32 %v1738, %v1899
    %v1916 = vsub.f32 %v1739, %v1900
    %v1917 = vsub.f32 %v1740, %v1901
    %v1918 = vsub.f32 %v1741, %v1902
    %v1919 = vsub.f32 %v1742, %v1903
    %v1920 = vsub.f32 %v1743, %v1904
    %v1921 = vsub.f32 %v1744, %v1905
    %v1922 = vsub.f32 %v1745, %v1906
    %v1923 = vsub.f32 %v1746, %v1907
    %v1924 = vsub.f32 %v1747, %v1908
    %1925 = vmatprep.subr.mxu0 0.0
    %1926 = vmatpush1.msra.mxu0 %v1924
    %1927 = vmatprep.subr.mxu0 0.0
    %1928 = vmatpush1.msra.mxu0 %v1923
    %1929 = vmatprep.subr.mxu0 0.0
    %1930 = vmatpush1.msra.mxu0 %v1922
    %1931 = vmatprep.subr.mxu0 0.0
    %1932 = vmatpush1.msra.mxu0 %v1921
    %1933 = vmatprep.subr.mxu0 0.0
    %1934 = vmatpush1.msra.mxu0 %v1920
    %1935 = vmatprep.subr.mxu0 0.0
    %1936 = vmatpush1.msra.mxu0 %v1919
    %1937 = vmatprep.subr.mxu0 0.0
    %1938 = vmatpush1.msra.mxu0 %v1918
    %1939 = vmatprep.subr.mxu0 0.0
    %1940 = vmatpush1.msra.mxu0 %v1917
    %1941 = vmatprep.subr.mxu0 0.0
    %1942 = vmatpush1.msra.mxu0 %v1916
    %1943 = vmatprep.subr.mxu0 0.0
    %1944 = vmatpush1.msra.mxu0 %v1915
    %1945 = vmatprep.subr.mxu0 0.0
    %1946 = vmatpush1.msra.mxu0 %v1914
    %1947 = vmatprep.subr.mxu0 0.0
    %1948 = vmatpush1.msra.mxu0 %v1913
    %1949 = vmatprep.subr.mxu0 0.0
    %1950 = vmatpush1.msra.mxu0 %v1912
    %1951 = vmatprep.subr.mxu0 0.0
    %1952 = vmatpush1.msra.mxu0 %v1911
    %1953 = vmatprep.subr.mxu0 0.0
    %1954 = vmatpush1.msra.mxu0 %v1910
    %1955 = vmatprep.subr.mxu0 0.0
    %1956 = vmatpush1.msra.mxu0 %v1909
    %1957 = vmatprep.subr.mxu0 0.0
    %1958 = vmatpush2.msra.mxu0 0.0
    %1959 = vmatprep.subr.mxu0 0.0
    %1960 = vmatpush2.msra.mxu0 0.0
    %1961 = vmatprep.subr.mxu0 0.0
    %1962 = vmatpush2.msra.mxu0 0.0
    %1963 = vmatprep.subr.mxu0 0.0
    %1964 = vmatpush2.msra.mxu0 0.0
    %1965 = vmatprep.subr.mxu0 0.0
    %1966 = vmatpush2.msra.mxu0 0.0
    %1967 = vmatprep.subr.mxu0 0.0
    %1968 = vmatpush2.msra.mxu0 0.0
    %1969 = vmatprep.subr.mxu0 0.0
    %1970 = vmatpush2.msra.mxu0 0.0
    %1971 = vmatprep.subr.mxu0 0.0
    %1972 = vmatpush2.msra.mxu0 0.0
    %1973 = vmatprep.subr.mxu0 0.0
    %1974 = vmatpush2.msra.mxu0 0.0
    %1975 = vmatprep.subr.mxu0 0.0
    %1976 = vmatpush2.msra.mxu0 0.0
    %1977 = vmatprep.subr.mxu0 0.0
    %1978 = vmatpush2.msra.mxu0 0.0
    %1979 = vmatprep.subr.mxu0 0.0
    %1980 = vmatpush2.msra.mxu0 0.0
    %1981 = vmatprep.subr.mxu0 0.0
    %1982 = vmatpush2.msra.mxu0 0.0
    %1983 = vmatprep.subr.mxu0 0.0
    %1984 = vmatpush2.msra.mxu0 0.0
    %1985 = vmatprep.subr.mxu0 0.0
    %1986 = vmatpush2.msra.mxu0 0.0
    %1987 = vmatprep.subr.mxu0 0.0
    %1988 = vmatpush2.msra.mxu0 0.0
    %1989 = vmatprep.mubr.f32.mxu0 0.0
    %1990 = vmatmul.mubr.f32.gmra.mxu0 %v1909
    %v1991 = vpop.f32.mrf.mxu0
    %v1992 = vadd.f32 0.0, %v1991
    %v1993 = vpop.f32.mrf.mxu0
    %1994 = vmatprep.mubr.f32.mxu0 0.0
    %1995 = vmatmul.mubr.f32.gmra.mxu0 %v1910
    %v1996 = vpop.f32.mrf.mxu0
    %v1997 = vadd.f32 0.0, %v1996
    %v1998 = vpop.f32.mrf.mxu0
    %1999 = vmatprep.mubr.f32.mxu0 0.0
    %2000 = vmatmul.mubr.f32.gmra.mxu0 %v1911
    %v2001 = vpop.f32.mrf.mxu0
    %v2002 = vadd.f32 0.0, %v2001
    %v2003 = vpop.f32.mrf.mxu0
    %2004 = vmatprep.mubr.f32.mxu0 0.0
    %2005 = vmatmul.mubr.f32.gmra.mxu0 %v1912
    %v2006 = vpop.f32.mrf.mxu0
    %v2007 = vadd.f32 0.0, %v2006
    %v2008 = vpop.f32.mrf.mxu0
    %2009 = vmatprep.mubr.f32.mxu0 0.0
    %2010 = vmatmul.mubr.f32.gmra.mxu0 %v1913
    %v2011 = vpop.f32.mrf.mxu0
    %v2012 = vadd.f32 0.0, %v2011
    %v2013 = vpop.f32.mrf.mxu0
    %2014 = vmatprep.mubr.f32.mxu0 0.0
    %2015 = vmatmul.mubr.f32.gmra.mxu0 %v1914
    %v2016 = vpop.f32.mrf.mxu0
    %v2017 = vadd.f32 0.0, %v2016
    %v2018 = vpop.f32.mrf.mxu0
    %2019 = vmatprep.mubr.f32.mxu0 0.0
    %2020 = vmatmul.mubr.f32.gmra.mxu0 %v1915
    %v2021 = vpop.f32.mrf.mxu0
    %v2022 = vadd.f32 0.0, %v2021
    %v2023 = vpop.f32.mrf.mxu0
    %2024 = vmatprep.mubr.f32.mxu0 0.0
    %2025 = vmatmul.mubr.f32.gmra.mxu0 %v1916
    %v2026 = vpop.f32.mrf.mxu0
    %v2027 = vadd.f32 0.0, %v2026
    %v2028 = vpop.f32.mrf.mxu0
    %2029 = vmatprep.mubr.f32.mxu0 0.0
    %2030 = vmatmul.mubr.f32.gmra.mxu0 %v1917
    %v2031 = vpop.f32.mrf.mxu0
    %v2032 = vadd.f32 0.0, %v2031
    %v2033 = vpop.f32.mrf.mxu0
    %2034 = vmatprep.mubr.f32.mxu0 0.0
    %2035 = vmatmul.mubr.f32.gmra.mxu0 %v1918
    %v2036 = vpop.f32.mrf.mxu0
    %v2037 = vadd.f32 0.0, %v2036
    %v2038 = vpop.f32.mrf.mxu0
    %2039 = vmatprep.mubr.f32.mxu0 0.0
    %2040 = vmatmul.mubr.f32.gmra.mxu0 %v1919
    %v2041 = vpop.f32.mrf.mxu0
    %v2042 = vadd.f32 0.0, %v2041
    %v2043 = vpop.f32.mrf.mxu0
    %2044 = vmatprep.mubr.f32.mxu0 0.0
    %2045 = vmatmul.mubr.f32.gmra.mxu0 %v1920
    %v2046 = vpop.f32.mrf.mxu0
    %v2047 = vadd.f32 0.0, %v2046
    %v2048 = vpop.f32.mrf.mxu0
    %2049 = vmatprep.mubr.f32.mxu0 0.0
    %2050 = vmatmul.mubr.f32.gmra.mxu0 %v1921
    %v2051 = vpop.f32.mrf.mxu0
    %v2052 = vadd.f32 0.0, %v2051
    %v2053 = vpop.f32.mrf.mxu0
    %2054 = vmatprep.mubr.f32.mxu0 0.0
    %2055 = vmatmul.mubr.f32.gmra.mxu0 %v1922
    %v2056 = vpop.f32.mrf.mxu0
    %v2057 = vadd.f32 0.0, %v2056
    %v2058 = vpop.f32.mrf.mxu0
    %2059 = vmatprep.mubr.f32.mxu0 0.0
    %2060 = vmatmul.mubr.f32.gmra.mxu0 %v1923
    %v2061 = vpop.f32.mrf.mxu0
    %v2062 = vadd.f32 0.0, %v2061
    %v2063 = vpop.f32.mrf.mxu0
    %2064 = vmatprep.mubr.f32.mxu0 0.0
    %2065 = vmatmul.mubr.f32.gmra.mxu0 %v1924
    %v2066 = vpop.f32.mrf.mxu0
    %v2067 = vadd.f32 0.0, %v2066
    %v2068 = vpop.f32.mrf.mxu0
    %2069 = vdwg.mxu0
    %2070 = vmatprep.subr.mxu0 0.0
    %2071 = vmatpush1.msra.mxu0 %v1924
    %2072 = vmatprep.subr.mxu0 0.0
    %2073 = vmatpush1.msra.mxu0 %v1923
    %2074 = vmatprep.subr.mxu0 0.0
    %2075 = vmatpush1.msra.mxu0 %v1922
    %2076 = vmatprep.subr.mxu0 0.0
    %2077 = vmatpush1.msra.mxu0 %v1921
    %2078 = vmatprep.subr.mxu0 0.0
    %2079 = vmatpush1.msra.mxu0 %v1920
    %2080 = vmatprep.subr.mxu0 0.0
    %2081 = vmatpush1.msra.mxu0 %v1919
    %2082 = vmatprep.subr.mxu0 0.0
    %2083 = vmatpush1.msra.mxu0 %v1918
    %2084 = vmatprep.subr.mxu0 0.0
    %2085 = vmatpush1.msra.mxu0 %v1917
    %2086 = vmatprep.subr.mxu0 0.0
    %2087 = vmatpush1.msra.mxu0 %v1916
    %2088 = vmatprep.subr.mxu0 0.0
    %2089 = vmatpush1.msra.mxu0 %v1915
    %2090 = vmatprep.subr.mxu0 0.0
    %2091 = vmatpush1.msra.mxu0 %v1914
    %2092 = vmatprep.subr.mxu0 0.0
    %2093 = vmatpush1.msra.mxu0 %v1913
    %2094 = vmatprep.subr.mxu0 0.0
    %2095 = vmatpush1.msra.mxu0 %v1912
    %2096 = vmatprep.subr.mxu0 0.0
    %2097 = vmatpush1.msra.mxu0 %v1911
    %2098 = vmatprep.subr.mxu0 0.0
    %2099 = vmatpush1.msra.mxu0 %v1910
    %2100 = vmatprep.subr.mxu0 0.0
    %2101 = vmatpush1.msra.mxu0 %v1909
    %2102 = vmatprep.subr.mxu0 0.0
    %2103 = vmatpush2.msra.mxu0 0.0
    %2104 = vmatprep.subr.mxu0 0.0
    %2105 = vmatpush2.msra.mxu0 0.0
    %2106 = vmatprep.subr.mxu0 0.0
    %2107 = vmatpush2.msra.mxu0 0.0
    %2108 = vmatprep.subr.mxu0 0.0
    %2109 = vmatpush2.msra.mxu0 0.0
    %2110 = vmatprep.subr.mxu0 0.0
    %2111 = vmatpush2.msra.mxu0 0.0
    %2112 = vmatprep.subr.mxu0 0.0
    %2113 = vmatpush2.msra.mxu0 0.0
    %2114 = vmatprep.subr.mxu0 0.0
    %2115 = vmatpush2.msra.mxu0 0.0
    %2116 = vmatprep.subr.mxu0 0.0
    %2117 = vmatpush2.msra.mxu0 0.0
    %2118 = vmatprep.subr.mxu0 0.0
    %2119 = vmatpush2.msra.mxu0 0.0
    %2120 = vmatprep.subr.mxu0 0.0
    %2121 = vmatpush2.msra.mxu0 0.0
    %2122 = vmatprep.subr.mxu0 0.0
    %2123 = vmatpush2.msra.mxu0 0.0
    %2124 = vmatprep.subr.mxu0 0.0
    %2125 = vmatpush2.msra.mxu0 0.0
    %2126 = vmatprep.subr.mxu0 0.0
    %2127 = vmatpush2.msra.mxu0 0.0
    %2128 = vmatprep.subr.mxu0 0.0
    %2129 = vmatpush2.msra.mxu0 0.0
    %2130 = vmatprep.subr.mxu0 0.0
    %2131 = vmatpush2.msra.mxu0 0.0
    %2132 = vmatprep.subr.mxu0 0.0
    %2133 = vmatpush2.msra.mxu0 0.0
    %2134 = vmatprep.mubr.f32.mxu0 0.0
    %2135 = vmatmul.mubr.f32.gmra.mxu0 %v1992
    %v2136 = vpop.f32.mrf.mxu0
    %v2137 = vadd.f32 0.0, %v2136
    %v2138 = vpop.f32.mrf.mxu0
    %2139 = vmatprep.mubr.f32.mxu0 0.0
    %2140 = vmatmul.mubr.f32.gmra.mxu0 %v1997
    %v2141 = vpop.f32.mrf.mxu0
    %v2142 = vadd.f32 0.0, %v2141
    %v2143 = vpop.f32.mrf.mxu0
    %2144 = vmatprep.mubr.f32.mxu0 0.0
    %2145 = vmatmul.mubr.f32.gmra.mxu0 %v2002
    %v2146 = vpop.f32.mrf.mxu0
    %v2147 = vadd.f32 0.0, %v2146
    %v2148 = vpop.f32.mrf.mxu0
    %2149 = vmatprep.mubr.f32.mxu0 0.0
    %2150 = vmatmul.mubr.f32.gmra.mxu0 %v2007
    %v2151 = vpop.f32.mrf.mxu0
    %v2152 = vadd.f32 0.0, %v2151
    %v2153 = vpop.f32.mrf.mxu0
    %2154 = vmatprep.mubr.f32.mxu0 0.0
    %2155 = vmatmul.mubr.f32.gmra.mxu0 %v2012
    %v2156 = vpop.f32.mrf.mxu0
    %v2157 = vadd.f32 0.0, %v2156
    %v2158 = vpop.f32.mrf.mxu0
    %2159 = vmatprep.mubr.f32.mxu0 0.0
    %2160 = vmatmul.mubr.f32.gmra.mxu0 %v2017
    %v2161 = vpop.f32.mrf.mxu0
    %v2162 = vadd.f32 0.0, %v2161
    %v2163 = vpop.f32.mrf.mxu0
    %2164 = vmatprep.mubr.f32.mxu0 0.0
    %2165 = vmatmul.mubr.f32.gmra.mxu0 %v2022
    %v2166 = vpop.f32.mrf.mxu0
    %v2167 = vadd.f32 0.0, %v2166
    %v2168 = vpop.f32.mrf.mxu0
    %2169 = vmatprep.mubr.f32.mxu0 0.0
    %2170 = vmatmul.mubr.f32.gmra.mxu0 %v2027
    %v2171 = vpop.f32.mrf.mxu0
    %v2172 = vadd.f32 0.0, %v2171
    %v2173 = vpop.f32.mrf.mxu0
    %2174 = vmatprep.mubr.f32.mxu0 0.0
    %2175 = vmatmul.mubr.f32.gmra.mxu0 %v2032
    %v2176 = vpop.f32.mrf.mxu0
    %v2177 = vadd.f32 0.0, %v2176
    %v2178 = vpop.f32.mrf.mxu0
    %2179 = vmatprep.mubr.f32.mxu0 0.0
    %2180 = vmatmul.mubr.f32.gmra.mxu0 %v2037
    %v2181 = vpop.f32.mrf.mxu0
    %v2182 = vadd.f32 0.0, %v2181
    %v2183 = vpop.f32.mrf.mxu0
    %2184 = vmatprep.mubr.f32.mxu0 0.0
    %2185 = vmatmul.mubr.f32.gmra.mxu0 %v2042
    %v2186 = vpop.f32.mrf.mxu0
    %v2187 = vadd.f32 0.0, %v2186
    %v2188 = vpop.f32.mrf.mxu0
    %2189 = vmatprep.mubr.f32.mxu0 0.0
    %2190 = vmatmul.mubr.f32.gmra.mxu0 %v2047
    %v2191 = vpop.f32.mrf.mxu0
    %v2192 = vadd.f32 0.0, %v2191
    %v2193 = vpop.f32.mrf.mxu0
    %2194 = vmatprep.mubr.f32.mxu0 0.0
    %2195 = vmatmul.mubr.f32.gmra.mxu0 %v2052
    %v2196 = vpop.f32.mrf.mxu0
    %v2197 = vadd.f32 0.0, %v2196
    %v2198 = vpop.f32.mrf.mxu0
    %2199 = vmatprep.mubr.f32.mxu0 0.0
    %2200 = vmatmul.mubr.f32.gmra.mxu0 %v2057
    %v2201 = vpop.f32.mrf.mxu0
    %v2202 = vadd.f32 0.0, %v2201
    %v2203 = vpop.f32.mrf.mxu0
    %2204 = vmatprep.mubr.f32.mxu0 0.0
    %2205 = vmatmul.mubr.f32.gmra.mxu0 %v2062
    %v2206 = vpop.f32.mrf.mxu0
    %v2207 = vadd.f32 0.0, %v2206
    %v2208 = vpop.f32.mrf.mxu0
    %2209 = vmatprep.mubr.f32.mxu0 0.0
    %2210 = vmatmul.mubr.f32.gmra.mxu0 %v2067
    %v2211 = vpop.f32.mrf.mxu0
    %v2212 = vadd.f32 0.0, %v2211
    %v2213 = vpop.f32.mrf.mxu0
    %2214 = vdwg.mxu0
    %v2215 = vmul.f32 %v1909, 1.5
    %v2216 = vmul.f32 %v1910, 1.5
    %v2217 = vmul.f32 %v1911, 1.5
    %v2218 = vmul.f32 %v1912, 1.5
    %v2219 = vmul.f32 %v1913, 1.5
    %v2220 = vmul.f32 %v1914, 1.5
    %v2221 = vmul.f32 %v1915, 1.5
    %v2222 = vmul.f32 %v1916, 1.5
    %v2223 = vmul.f32 %v1917, 1.5
    %v2224 = vmul.f32 %v1918, 1.5
    %v2225 = vmul.f32 %v1919, 1.5
    %v2226 = vmul.f32 %v1920, 1.5
    %v2227 = vmul.f32 %v1921, 1.5
    %v2228 = vmul.f32 %v1922, 1.5
    %v2229 = vmul.f32 %v1923, 1.5
    %v2230 = vmul.f32 %v1924, 1.5
    %2231 = vmatprep.subr.mxu0 0.0
    %2232 = vmatpush1.msra.mxu0 %v958
    %2233 = vmatprep.subr.mxu0 0.0
    %2234 = vmatpush1.msra.mxu0 %v957
    %2235 = vmatprep.subr.mxu0 0.0
    %2236 = vmatpush1.msra.mxu0 %v956
    %2237 = vmatprep.subr.mxu0 0.0
    %2238 = vmatpush1.msra.mxu0 %v955
    %2239 = vmatprep.subr.mxu0 0.0
    %2240 = vmatpush1.msra.mxu0 %v954
    %2241 = vmatprep.subr.mxu0 0.0
    %2242 = vmatpush1.msra.mxu0 %v953
    %2243 = vmatprep.subr.mxu0 0.0
    %2244 = vmatpush1.msra.mxu0 %v952
    %2245 = vmatprep.subr.mxu0 0.0
    %2246 = vmatpush1.msra.mxu0 %v951
    %2247 = vmatprep.subr.mxu0 0.0
    %2248 = vmatpush1.msra.mxu0 %v950
    %2249 = vmatprep.subr.mxu0 0.0
    %2250 = vmatpush1.msra.mxu0 %v949
    %2251 = vmatprep.subr.mxu0 0.0
    %2252 = vmatpush1.msra.mxu0 %v948
    %2253 = vmatprep.subr.mxu0 0.0
    %2254 = vmatpush1.msra.mxu0 %v947
    %2255 = vmatprep.subr.mxu0 0.0
    %2256 = vmatpush1.msra.mxu0 %v946
    %2257 = vmatprep.subr.mxu0 0.0
    %2258 = vmatpush1.msra.mxu0 %v945
    %2259 = vmatprep.subr.mxu0 0.0
    %2260 = vmatpush1.msra.mxu0 %v944
    %2261 = vmatprep.subr.mxu0 0.0
    %2262 = vmatpush1.msra.mxu0 %v943
    %2263 = vmatprep.subr.mxu0 0.0
    %2264 = vmatpush2.msra.mxu0 0.0
    %2265 = vmatprep.subr.mxu0 0.0
    %2266 = vmatpush2.msra.mxu0 0.0
    %2267 = vmatprep.subr.mxu0 0.0
    %2268 = vmatpush2.msra.mxu0 0.0
    %2269 = vmatprep.subr.mxu0 0.0
    %2270 = vmatpush2.msra.mxu0 0.0
    %2271 = vmatprep.subr.mxu0 0.0
    %2272 = vmatpush2.msra.mxu0 0.0
    %2273 = vmatprep.subr.mxu0 0.0
    %2274 = vmatpush2.msra.mxu0 0.0
    %2275 = vmatprep.subr.mxu0 0.0
    %2276 = vmatpush2.msra.mxu0 0.0
    %2277 = vmatprep.subr.mxu0 0.0
    %2278 = vmatpush2.msra.mxu0 0.0
    %2279 = vmatprep.subr.mxu0 0.0
    %2280 = vmatpush2.msra.mxu0 0.0
    %2281 = vmatprep.subr.mxu0 0.0
    %2282 = vmatpush2.msra.mxu0 0.0
    %2283 = vmatprep.subr.mxu0 0.0
    %2284 = vmatpush2.msra.mxu0 0.0
    %2285 = vmatprep.subr.mxu0 0.0
    %2286 = vmatpush2.msra.mxu0 0.0
    %2287 = vmatprep.subr.mxu0 0.0
    %2288 = vmatpush2.msra.mxu0 0.0
    %2289 = vmatprep.subr.mxu0 0.0
    %2290 = vmatpush2.msra.mxu0 0.0
    %2291 = vmatprep.subr.mxu0 0.0
    %2292 = vmatpush2.msra.mxu0 0.0
    %2293 = vmatprep.subr.mxu0 0.0
    %2294 = vmatpush2.msra.mxu0 0.0
    %2295 = vmatprep.mubr.f32.mxu0 0.0
    %2296 = vmatmul.mubr.f32.gmra.mxu0 %v2137
    %v2297 = vpop.f32.mrf.mxu0
    %v2298 = vadd.f32 0.0, %v2297
    %v2299 = vpop.f32.mrf.mxu0
    %2300 = vmatprep.mubr.f32.mxu0 0.0
    %2301 = vmatmul.mubr.f32.gmra.mxu0 %v2142
    %v2302 = vpop.f32.mrf.mxu0
    %v2303 = vadd.f32 0.0, %v2302
    %v2304 = vpop.f32.mrf.mxu0
    %2305 = vmatprep.mubr.f32.mxu0 0.0
    %2306 = vmatmul.mubr.f32.gmra.mxu0 %v2147
    %v2307 = vpop.f32.mrf.mxu0
    %v2308 = vadd.f32 0.0, %v2307
    %v2309 = vpop.f32.mrf.mxu0
    %2310 = vmatprep.mubr.f32.mxu0 0.0
    %2311 = vmatmul.mubr.f32.gmra.mxu0 %v2152
    %v2312 = vpop.f32.mrf.mxu0
    %v2313 = vadd.f32 0.0, %v2312
    %v2314 = vpop.f32.mrf.mxu0
    %2315 = vmatprep.mubr.f32.mxu0 0.0
    %2316 = vmatmul.mubr.f32.gmra.mxu0 %v2157
    %v2317 = vpop.f32.mrf.mxu0
    %v2318 = vadd.f32 0.0, %v2317
    %v2319 = vpop.f32.mrf.mxu0
    %2320 = vmatprep.mubr.f32.mxu0 0.0
    %2321 = vmatmul.mubr.f32.gmra.mxu0 %v2162
    %v2322 = vpop.f32.mrf.mxu0
    %v2323 = vadd.f32 0.0, %v2322
    %v2324 = vpop.f32.mrf.mxu0
    %2325 = vmatprep.mubr.f32.mxu0 0.0
    %2326 = vmatmul.mubr.f32.gmra.mxu0 %v2167
    %v2327 = vpop.f32.mrf.mxu0
    %v2328 = vadd.f32 0.0, %v2327
    %v2329 = vpop.f32.mrf.mxu0
    %2330 = vmatprep.mubr.f32.mxu0 0.0
    %2331 = vmatmul.mubr.f32.gmra.mxu0 %v2172
    %v2332 = vpop.f32.mrf.mxu0
    %v2333 = vadd.f32 0.0, %v2332
    %v2334 = vpop.f32.mrf.mxu0
    %2335 = vmatprep.mubr.f32.mxu0 0.0
    %2336 = vmatmul.mubr.f32.gmra.mxu0 %v2177
    %v2337 = vpop.f32.mrf.mxu0
    %v2338 = vadd.f32 0.0, %v2337
    %v2339 = vpop.f32.mrf.mxu0
    %2340 = vmatprep.mubr.f32.mxu0 0.0
    %2341 = vmatmul.mubr.f32.gmra.mxu0 %v2182
    %v2342 = vpop.f32.mrf.mxu0
    %v2343 = vadd.f32 0.0, %v2342
    %v2344 = vpop.f32.mrf.mxu0
    %2345 = vmatprep.mubr.f32.mxu0 0.0
    %2346 = vmatmul.mubr.f32.gmra.mxu0 %v2187
    %v2347 = vpop.f32.mrf.mxu0
    %v2348 = vadd.f32 0.0, %v2347
    %v2349 = vpop.f32.mrf.mxu0
    %2350 = vmatprep.mubr.f32.mxu0 0.0
    %2351 = vmatmul.mubr.f32.gmra.mxu0 %v2192
    %v2352 = vpop.f32.mrf.mxu0
    %v2353 = vadd.f32 0.0, %v2352
    %v2354 = vpop.f32.mrf.mxu0
    %2355 = vmatprep.mubr.f32.mxu0 0.0
    %2356 = vmatmul.mubr.f32.gmra.mxu0 %v2197
    %v2357 = vpop.f32.mrf.mxu0
    %v2358 = vadd.f32 0.0, %v2357
    %v2359 = vpop.f32.mrf.mxu0
    %2360 = vmatprep.mubr.f32.mxu0 0.0
    %2361 = vmatmul.mubr.f32.gmra.mxu0 %v2202
    %v2362 = vpop.f32.mrf.mxu0
    %v2363 = vadd.f32 0.0, %v2362
    %v2364 = vpop.f32.mrf.mxu0
    %2365 = vmatprep.mubr.f32.mxu0 0.0
    %2366 = vmatmul.mubr.f32.gmra.mxu0 %v2207
    %v2367 = vpop.f32.mrf.mxu0
    %v2368 = vadd.f32 0.0, %v2367
    %v2369 = vpop.f32.mrf.mxu0
    %2370 = vmatprep.mubr.f32.mxu0 0.0
    %2371 = vmatmul.mubr.f32.gmra.mxu0 %v2212
    %v2372 = vpop.f32.mrf.mxu0
    %v2373 = vadd.f32 0.0, %v2372
    %v2374 = vpop.f32.mrf.mxu0
    %2375 = vdwg.mxu0
    %v2376 = vmul.f32 %v2298, 0.5
    %v2377 = vmul.f32 %v2303, 0.5
    %v2378 = vmul.f32 %v2308, 0.5
    %v2379 = vmul.f32 %v2313, 0.5
    %v2380 = vmul.f32 %v2318, 0.5
    %v2381 = vmul.f32 %v2323, 0.5
    %v2382 = vmul.f32 %v2328, 0.5
    %v2383 = vmul.f32 %v2333, 0.5
    %v2384 = vmul.f32 %v2338, 0.5
    %v2385 = vmul.f32 %v2343, 0.5
    %v2386 = vmul.f32 %v2348, 0.5
    %v2387 = vmul.f32 %v2353, 0.5
    %v2388 = vmul.f32 %v2358, 0.5
    %v2389 = vmul.f32 %v2363, 0.5
    %v2390 = vmul.f32 %v2368, 0.5
    %v2391 = vmul.f32 %v2373, 0.5
    %v2392 = vsub.f32 %v2215, %v2376
    %v2393 = vsub.f32 %v2216, %v2377
    %v2394 = vsub.f32 %v2217, %v2378
    %v2395 = vsub.f32 %v2218, %v2379
    %v2396 = vsub.f32 %v2219, %v2380
    %v2397 = vsub.f32 %v2220, %v2381
    %v2398 = vsub.f32 %v2221, %v2382
    %v2399 = vsub.f32 %v2222, %v2383
    %v2400 = vsub.f32 %v2223, %v2384
    %v2401 = vsub.f32 %v2224, %v2385
    %v2402 = vsub.f32 %v2225, %v2386
    %v2403 = vsub.f32 %v2226, %v2387
    %v2404 = vsub.f32 %v2227, %v2388
    %v2405 = vsub.f32 %v2228, %v2389
    %v2406 = vsub.f32 %v2229, %v2390
    %v2407 = vsub.f32 %v2230, %v2391
    %2408 = vmatprep.subr.mxu0 0.0
    %2409 = vmatpush1.msra.mxu0 %v2407
    %2410 = vmatprep.subr.mxu0 0.0
    %2411 = vmatpush1.msra.mxu0 %v2406
    %2412 = vmatprep.subr.mxu0 0.0
    %2413 = vmatpush1.msra.mxu0 %v2405
    %2414 = vmatprep.subr.mxu0 0.0
    %2415 = vmatpush1.msra.mxu0 %v2404
    %2416 = vmatprep.subr.mxu0 0.0
    %2417 = vmatpush1.msra.mxu0 %v2403
    %2418 = vmatprep.subr.mxu0 0.0
    %2419 = vmatpush1.msra.mxu0 %v2402
    %2420 = vmatprep.subr.mxu0 0.0
    %2421 = vmatpush1.msra.mxu0 %v2401
    %2422 = vmatprep.subr.mxu0 0.0
    %2423 = vmatpush1.msra.mxu0 %v2400
    %2424 = vmatprep.subr.mxu0 0.0
    %2425 = vmatpush1.msra.mxu0 %v2399
    %2426 = vmatprep.subr.mxu0 0.0
    %2427 = vmatpush1.msra.mxu0 %v2398
    %2428 = vmatprep.subr.mxu0 0.0
    %2429 = vmatpush1.msra.mxu0 %v2397
    %2430 = vmatprep.subr.mxu0 0.0
    %2431 = vmatpush1.msra.mxu0 %v2396
    %2432 = vmatprep.subr.mxu0 0.0
    %2433 = vmatpush1.msra.mxu0 %v2395
    %2434 = vmatprep.subr.mxu0 0.0
    %2435 = vmatpush1.msra.mxu0 %v2394
    %2436 = vmatprep.subr.mxu0 0.0
    %2437 = vmatpush1.msra.mxu0 %v2393
    %2438 = vmatprep.subr.mxu0 0.0
    %2439 = vmatpush1.msra.mxu0 %v2392
    %2440 = vmatprep.subr.mxu0 0.0
    %2441 = vmatpush2.msra.mxu0 0.0
    %2442 = vmatprep.subr.mxu0 0.0
    %2443 = vmatpush2.msra.mxu0 0.0
    %2444 = vmatprep.subr.mxu0 0.0
    %2445 = vmatpush2.msra.mxu0 0.0
    %2446 = vmatprep.subr.mxu0 0.0
    %2447 = vmatpush2.msra.mxu0 0.0
    %2448 = vmatprep.subr.mxu0 0.0
    %2449 = vmatpush2.msra.mxu0 0.0
    %2450 = vmatprep.subr.mxu0 0.0
    %2451 = vmatpush2.msra.mxu0 0.0
    %2452 = vmatprep.subr.mxu0 0.0
    %2453 = vmatpush2.msra.mxu0 0.0
    %2454 = vmatprep.subr.mxu0 0.0
    %2455 = vmatpush2.msra.mxu0 0.0
    %2456 = vmatprep.subr.mxu0 0.0
    %2457 = vmatpush2.msra.mxu0 0.0
    %2458 = vmatprep.subr.mxu0 0.0
    %2459 = vmatpush2.msra.mxu0 0.0
    %2460 = vmatprep.subr.mxu0 0.0
    %2461 = vmatpush2.msra.mxu0 0.0
    %2462 = vmatprep.subr.mxu0 0.0
    %2463 = vmatpush2.msra.mxu0 0.0
    %2464 = vmatprep.subr.mxu0 0.0
    %2465 = vmatpush2.msra.mxu0 0.0
    %2466 = vmatprep.subr.mxu0 0.0
    %2467 = vmatpush2.msra.mxu0 0.0
    %2468 = vmatprep.subr.mxu0 0.0
    %2469 = vmatpush2.msra.mxu0 0.0
    %2470 = vmatprep.subr.mxu0 0.0
    %2471 = vmatpush2.msra.mxu0 0.0
    %2472 = vmatprep.mubr.f32.mxu0 0.0
    %2473 = vmatmul.mubr.f32.gmra.mxu0 %v2392
    %v2474 = vpop.f32.mrf.mxu0
    %v2475 = vadd.f32 0.0, %v2474
    %v2476 = vpop.f32.mrf.mxu0
    %2477 = vmatprep.mubr.f32.mxu0 0.0
    %2478 = vmatmul.mubr.f32.gmra.mxu0 %v2393
    %v2479 = vpop.f32.mrf.mxu0
    %v2480 = vadd.f32 0.0, %v2479
    %v2481 = vpop.f32.mrf.mxu0
    %2482 = vmatprep.mubr.f32.mxu0 0.0
    %2483 = vmatmul.mubr.f32.gmra.mxu0 %v2394
    %v2484 = vpop.f32.mrf.mxu0
    %v2485 = vadd.f32 0.0, %v2484
    %v2486 = vpop.f32.mrf.mxu0
    %2487 = vmatprep.mubr.f32.mxu0 0.0
    %2488 = vmatmul.mubr.f32.gmra.mxu0 %v2395
    %v2489 = vpop.f32.mrf.mxu0
    %v2490 = vadd.f32 0.0, %v2489
    %v2491 = vpop.f32.mrf.mxu0
    %2492 = vmatprep.mubr.f32.mxu0 0.0
    %2493 = vmatmul.mubr.f32.gmra.mxu0 %v2396
    %v2494 = vpop.f32.mrf.mxu0
    %v2495 = vadd.f32 0.0, %v2494
    %v2496 = vpop.f32.mrf.mxu0
    %2497 = vmatprep.mubr.f32.mxu0 0.0
    %2498 = vmatmul.mubr.f32.gmra.mxu0 %v2397
    %v2499 = vpop.f32.mrf.mxu0
    %v2500 = vadd.f32 0.0, %v2499
    %v2501 = vpop.f32.mrf.mxu0
    %2502 = vmatprep.mubr.f32.mxu0 0.0
    %2503 = vmatmul.mubr.f32.gmra.mxu0 %v2398
    %v2504 = vpop.f32.mrf.mxu0
    %v2505 = vadd.f32 0.0, %v2504
    %v2506 = vpop.f32.mrf.mxu0
    %2507 = vmatprep.mubr.f32.mxu0 0.0
    %2508 = vmatmul.mubr.f32.gmra.mxu0 %v2399
    %v2509 = vpop.f32.mrf.mxu0
    %v2510 = vadd.f32 0.0, %v2509
    %v2511 = vpop.f32.mrf.mxu0
    %2512 = vmatprep.mubr.f32.mxu0 0.0
    %2513 = vmatmul.mubr.f32.gmra.mxu0 %v2400
    %v2514 = vpop.f32.mrf.mxu0
    %v2515 = vadd.f32 0.0, %v2514
    %v2516 = vpop.f32.mrf.mxu0
    %2517 = vmatprep.mubr.f32.mxu0 0.0
    %2518 = vmatmul.mubr.f32.gmra.mxu0 %v2401
    %v2519 = vpop.f32.mrf.mxu0
    %v2520 = vadd.f32 0.0, %v2519
    %v2521 = vpop.f32.mrf.mxu0
    %2522 = vmatprep.mubr.f32.mxu0 0.0
    %2523 = vmatmul.mubr.f32.gmra.mxu0 %v2402
    %v2524 = vpop.f32.mrf.mxu0
    %v2525 = vadd.f32 0.0, %v2524
    %v2526 = vpop.f32.mrf.mxu0
    %2527 = vmatprep.mubr.f32.mxu0 0.0
    %2528 = vmatmul.mubr.f32.gmra.mxu0 %v2403
    %v2529 = vpop.f32.mrf.mxu0
    %v2530 = vadd.f32 0.0, %v2529
    %v2531 = vpop.f32.mrf.mxu0
    %2532 = vmatprep.mubr.f32.mxu0 0.0
    %2533 = vmatmul.mubr.f32.gmra.mxu0 %v2404
    %v2534 = vpop.f32.mrf.mxu0
    %v2535 = vadd.f32 0.0, %v2534
    %v2536 = vpop.f32.mrf.mxu0
    %2537 = vmatprep.mubr.f32.mxu0 0.0
    %2538 = vmatmul.mubr.f32.gmra.mxu0 %v2405
    %v2539 = vpop.f32.mrf.mxu0
    %v2540 = vadd.f32 0.0, %v2539
    %v2541 = vpop.f32.mrf.mxu0
    %2542 = vmatprep.mubr.f32.mxu0 0.0
    %2543 = vmatmul.mubr.f32.gmra.mxu0 %v2406
    %v2544 = vpop.f32.mrf.mxu0
    %v2545 = vadd.f32 0.0, %v2544
    %v2546 = vpop.f32.mrf.mxu0
    %2547 = vmatprep.mubr.f32.mxu0 0.0
    %2548 = vmatmul.mubr.f32.gmra.mxu0 %v2407
    %v2549 = vpop.f32.mrf.mxu0
    %v2550 = vadd.f32 0.0, %v2549
    %v2551 = vpop.f32.mrf.mxu0
    %2552 = vdwg.mxu0
    %2553 = vmatprep.subr.mxu0 0.0
    %2554 = vmatpush1.msra.mxu0 %v2407
    %2555 = vmatprep.subr.mxu0 0.0
    %2556 = vmatpush1.msra.mxu0 %v2406
    %2557 = vmatprep.subr.mxu0 0.0
    %2558 = vmatpush1.msra.mxu0 %v2405
    %2559 = vmatprep.subr.mxu0 0.0
    %2560 = vmatpush1.msra.mxu0 %v2404
    %2561 = vmatprep.subr.mxu0 0.0
    %2562 = vmatpush1.msra.mxu0 %v2403
    %2563 = vmatprep.subr.mxu0 0.0
    %2564 = vmatpush1.msra.mxu0 %v2402
    %2565 = vmatprep.subr.mxu0 0.0
    %2566 = vmatpush1.msra.mxu0 %v2401
    %2567 = vmatprep.subr.mxu0 0.0
    %2568 = vmatpush1.msra.mxu0 %v2400
    %2569 = vmatprep.subr.mxu0 0.0
    %2570 = vmatpush1.msra.mxu0 %v2399
    %2571 = vmatprep.subr.mxu0 0.0
    %2572 = vmatpush1.msra.mxu0 %v2398
    %2573 = vmatprep.subr.mxu0 0.0
    %2574 = vmatpush1.msra.mxu0 %v2397
    %2575 = vmatprep.subr.mxu0 0.0
    %2576 = vmatpush1.msra.mxu0 %v2396
    %2577 = vmatprep.subr.mxu0 0.0
    %2578 = vmatpush1.msra.mxu0 %v2395
    %2579 = vmatprep.subr.mxu0 0.0
    %2580 = vmatpush1.msra.mxu0 %v2394
    %2581 = vmatprep.subr.mxu0 0.0
    %2582 = vmatpush1.msra.mxu0 %v2393
    %2583 = vmatprep.subr.mxu0 0.0
    %2584 = vmatpush1.msra.mxu0 %v2392
    %2585 = vmatprep.subr.mxu0 0.0
    %2586 = vmatpush2.msra.mxu0 0.0
    %2587 = vmatprep.subr.mxu0 0.0
    %2588 = vmatpush2.msra.mxu0 0.0
    %2589 = vmatprep.subr.mxu0 0.0
    %2590 = vmatpush2.msra.mxu0 0.0
    %2591 = vmatprep.subr.mxu0 0.0
    %2592 = vmatpush2.msra.mxu0 0.0
    %2593 = vmatprep.subr.mxu0 0.0
    %2594 = vmatpush2.msra.mxu0 0.0
    %2595 = vmatprep.subr.mxu0 0.0
    %2596 = vmatpush2.msra.mxu0 0.0
    %2597 = vmatprep.subr.mxu0 0.0
    %2598 = vmatpush2.msra.mxu0 0.0
    %2599 = vmatprep.subr.mxu0 0.0
    %2600 = vmatpush2.msra.mxu0 0.0
    %2601 = vmatprep.subr.mxu0 0.0
    %2602 = vmatpush2.msra.mxu0 0.0
    %2603 = vmatprep.subr.mxu0 0.0
    %2604 = vmatpush2.msra.mxu0 0.0
    %2605 = vmatprep.subr.mxu0 0.0
    %2606 = vmatpush2.msra.mxu0 0.0
    %2607 = vmatprep.subr.mxu0 0.0
    %2608 = vmatpush2.msra.mxu0 0.0
    %2609 = vmatprep.subr.mxu0 0.0
    %2610 = vmatpush2.msra.mxu0 0.0
    %2611 = vmatprep.subr.mxu0 0.0
    %2612 = vmatpush2.msra.mxu0 0.0
    %2613 = vmatprep.subr.mxu0 0.0
    %2614 = vmatpush2.msra.mxu0 0.0
    %2615 = vmatprep.subr.mxu0 0.0
    %2616 = vmatpush2.msra.mxu0 0.0
    %2617 = vmatprep.mubr.f32.mxu0 0.0
    %2618 = vmatmul.mubr.f32.gmra.mxu0 %v2475
    %v2619 = vpop.f32.mrf.mxu0
    %v2620 = vadd.f32 0.0, %v2619
    %v2621 = vpop.f32.mrf.mxu0
    %2622 = vmatprep.mubr.f32.mxu0 0.0
    %2623 = vmatmul.mubr.f32.gmra.mxu0 %v2480
    %v2624 = vpop.f32.mrf.mxu0
    %v2625 = vadd.f32 0.0, %v2624
    %v2626 = vpop.f32.mrf.mxu0
    %2627 = vmatprep.mubr.f32.mxu0 0.0
    %2628 = vmatmul.mubr.f32.gmra.mxu0 %v2485
    %v2629 = vpop.f32.mrf.mxu0
    %v2630 = vadd.f32 0.0, %v2629
    %v2631 = vpop.f32.mrf.mxu0
    %2632 = vmatprep.mubr.f32.mxu0 0.0
    %2633 = vmatmul.mubr.f32.gmra.mxu0 %v2490
    %v2634 = vpop.f32.mrf.mxu0
    %v2635 = vadd.f32 0.0, %v2634
    %v2636 = vpop.f32.mrf.mxu0
    %2637 = vmatprep.mubr.f32.mxu0 0.0
    %2638 = vmatmul.mubr.f32.gmra.mxu0 %v2495
    %v2639 = vpop.f32.mrf.mxu0
    %v2640 = vadd.f32 0.0, %v2639
    %v2641 = vpop.f32.mrf.mxu0
    %2642 = vmatprep.mubr.f32.mxu0 0.0
    %2643 = vmatmul.mubr.f32.gmra.mxu0 %v2500
    %v2644 = vpop.f32.mrf.mxu0
    %v2645 = vadd.f32 0.0, %v2644
    %v2646 = vpop.f32.mrf.mxu0
    %2647 = vmatprep.mubr.f32.mxu0 0.0
    %2648 = vmatmul.mubr.f32.gmra.mxu0 %v2505
    %v2649 = vpop.f32.mrf.mxu0
    %v2650 = vadd.f32 0.0, %v2649
    %v2651 = vpop.f32.mrf.mxu0
    %2652 = vmatprep.mubr.f32.mxu0 0.0
    %2653 = vmatmul.mubr.f32.gmra.mxu0 %v2510
    %v2654 = vpop.f32.mrf.mxu0
    %v2655 = vadd.f32 0.0, %v2654
    %v2656 = vpop.f32.mrf.mxu0
    %2657 = vmatprep.mubr.f32.mxu0 0.0
    %2658 = vmatmul.mubr.f32.gmra.mxu0 %v2515
    %v2659 = vpop.f32.mrf.mxu0
    %v2660 = vadd.f32 0.0, %v2659
    %v2661 = vpop.f32.mrf.mxu0
    %2662 = vmatprep.mubr.f32.mxu0 0.0
    %2663 = vmatmul.mubr.f32.gmra.mxu0 %v2520
    %v2664 = vpop.f32.mrf.mxu0
    %v2665 = vadd.f32 0.0, %v2664
    %v2666 = vpop.f32.mrf.mxu0
    %2667 = vmatprep.mubr.f32.mxu0 0.0
    %2668 = vmatmul.mubr.f32.gmra.mxu0 %v2525
    %v2669 = vpop.f32.mrf.mxu0
    %v2670 = vadd.f32 0.0, %v2669
    %v2671 = vpop.f32.mrf.mxu0
    %2672 = vmatprep.mubr.f32.mxu0 0.0
    %2673 = vmatmul.mubr.f32.gmra.mxu0 %v2530
    %v2674 = vpop.f32.mrf.mxu0
    %v2675 = vadd.f32 0.0, %v2674
    %v2676 = vpop.f32.mrf.mxu0
    %2677 = vmatprep.mubr.f32.mxu0 0.0
    %2678 = vmatmul.mubr.f32.gmra.mxu0 %v2535
    %v2679 = vpop.f32.mrf.mxu0
    %v2680 = vadd.f32 0.0, %v2679
    %v2681 = vpop.f32.mrf.mxu0
    %2682 = vmatprep.mubr.f32.mxu0 0.0
    %2683 = vmatmul.mubr.f32.gmra.mxu0 %v2540
    %v2684 = vpop.f32.mrf.mxu0
    %v2685 = vadd.f32 0.0, %v2684
    %v2686 = vpop.f32.mrf.mxu0
    %2687 = vmatprep.mubr.f32.mxu0 0.0
    %2688 = vmatmul.mubr.f32.gmra.mxu0 %v2545
    %v2689 = vpop.f32.mrf.mxu0
    %v2690 = vadd.f32 0.0, %v2689
    %v2691 = vpop.f32.mrf.mxu0
    %2692 = vmatprep.mubr.f32.mxu0 0.0
    %2693 = vmatmul.mubr.f32.gmra.mxu0 %v2550
    %v2694 = vpop.f32.mrf.mxu0
    %v2695 = vadd.f32 0.0, %v2694
    %v2696 = vpop.f32.mrf.mxu0
    %2697 = vdwg.mxu0
    %v2698 = vmul.f32 %v2392, 1.5
    %v2699 = vmul.f32 %v2393, 1.5
    %v2700 = vmul.f32 %v2394, 1.5
    %v2701 = vmul.f32 %v2395, 1.5
    %v2702 = vmul.f32 %v2396, 1.5
    %v2703 = vmul.f32 %v2397, 1.5
    %v2704 = vmul.f32 %v2398, 1.5
    %v2705 = vmul.f32 %v2399, 1.5
    %v2706 = vmul.f32 %v2400, 1.5
    %v2707 = vmul.f32 %v2401, 1.5
    %v2708 = vmul.f32 %v2402, 1.5
    %v2709 = vmul.f32 %v2403, 1.5
    %v2710 = vmul.f32 %v2404, 1.5
    %v2711 = vmul.f32 %v2405, 1.5
    %v2712 = vmul.f32 %v2406, 1.5
    %v2713 = vmul.f32 %v2407, 1.5
    %2714 = vmatprep.subr.mxu0 0.0
    %2715 = vmatpush1.msra.mxu0 %v958
    %2716 = vmatprep.subr.mxu0 0.0
    %2717 = vmatpush1.msra.mxu0 %v957
    %2718 = vmatprep.subr.mxu0 0.0
    %2719 = vmatpush1.msra.mxu0 %v956
    %2720 = vmatprep.subr.mxu0 0.0
    %2721 = vmatpush1.msra.mxu0 %v955
    %2722 = vmatprep.subr.mxu0 0.0
    %2723 = vmatpush1.msra.mxu0 %v954
    %2724 = vmatprep.subr.mxu0 0.0
    %2725 = vmatpush1.msra.mxu0 %v953
    %2726 = vmatprep.subr.mxu0 0.0
    %2727 = vmatpush1.msra.mxu0 %v952
    %2728 = vmatprep.subr.mxu0 0.0
    %2729 = vmatpush1.msra.mxu0 %v951
    %2730 = vmatprep.subr.mxu0 0.0
    %2731 = vmatpush1.msra.mxu0 %v950
    %2732 = vmatprep.subr.mxu0 0.0
    %2733 = vmatpush1.msra.mxu0 %v949
    %2734 = vmatprep.subr.mxu0 0.0
    %2735 = vmatpush1.msra.mxu0 %v948
    %2736 = vmatprep.subr.mxu0 0.0
    %2737 = vmatpush1.msra.mxu0 %v947
    %2738 = vmatprep.subr.mxu0 0.0
    %2739 = vmatpush1.msra.mxu0 %v946
    %2740 = vmatprep.subr.mxu0 0.0
    %2741 = vmatpush1.msra.mxu0 %v945
    %2742 = vmatprep.subr.mxu0 0.0
    %2743 = vmatpush1.msra.mxu0 %v944
    %2744 = vmatprep.subr.mxu0 0.0
    %2745 = vmatpush1.msra.mxu0 %v943
    %2746 = vmatprep.subr.mxu0 0.0
    %2747 = vmatpush2.msra.mxu0 0.0
    %2748 = vmatprep.subr.mxu0 0.0
    %2749 = vmatpush2.msra.mxu0 0.0
    %2750 = vmatprep.subr.mxu0 0.0
    %2751 = vmatpush2.msra.mxu0 0.0
    %2752 = vmatprep.subr.mxu0 0.0
    %2753 = vmatpush2.msra.mxu0 0.0
    %2754 = vmatprep.subr.mxu0 0.0
    %2755 = vmatpush2.msra.mxu0 0.0
    %2756 = vmatprep.subr.mxu0 0.0
    %2757 = vmatpush2.msra.mxu0 0.0
    %2758 = vmatprep.subr.mxu0 0.0
    %2759 = vmatpush2.msra.mxu0 0.0
    %2760 = vmatprep.subr.mxu0 0.0
    %2761 = vmatpush2.msra.mxu0 0.0
    %2762 = vmatprep.subr.mxu0 0.0
    %2763 = vmatpush2.msra.mxu0 0.0
    %2764 = vmatprep.subr.mxu0 0.0
    %2765 = vmatpush2.msra.mxu0 0.0
    %2766 = vmatprep.subr.mxu0 0.0
    %2767 = vmatpush2.msra.mxu0 0.0
    %2768 = vmatprep.subr.mxu0 0.0
    %2769 = vmatpush2.msra.mxu0 0.0
    %2770 = vmatprep.subr.mxu0 0.0
    %2771 = vmatpush2.msra.mxu0 0.0
    %2772 = vmatprep.subr.mxu0 0.0
    %2773 = vmatpush2.msra.mxu0 0.0
    %2774 = vmatprep.subr.mxu0 0.0
    %2775 = vmatpush2.msra.mxu0 0.0
    %2776 = vmatprep.subr.mxu0 0.0
    %2777 = vmatpush2.msra.mxu0 0.0
    %2778 = vmatprep.mubr.f32.mxu0 0.0
    %2779 = vmatmul.mubr.f32.gmra.mxu0 %v2620
    %v2780 = vpop.f32.mrf.mxu0
    %v2781 = vadd.f32 0.0, %v2780
    %v2782 = vpop.f32.mrf.mxu0
    %2783 = vmatprep.mubr.f32.mxu0 0.0
    %2784 = vmatmul.mubr.f32.gmra.mxu0 %v2625
    %v2785 = vpop.f32.mrf.mxu0
    %v2786 = vadd.f32 0.0, %v2785
    %v2787 = vpop.f32.mrf.mxu0
    %2788 = vmatprep.mubr.f32.mxu0 0.0
    %2789 = vmatmul.mubr.f32.gmra.mxu0 %v2630
    %v2790 = vpop.f32.mrf.mxu0
    %v2791 = vadd.f32 0.0, %v2790
    %v2792 = vpop.f32.mrf.mxu0
    %2793 = vmatprep.mubr.f32.mxu0 0.0
    %2794 = vmatmul.mubr.f32.gmra.mxu0 %v2635
    %v2795 = vpop.f32.mrf.mxu0
    %v2796 = vadd.f32 0.0, %v2795
    %v2797 = vpop.f32.mrf.mxu0
    %2798 = vmatprep.mubr.f32.mxu0 0.0
    %2799 = vmatmul.mubr.f32.gmra.mxu0 %v2640
    %v2800 = vpop.f32.mrf.mxu0
    %v2801 = vadd.f32 0.0, %v2800
    %v2802 = vpop.f32.mrf.mxu0
    %2803 = vmatprep.mubr.f32.mxu0 0.0
    %2804 = vmatmul.mubr.f32.gmra.mxu0 %v2645
    %v2805 = vpop.f32.mrf.mxu0
    %v2806 = vadd.f32 0.0, %v2805
    %v2807 = vpop.f32.mrf.mxu0
    %2808 = vmatprep.mubr.f32.mxu0 0.0
    %2809 = vmatmul.mubr.f32.gmra.mxu0 %v2650
    %v2810 = vpop.f32.mrf.mxu0
    %v2811 = vadd.f32 0.0, %v2810
    %v2812 = vpop.f32.mrf.mxu0
    %2813 = vmatprep.mubr.f32.mxu0 0.0
    %2814 = vmatmul.mubr.f32.gmra.mxu0 %v2655
    %v2815 = vpop.f32.mrf.mxu0
    %v2816 = vadd.f32 0.0, %v2815
    %v2817 = vpop.f32.mrf.mxu0
    %2818 = vmatprep.mubr.f32.mxu0 0.0
    %2819 = vmatmul.mubr.f32.gmra.mxu0 %v2660
    %v2820 = vpop.f32.mrf.mxu0
    %v2821 = vadd.f32 0.0, %v2820
    %v2822 = vpop.f32.mrf.mxu0
    %2823 = vmatprep.mubr.f32.mxu0 0.0
    %2824 = vmatmul.mubr.f32.gmra.mxu0 %v2665
    %v2825 = vpop.f32.mrf.mxu0
    %v2826 = vadd.f32 0.0, %v2825
    %v2827 = vpop.f32.mrf.mxu0
    %2828 = vmatprep.mubr.f32.mxu0 0.0
    %2829 = vmatmul.mubr.f32.gmra.mxu0 %v2670
    %v2830 = vpop.f32.mrf.mxu0
    %v2831 = vadd.f32 0.0, %v2830
    %v2832 = vpop.f32.mrf.mxu0
    %2833 = vmatprep.mubr.f32.mxu0 0.0
    %2834 = vmatmul.mubr.f32.gmra.mxu0 %v2675
    %v2835 = vpop.f32.mrf.mxu0
    %v2836 = vadd.f32 0.0, %v2835
    %v2837 = vpop.f32.mrf.mxu0
    %2838 = vmatprep.mubr.f32.mxu0 0.0
    %2839 = vmatmul.mubr.f32.gmra.mxu0 %v2680
    %v2840 = vpop.f32.mrf.mxu0
    %v2841 = vadd.f32 0.0, %v2840
    %v2842 = vpop.f32.mrf.mxu0
    %2843 = vmatprep.mubr.f32.mxu0 0.0
    %2844 = vmatmul.mubr.f32.gmra.mxu0 %v2685
    %v2845 = vpop.f32.mrf.mxu0
    %v2846 = vadd.f32 0.0, %v2845
    %v2847 = vpop.f32.mrf.mxu0
    %2848 = vmatprep.mubr.f32.mxu0 0.0
    %2849 = vmatmul.mubr.f32.gmra.mxu0 %v2690
    %v2850 = vpop.f32.mrf.mxu0
    %v2851 = vadd.f32 0.0, %v2850
    %v2852 = vpop.f32.mrf.mxu0
    %2853 = vmatprep.mubr.f32.mxu0 0.0
    %2854 = vmatmul.mubr.f32.gmra.mxu0 %v2695
    %v2855 = vpop.f32.mrf.mxu0
    %v2856 = vadd.f32 0.0, %v2855
    %v2857 = vpop.f32.mrf.mxu0
    %2858 = vdwg.mxu0
    %v2859 = vmul.f32 %v2781, 0.5
    %v2860 = vmul.f32 %v2786, 0.5
    %v2861 = vmul.f32 %v2791, 0.5
    %v2862 = vmul.f32 %v2796, 0.5
    %v2863 = vmul.f32 %v2801, 0.5
    %v2864 = vmul.f32 %v2806, 0.5
    %v2865 = vmul.f32 %v2811, 0.5
    %v2866 = vmul.f32 %v2816, 0.5
    %v2867 = vmul.f32 %v2821, 0.5
    %v2868 = vmul.f32 %v2826, 0.5
    %v2869 = vmul.f32 %v2831, 0.5
    %v2870 = vmul.f32 %v2836, 0.5
    %v2871 = vmul.f32 %v2841, 0.5
    %v2872 = vmul.f32 %v2846, 0.5
    %v2873 = vmul.f32 %v2851, 0.5
    %v2874 = vmul.f32 %v2856, 0.5
    %v2875 = vsub.f32 %v2698, %v2859
    %v2876 = vsub.f32 %v2699, %v2860
    %v2877 = vsub.f32 %v2700, %v2861
    %v2878 = vsub.f32 %v2701, %v2862
    %v2879 = vsub.f32 %v2702, %v2863
    %v2880 = vsub.f32 %v2703, %v2864
    %v2881 = vsub.f32 %v2704, %v2865
    %v2882 = vsub.f32 %v2705, %v2866
    %v2883 = vsub.f32 %v2706, %v2867
    %v2884 = vsub.f32 %v2707, %v2868
    %v2885 = vsub.f32 %v2708, %v2869
    %v2886 = vsub.f32 %v2709, %v2870
    %v2887 = vsub.f32 %v2710, %v2871
    %v2888 = vsub.f32 %v2711, %v2872
    %v2889 = vsub.f32 %v2712, %v2873
    %v2890 = vsub.f32 %v2713, %v2874
    %2891 = vmatprep.subr.mxu0 0.0
    %2892 = vmatpush1.msra.mxu0 %v2890
    %2893 = vmatprep.subr.mxu0 0.0
    %2894 = vmatpush1.msra.mxu0 %v2889
    %2895 = vmatprep.subr.mxu0 0.0
    %2896 = vmatpush1.msra.mxu0 %v2888
    %2897 = vmatprep.subr.mxu0 0.0
    %2898 = vmatpush1.msra.mxu0 %v2887
    %2899 = vmatprep.subr.mxu0 0.0
    %2900 = vmatpush1.msra.mxu0 %v2886
    %2901 = vmatprep.subr.mxu0 0.0
    %2902 = vmatpush1.msra.mxu0 %v2885
    %2903 = vmatprep.subr.mxu0 0.0
    %2904 = vmatpush1.msra.mxu0 %v2884
    %2905 = vmatprep.subr.mxu0 0.0
    %2906 = vmatpush1.msra.mxu0 %v2883
    %2907 = vmatprep.subr.mxu0 0.0
    %2908 = vmatpush1.msra.mxu0 %v2882
    %2909 = vmatprep.subr.mxu0 0.0
    %2910 = vmatpush1.msra.mxu0 %v2881
    %2911 = vmatprep.subr.mxu0 0.0
    %2912 = vmatpush1.msra.mxu0 %v2880
    %2913 = vmatprep.subr.mxu0 0.0
    %2914 = vmatpush1.msra.mxu0 %v2879
    %2915 = vmatprep.subr.mxu0 0.0
    %2916 = vmatpush1.msra.mxu0 %v2878
    %2917 = vmatprep.subr.mxu0 0.0
    %2918 = vmatpush1.msra.mxu0 %v2877
    %2919 = vmatprep.subr.mxu0 0.0
    %2920 = vmatpush1.msra.mxu0 %v2876
    %2921 = vmatprep.subr.mxu0 0.0
    %2922 = vmatpush1.msra.mxu0 %v2875
    %2923 = vmatprep.subr.mxu0 0.0
    %2924 = vmatpush2.msra.mxu0 0.0
    %2925 = vmatprep.subr.mxu0 0.0
    %2926 = vmatpush2.msra.mxu0 0.0
    %2927 = vmatprep.subr.mxu0 0.0
    %2928 = vmatpush2.msra.mxu0 0.0
    %2929 = vmatprep.subr.mxu0 0.0
    %2930 = vmatpush2.msra.mxu0 0.0
    %2931 = vmatprep.subr.mxu0 0.0
    %2932 = vmatpush2.msra.mxu0 0.0
    %2933 = vmatprep.subr.mxu0 0.0
    %2934 = vmatpush2.msra.mxu0 0.0
    %2935 = vmatprep.subr.mxu0 0.0
    %2936 = vmatpush2.msra.mxu0 0.0
    %2937 = vmatprep.subr.mxu0 0.0
    %2938 = vmatpush2.msra.mxu0 0.0
    %2939 = vmatprep.subr.mxu0 0.0
    %2940 = vmatpush2.msra.mxu0 0.0
    %2941 = vmatprep.subr.mxu0 0.0
    %2942 = vmatpush2.msra.mxu0 0.0
    %2943 = vmatprep.subr.mxu0 0.0
    %2944 = vmatpush2.msra.mxu0 0.0
    %2945 = vmatprep.subr.mxu0 0.0
    %2946 = vmatpush2.msra.mxu0 0.0
    %2947 = vmatprep.subr.mxu0 0.0
    %2948 = vmatpush2.msra.mxu0 0.0
    %2949 = vmatprep.subr.mxu0 0.0
    %2950 = vmatpush2.msra.mxu0 0.0
    %2951 = vmatprep.subr.mxu0 0.0
    %2952 = vmatpush2.msra.mxu0 0.0
    %2953 = vmatprep.subr.mxu0 0.0
    %2954 = vmatpush2.msra.mxu0 0.0
    %2955 = vmatprep.mubr.f32.mxu0 0.0
    %2956 = vmatmul.mubr.f32.gmra.mxu0 %v2875
    %v2957 = vpop.f32.mrf.mxu0
    %v2958 = vadd.f32 0.0, %v2957
    %v2959 = vpop.f32.mrf.mxu0
    %2960 = vmatprep.mubr.f32.mxu0 0.0
    %2961 = vmatmul.mubr.f32.gmra.mxu0 %v2876
    %v2962 = vpop.f32.mrf.mxu0
    %v2963 = vadd.f32 0.0, %v2962
    %v2964 = vpop.f32.mrf.mxu0
    %2965 = vmatprep.mubr.f32.mxu0 0.0
    %2966 = vmatmul.mubr.f32.gmra.mxu0 %v2877
    %v2967 = vpop.f32.mrf.mxu0
    %v2968 = vadd.f32 0.0, %v2967
    %v2969 = vpop.f32.mrf.mxu0
    %2970 = vmatprep.mubr.f32.mxu0 0.0
    %2971 = vmatmul.mubr.f32.gmra.mxu0 %v2878
    %v2972 = vpop.f32.mrf.mxu0
    %v2973 = vadd.f32 0.0, %v2972
    %v2974 = vpop.f32.mrf.mxu0
    %2975 = vmatprep.mubr.f32.mxu0 0.0
    %2976 = vmatmul.mubr.f32.gmra.mxu0 %v2879
    %v2977 = vpop.f32.mrf.mxu0
    %v2978 = vadd.f32 0.0, %v2977
    %v2979 = vpop.f32.mrf.mxu0
    %2980 = vmatprep.mubr.f32.mxu0 0.0
    %2981 = vmatmul.mubr.f32.gmra.mxu0 %v2880
    %v2982 = vpop.f32.mrf.mxu0
    %v2983 = vadd.f32 0.0, %v2982
    %v2984 = vpop.f32.mrf.mxu0
    %2985 = vmatprep.mubr.f32.mxu0 0.0
    %2986 = vmatmul.mubr.f32.gmra.mxu0 %v2881
    %v2987 = vpop.f32.mrf.mxu0
    %v2988 = vadd.f32 0.0, %v2987
    %v2989 = vpop.f32.mrf.mxu0
    %2990 = vmatprep.mubr.f32.mxu0 0.0
    %2991 = vmatmul.mubr.f32.gmra.mxu0 %v2882
    %v2992 = vpop.f32.mrf.mxu0
    %v2993 = vadd.f32 0.0, %v2992
    %v2994 = vpop.f32.mrf.mxu0
    %2995 = vmatprep.mubr.f32.mxu0 0.0
    %2996 = vmatmul.mubr.f32.gmra.mxu0 %v2883
    %v2997 = vpop.f32.mrf.mxu0
    %v2998 = vadd.f32 0.0, %v2997
    %v2999 = vpop.f32.mrf.mxu0
    %3000 = vmatprep.mubr.f32.mxu0 0.0
    %3001 = vmatmul.mubr.f32.gmra.mxu0 %v2884
    %v3002 = vpop.f32.mrf.mxu0
    %v3003 = vadd.f32 0.0, %v3002
    %v3004 = vpop.f32.mrf.mxu0
    %3005 = vmatprep.mubr.f32.mxu0 0.0
    %3006 = vmatmul.mubr.f32.gmra.mxu0 %v2885
    %v3007 = vpop.f32.mrf.mxu0
    %v3008 = vadd.f32 0.0, %v3007
    %v3009 = vpop.f32.mrf.mxu0
    %3010 = vmatprep.mubr.f32.mxu0 0.0
    %3011 = vmatmul.mubr.f32.gmra.mxu0 %v2886
    %v3012 = vpop.f32.mrf.mxu0
    %v3013 = vadd.f32 0.0, %v3012
    %v3014 = vpop.f32.mrf.mxu0
    %3015 = vmatprep.mubr.f32.mxu0 0.0
    %3016 = vmatmul.mubr.f32.gmra.mxu0 %v2887
    %v3017 = vpop.f32.mrf.mxu0
    %v3018 = vadd.f32 0.0, %v3017
    %v3019 = vpop.f32.mrf.mxu0
    %3020 = vmatprep.mubr.f32.mxu0 0.0
    %3021 = vmatmul.mubr.f32.gmra.mxu0 %v2888
    %v3022 = vpop.f32.mrf.mxu0
    %v3023 = vadd.f32 0.0, %v3022
    %v3024 = vpop.f32.mrf.mxu0
    %3025 = vmatprep.mubr.f32.mxu0 0.0
    %3026 = vmatmul.mubr.f32.gmra.mxu0 %v2889
    %v3027 = vpop.f32.mrf.mxu0
    %v3028 = vadd.f32 0.0, %v3027
    %v3029 = vpop.f32.mrf.mxu0
    %3030 = vmatprep.mubr.f32.mxu0 0.0
    %3031 = vmatmul.mubr.f32.gmra.mxu0 %v2890
    %v3032 = vpop.f32.mrf.mxu0
    %v3033 = vadd.f32 0.0, %v3032
    %v3034 = vpop.f32.mrf.mxu0
    %3035 = vdwg.mxu0
    %3036 = vmatprep.subr.mxu0 0.0
    %3037 = vmatpush1.msra.mxu0 %v2890
    %3038 = vmatprep.subr.mxu0 0.0
    %3039 = vmatpush1.msra.mxu0 %v2889
    %3040 = vmatprep.subr.mxu0 0.0
    %3041 = vmatpush1.msra.mxu0 %v2888
    %3042 = vmatprep.subr.mxu0 0.0
    %3043 = vmatpush1.msra.mxu0 %v2887
    %3044 = vmatprep.subr.mxu0 0.0
    %3045 = vmatpush1.msra.mxu0 %v2886
    %3046 = vmatprep.subr.mxu0 0.0
    %3047 = vmatpush1.msra.mxu0 %v2885
    %3048 = vmatprep.subr.mxu0 0.0
    %3049 = vmatpush1.msra.mxu0 %v2884
    %3050 = vmatprep.subr.mxu0 0.0
    %3051 = vmatpush1.msra.mxu0 %v2883
    %3052 = vmatprep.subr.mxu0 0.0
    %3053 = vmatpush1.msra.mxu0 %v2882
    %3054 = vmatprep.subr.mxu0 0.0
    %3055 = vmatpush1.msra.mxu0 %v2881
    %3056 = vmatprep.subr.mxu0 0.0
    %3057 = vmatpush1.msra.mxu0 %v2880
    %3058 = vmatprep.subr.mxu0 0.0
    %3059 = vmatpush1.msra.mxu0 %v2879
    %3060 = vmatprep.subr.mxu0 0.0
    %3061 = vmatpush1.msra.mxu0 %v2878
    %3062 = vmatprep.subr.mxu0 0.0
    %3063 = vmatpush1.msra.mxu0 %v2877
    %3064 = vmatprep.subr.mxu0 0.0
    %3065 = vmatpush1.msra.mxu0 %v2876
    %3066 = vmatprep.subr.mxu0 0.0
    %3067 = vmatpush1.msra.mxu0 %v2875
    %3068 = vmatprep.subr.mxu0 0.0
    %3069 = vmatpush2.msra.mxu0 0.0
    %3070 = vmatprep.subr.mxu0 0.0
    %3071 = vmatpush2.msra.mxu0 0.0
    %3072 = vmatprep.subr.mxu0 0.0
    %3073 = vmatpush2.msra.mxu0 0.0
    %3074 = vmatprep.subr.mxu0 0.0
    %3075 = vmatpush2.msra.mxu0 0.0
    %3076 = vmatprep.subr.mxu0 0.0
    %3077 = vmatpush2.msra.mxu0 0.0
    %3078 = vmatprep.subr.mxu0 0.0
    %3079 = vmatpush2.msra.mxu0 0.0
    %3080 = vmatprep.subr.mxu0 0.0
    %3081 = vmatpush2.msra.mxu0 0.0
    %3082 = vmatprep.subr.mxu0 0.0
    %3083 = vmatpush2.msra.mxu0 0.0
    %3084 = vmatprep.subr.mxu0 0.0
    %3085 = vmatpush2.msra.mxu0 0.0
    %3086 = vmatprep.subr.mxu0 0.0
    %3087 = vmatpush2.msra.mxu0 0.0
    %3088 = vmatprep.subr.mxu0 0.0
    %3089 = vmatpush2.msra.mxu0 0.0
    %3090 = vmatprep.subr.mxu0 0.0
    %3091 = vmatpush2.msra.mxu0 0.0
    %3092 = vmatprep.subr.mxu0 0.0
    %3093 = vmatpush2.msra.mxu0 0.0
    %3094 = vmatprep.subr.mxu0 0.0
    %3095 = vmatpush2.msra.mxu0 0.0
    %3096 = vmatprep.subr.mxu0 0.0
    %3097 = vmatpush2.msra.mxu0 0.0
    %3098 = vmatprep.subr.mxu0 0.0
    %3099 = vmatpush2.msra.mxu0 0.0
    %3100 = vmatprep.mubr.f32.mxu0 0.0
    %3101 = vmatmul.mubr.f32.gmra.mxu0 %v2958
    %v3102 = vpop.f32.mrf.mxu0
    %v3103 = vadd.f32 0.0, %v3102
    %v3104 = vpop.f32.mrf.mxu0
    %3105 = vmatprep.mubr.f32.mxu0 0.0
    %3106 = vmatmul.mubr.f32.gmra.mxu0 %v2963
    %v3107 = vpop.f32.mrf.mxu0
    %v3108 = vadd.f32 0.0, %v3107
    %v3109 = vpop.f32.mrf.mxu0
    %3110 = vmatprep.mubr.f32.mxu0 0.0
    %3111 = vmatmul.mubr.f32.gmra.mxu0 %v2968
    %v3112 = vpop.f32.mrf.mxu0
    %v3113 = vadd.f32 0.0, %v3112
    %v3114 = vpop.f32.mrf.mxu0
    %3115 = vmatprep.mubr.f32.mxu0 0.0
    %3116 = vmatmul.mubr.f32.gmra.mxu0 %v2973
    %v3117 = vpop.f32.mrf.mxu0
    %v3118 = vadd.f32 0.0, %v3117
    %v3119 = vpop.f32.mrf.mxu0
    %3120 = vmatprep.mubr.f32.mxu0 0.0
    %3121 = vmatmul.mubr.f32.gmra.mxu0 %v2978
    %v3122 = vpop.f32.mrf.mxu0
    %v3123 = vadd.f32 0.0, %v3122
    %v3124 = vpop.f32.mrf.mxu0
    %3125 = vmatprep.mubr.f32.mxu0 0.0
    %3126 = vmatmul.mubr.f32.gmra.mxu0 %v2983
    %v3127 = vpop.f32.mrf.mxu0
    %v3128 = vadd.f32 0.0, %v3127
    %v3129 = vpop.f32.mrf.mxu0
    %3130 = vmatprep.mubr.f32.mxu0 0.0
    %3131 = vmatmul.mubr.f32.gmra.mxu0 %v2988
    %v3132 = vpop.f32.mrf.mxu0
    %v3133 = vadd.f32 0.0, %v3132
    %v3134 = vpop.f32.mrf.mxu0
    %3135 = vmatprep.mubr.f32.mxu0 0.0
    %3136 = vmatmul.mubr.f32.gmra.mxu0 %v2993
    %v3137 = vpop.f32.mrf.mxu0
    %v3138 = vadd.f32 0.0, %v3137
    %v3139 = vpop.f32.mrf.mxu0
    %3140 = vmatprep.mubr.f32.mxu0 0.0
    %3141 = vmatmul.mubr.f32.gmra.mxu0 %v2998
    %v3142 = vpop.f32.mrf.mxu0
    %v3143 = vadd.f32 0.0, %v3142
    %v3144 = vpop.f32.mrf.mxu0
    %3145 = vmatprep.mubr.f32.mxu0 0.0
    %3146 = vmatmul.mubr.f32.gmra.mxu0 %v3003
    %v3147 = vpop.f32.mrf.mxu0
    %v3148 = vadd.f32 0.0, %v3147
    %v3149 = vpop.f32.mrf.mxu0
    %3150 = vmatprep.mubr.f32.mxu0 0.0
    %3151 = vmatmul.mubr.f32.gmra.mxu0 %v3008
    %v3152 = vpop.f32.mrf.mxu0
    %v3153 = vadd.f32 0.0, %v3152
    %v3154 = vpop.f32.mrf.mxu0
    %3155 = vmatprep.mubr.f32.mxu0 0.0
    %3156 = vmatmul.mubr.f32.gmra.mxu0 %v3013
    %v3157 = vpop.f32.mrf.mxu0
    %v3158 = vadd.f32 0.0, %v3157
    %v3159 = vpop.f32.mrf.mxu0
    %3160 = vmatprep.mubr.f32.mxu0 0.0
    %3161 = vmatmul.mubr.f32.gmra.mxu0 %v3018
    %v3162 = vpop.f32.mrf.mxu0
    %v3163 = vadd.f32 0.0, %v3162
    %v3164 = vpop.f32.mrf.mxu0
    %3165 = vmatprep.mubr.f32.mxu0 0.0
    %3166 = vmatmul.mubr.f32.gmra.mxu0 %v3023
    %v3167 = vpop.f32.mrf.mxu0
    %v3168 = vadd.f32 0.0, %v3167
    %v3169 = vpop.f32.mrf.mxu0
    %3170 = vmatprep.mubr.f32.mxu0 0.0
    %3171 = vmatmul.mubr.f32.gmra.mxu0 %v3028
    %v3172 = vpop.f32.mrf.mxu0
    %v3173 = vadd.f32 0.0, %v3172
    %v3174 = vpop.f32.mrf.mxu0
    %3175 = vmatprep.mubr.f32.mxu0 0.0
    %3176 = vmatmul.mubr.f32.gmra.mxu0 %v3033
    %v3177 = vpop.f32.mrf.mxu0
    %v3178 = vadd.f32 0.0, %v3177
    %v3179 = vpop.f32.mrf.mxu0
    %3180 = vdwg.mxu0
    %v3181 = vmul.f32 %v2875, 1.5
    %v3182 = vmul.f32 %v2876, 1.5
    %v3183 = vmul.f32 %v2877, 1.5
    %v3184 = vmul.f32 %v2878, 1.5
    %v3185 = vmul.f32 %v2879, 1.5
    %v3186 = vmul.f32 %v2880, 1.5
    %v3187 = vmul.f32 %v2881, 1.5
    %v3188 = vmul.f32 %v2882, 1.5
    %v3189 = vmul.f32 %v2883, 1.5
    %v3190 = vmul.f32 %v2884, 1.5
    %v3191 = vmul.f32 %v2885, 1.5
    %v3192 = vmul.f32 %v2886, 1.5
    %v3193 = vmul.f32 %v2887, 1.5
    %v3194 = vmul.f32 %v2888, 1.5
    %v3195 = vmul.f32 %v2889, 1.5
    %v3196 = vmul.f32 %v2890, 1.5
    %3197 = vmatprep.subr.mxu0 0.0
    %3198 = vmatpush1.msra.mxu0 %v958
    %3199 = vmatprep.subr.mxu0 0.0
    %3200 = vmatpush1.msra.mxu0 %v957
    %3201 = vmatprep.subr.mxu0 0.0
    %3202 = vmatpush1.msra.mxu0 %v956
    %3203 = vmatprep.subr.mxu0 0.0
    %3204 = vmatpush1.msra.mxu0 %v955
    %3205 = vmatprep.subr.mxu0 0.0
    %3206 = vmatpush1.msra.mxu0 %v954
    %3207 = vmatprep.subr.mxu0 0.0
    %3208 = vmatpush1.msra.mxu0 %v953
    %3209 = vmatprep.subr.mxu0 0.0
    %3210 = vmatpush1.msra.mxu0 %v952
    %3211 = vmatprep.subr.mxu0 0.0
    %3212 = vmatpush1.msra.mxu0 %v951
    %3213 = vmatprep.subr.mxu0 0.0
    %3214 = vmatpush1.msra.mxu0 %v950
    %3215 = vmatprep.subr.mxu0 0.0
    %3216 = vmatpush1.msra.mxu0 %v949
    %3217 = vmatprep.subr.mxu0 0.0
    %3218 = vmatpush1.msra.mxu0 %v948
    %3219 = vmatprep.subr.mxu0 0.0
    %3220 = vmatpush1.msra.mxu0 %v947
    %3221 = vmatprep.subr.mxu0 0.0
    %3222 = vmatpush1.msra.mxu0 %v946
    %3223 = vmatprep.subr.mxu0 0.0
    %3224 = vmatpush1.msra.mxu0 %v945
    %3225 = vmatprep.subr.mxu0 0.0
    %3226 = vmatpush1.msra.mxu0 %v944
    %3227 = vmatprep.subr.mxu0 0.0
    %3228 = vmatpush1.msra.mxu0 %v943
    %3229 = vmatprep.subr.mxu0 0.0
    %3230 = vmatpush2.msra.mxu0 0.0
    %3231 = vmatprep.subr.mxu0 0.0
    %3232 = vmatpush2.msra.mxu0 0.0
    %3233 = vmatprep.subr.mxu0 0.0
    %3234 = vmatpush2.msra.mxu0 0.0
    %3235 = vmatprep.subr.mxu0 0.0
    %3236 = vmatpush2.msra.mxu0 0.0
    %3237 = vmatprep.subr.mxu0 0.0
    %3238 = vmatpush2.msra.mxu0 0.0
    %3239 = vmatprep.subr.mxu0 0.0
    %3240 = vmatpush2.msra.mxu0 0.0
    %3241 = vmatprep.subr.mxu0 0.0
    %3242 = vmatpush2.msra.mxu0 0.0
    %3243 = vmatprep.subr.mxu0 0.0
    %3244 = vmatpush2.msra.mxu0 0.0
    %3245 = vmatprep.subr.mxu0 0.0
    %3246 = vmatpush2.msra.mxu0 0.0
    %3247 = vmatprep.subr.mxu0 0.0
    %3248 = vmatpush2.msra.mxu0 0.0
    %3249 = vmatprep.subr.mxu0 0.0
    %3250 = vmatpush2.msra.mxu0 0.0
    %3251 = vmatprep.subr.mxu0 0.0
    %3252 = vmatpush2.msra.mxu0 0.0
    %3253 = vmatprep.subr.mxu0 0.0
    %3254 = vmatpush2.msra.mxu0 0.0
    %3255 = vmatprep.subr.mxu0 0.0
    %3256 = vmatpush2.msra.mxu0 0.0
    %3257 = vmatprep.subr.mxu0 0.0
    %3258 = vmatpush2.msra.mxu0 0.0
    %3259 = vmatprep.subr.mxu0 0.0
    %3260 = vmatpush2.msra.mxu0 0.0
    %3261 = vmatprep.mubr.f32.mxu0 0.0
    %3262 = vmatmul.mubr.f32.gmra.mxu0 %v3103
    %v3263 = vpop.f32.mrf.mxu0
    %v3264 = vadd.f32 0.0, %v3263
    %v3265 = vpop.f32.mrf.mxu0
    %3266 = vmatprep.mubr.f32.mxu0 0.0
    %3267 = vmatmul.mubr.f32.gmra.mxu0 %v3108
    %v3268 = vpop.f32.mrf.mxu0
    %v3269 = vadd.f32 0.0, %v3268
    %v3270 = vpop.f32.mrf.mxu0
    %3271 = vmatprep.mubr.f32.mxu0 0.0
    %3272 = vmatmul.mubr.f32.gmra.mxu0 %v3113
    %v3273 = vpop.f32.mrf.mxu0
    %v3274 = vadd.f32 0.0, %v3273
    %v3275 = vpop.f32.mrf.mxu0
    %3276 = vmatprep.mubr.f32.mxu0 0.0
    %3277 = vmatmul.mubr.f32.gmra.mxu0 %v3118
    %v3278 = vpop.f32.mrf.mxu0
    %v3279 = vadd.f32 0.0, %v3278
    %v3280 = vpop.f32.mrf.mxu0
    %3281 = vmatprep.mubr.f32.mxu0 0.0
    %3282 = vmatmul.mubr.f32.gmra.mxu0 %v3123
    %v3283 = vpop.f32.mrf.mxu0
    %v3284 = vadd.f32 0.0, %v3283
    %v3285 = vpop.f32.mrf.mxu0
    %3286 = vmatprep.mubr.f32.mxu0 0.0
    %3287 = vmatmul.mubr.f32.gmra.mxu0 %v3128
    %v3288 = vpop.f32.mrf.mxu0
    %v3289 = vadd.f32 0.0, %v3288
    %v3290 = vpop.f32.mrf.mxu0
    %3291 = vmatprep.mubr.f32.mxu0 0.0
    %3292 = vmatmul.mubr.f32.gmra.mxu0 %v3133
    %v3293 = vpop.f32.mrf.mxu0
    %v3294 = vadd.f32 0.0, %v3293
    %v3295 = vpop.f32.mrf.mxu0
    %3296 = vmatprep.mubr.f32.mxu0 0.0
    %3297 = vmatmul.mubr.f32.gmra.mxu0 %v3138
    %v3298 = vpop.f32.mrf.mxu0
    %v3299 = vadd.f32 0.0, %v3298
    %v3300 = vpop.f32.mrf.mxu0
    %3301 = vmatprep.mubr.f32.mxu0 0.0
    %3302 = vmatmul.mubr.f32.gmra.mxu0 %v3143
    %v3303 = vpop.f32.mrf.mxu0
    %v3304 = vadd.f32 0.0, %v3303
    %v3305 = vpop.f32.mrf.mxu0
    %3306 = vmatprep.mubr.f32.mxu0 0.0
    %3307 = vmatmul.mubr.f32.gmra.mxu0 %v3148
    %v3308 = vpop.f32.mrf.mxu0
    %v3309 = vadd.f32 0.0, %v3308
    %v3310 = vpop.f32.mrf.mxu0
    %3311 = vmatprep.mubr.f32.mxu0 0.0
    %3312 = vmatmul.mubr.f32.gmra.mxu0 %v3153
    %v3313 = vpop.f32.mrf.mxu0
    %v3314 = vadd.f32 0.0, %v3313
    %v3315 = vpop.f32.mrf.mxu0
    %3316 = vmatprep.mubr.f32.mxu0 0.0
    %3317 = vmatmul.mubr.f32.gmra.mxu0 %v3158
    %v3318 = vpop.f32.mrf.mxu0
    %v3319 = vadd.f32 0.0, %v3318
    %v3320 = vpop.f32.mrf.mxu0
    %3321 = vmatprep.mubr.f32.mxu0 0.0
    %3322 = vmatmul.mubr.f32.gmra.mxu0 %v3163
    %v3323 = vpop.f32.mrf.mxu0
    %v3324 = vadd.f32 0.0, %v3323
    %v3325 = vpop.f32.mrf.mxu0
    %3326 = vmatprep.mubr.f32.mxu0 0.0
    %3327 = vmatmul.mubr.f32.gmra.mxu0 %v3168
    %v3328 = vpop.f32.mrf.mxu0
    %v3329 = vadd.f32 0.0, %v3328
    %v3330 = vpop.f32.mrf.mxu0
    %3331 = vmatprep.mubr.f32.mxu0 0.0
    %3332 = vmatmul.mubr.f32.gmra.mxu0 %v3173
    %v3333 = vpop.f32.mrf.mxu0
    %v3334 = vadd.f32 0.0, %v3333
    %v3335 = vpop.f32.mrf.mxu0
    %3336 = vmatprep.mubr.f32.mxu0 0.0
    %3337 = vmatmul.mubr.f32.gmra.mxu0 %v3178
    %v3338 = vpop.f32.mrf.mxu0
    %v3339 = vadd.f32 0.0, %v3338
    %v3340 = vpop.f32.mrf.mxu0
    %3341 = vdwg.mxu0
    %v3342 = vmul.f32 %v3264, 0.5
    %v3343 = vmul.f32 %v3269, 0.5
    %v3344 = vmul.f32 %v3274, 0.5
    %v3345 = vmul.f32 %v3279, 0.5
    %v3346 = vmul.f32 %v3284, 0.5
    %v3347 = vmul.f32 %v3289, 0.5
    %v3348 = vmul.f32 %v3294, 0.5
    %v3349 = vmul.f32 %v3299, 0.5
    %v3350 = vmul.f32 %v3304, 0.5
    %v3351 = vmul.f32 %v3309, 0.5
    %v3352 = vmul.f32 %v3314, 0.5
    %v3353 = vmul.f32 %v3319, 0.5
    %v3354 = vmul.f32 %v3324, 0.5
    %v3355 = vmul.f32 %v3329, 0.5
    %v3356 = vmul.f32 %v3334, 0.5
    %v3357 = vmul.f32 %v3339, 0.5
    %v3358 = vsub.f32 %v3181, %v3342
    %v3359 = vsub.f32 %v3182, %v3343
    %v3360 = vsub.f32 %v3183, %v3344
    %v3361 = vsub.f32 %v3184, %v3345
    %v3362 = vsub.f32 %v3185, %v3346
    %v3363 = vsub.f32 %v3186, %v3347
    %v3364 = vsub.f32 %v3187, %v3348
    %v3365 = vsub.f32 %v3188, %v3349
    %v3366 = vsub.f32 %v3189, %v3350
    %v3367 = vsub.f32 %v3190, %v3351
    %v3368 = vsub.f32 %v3191, %v3352
    %v3369 = vsub.f32 %v3192, %v3353
    %v3370 = vsub.f32 %v3193, %v3354
    %v3371 = vsub.f32 %v3194, %v3355
    %v3372 = vsub.f32 %v3195, %v3356
    %v3373 = vsub.f32 %v3196, %v3357
    %v3374 = vrsqrt.pop %v942
    %v3375 = vmul.f32 %v942, %v3374
    %vm3376 = vcmp.eq.f32.partialorder %v942, inf
    %v3377 = vsel %vm3376, %v942, %v3375
    %vm3378 = vcmp.eq.f32.partialorder %v942, 0.0
    %v3379 = vand.u32 %v942, 2147483648
    %v3380 = vsel %vm3378, %v3379, %v3377
    %v3381 = vmul.f32 %v3358, %v3380
    %v3382 = vmul.f32 %v3359, %v3380
    %v3383 = vmul.f32 %v3360, %v3380
    %v3384 = vmul.f32 %v3361, %v3380
    %v3385 = vmul.f32 %v3362, %v3380
    %v3386 = vmul.f32 %v3363, %v3380
    %v3387 = vmul.f32 %v3364, %v3380
    %v3388 = vmul.f32 %v3365, %v3380
    %v3389 = vmul.f32 %v3366, %v3380
    %v3390 = vmul.f32 %v3367, %v3380
    %v3391 = vmul.f32 %v3368, %v3380
    %v3392 = vmul.f32 %v3369, %v3380
    %v3393 = vmul.f32 %v3370, %v3380
    %v3394 = vmul.f32 %v3371, %v3380
    %v3395 = vmul.f32 %v3372, %v3380
    %v3396 = vmul.f32 %v3373, %v3380
    %v3397 = vpack.c.bf16 %v565, %v565
    %v3398 = vpack.c.bf16 %v3382, %v3381
    %v3399 = vpack.c.bf16 %v3384, %v3383
    %v3400 = vpack.c.bf16 %v3386, %v3385
    %v3401 = vpack.c.bf16 %v3388, %v3387
    %v3402 = vpack.c.bf16 %v3390, %v3389
    %v3403 = vpack.c.bf16 %v3392, %v3391
    %v3404 = vpack.c.bf16 %v3394, %v3393
    %v3405 = vpack.c.bf16 %v3396, %v3395
    %3406 = vmatprep.subr.bf16.mxu0 0
    %3407 = vmatpush1.bf16.xpose.msra.mxu0 %v3405
    %3408 = vmatprep.subr.bf16.mxu0 0
    %3409 = vmatpush1.bf16.xpose.msra.mxu0 %v3404
    %3410 = vmatprep.subr.bf16.mxu0 0
    %3411 = vmatpush1.bf16.xpose.msra.mxu0 %v3403
    %3412 = vmatprep.subr.bf16.mxu0 0
    %3413 = vmatpush1.bf16.xpose.msra.mxu0 %v3402
    %3414 = vmatprep.subr.bf16.mxu0 0
    %3415 = vmatpush1.bf16.xpose.msra.mxu0 %v3401
    %3416 = vmatprep.subr.bf16.mxu0 0
    %3417 = vmatpush1.bf16.xpose.msra.mxu0 %v3400
    %3418 = vmatprep.subr.bf16.mxu0 0
    %3419 = vmatpush1.bf16.xpose.msra.mxu0 %v3399
    %3420 = vmatprep.subr.bf16.mxu0 0
    %3421 = vmatpush1.bf16.xpose.msra.mxu0 %v3398
    %3422 = vmatprep.subr.bf16.mxu0 0
    %3423 = vmatpush2.bf16.xpose.msra.mxu0 0
    %3424 = vmatprep.subr.bf16.mxu0 0
    %3425 = vmatpush2.bf16.xpose.msra.mxu0 0
    %3426 = vmatprep.subr.bf16.mxu0 0
    %3427 = vmatpush2.bf16.xpose.msra.mxu0 0
    %3428 = vmatprep.subr.bf16.mxu0 0
    %3429 = vmatpush2.bf16.xpose.msra.mxu0 0
    %3430 = vmatprep.subr.bf16.mxu0 0
    %3431 = vmatpush2.bf16.xpose.msra.mxu0 0
    %3432 = vmatprep.subr.bf16.mxu0 0
    %3433 = vmatpush2.bf16.xpose.msra.mxu0 0
    %3434 = vmatprep.subr.bf16.mxu0 0
    %3435 = vmatpush2.bf16.xpose.msra.mxu0 0
    %3436 = vmatprep.subr.bf16.mxu0 0
    %3437 = vmatpush2.bf16.xpose.msra.mxu0 0
    %3438 = vmatprep.mubr.bf16.mxu0 0
    %3439 = vmatmul.mubr.bf16.gmra.mxu0 %v3397
    %v3440 = vpop.f32.mrf.mxu0
    %v3441 = vadd.f32 0.0, %v3440
    %v3442 = vpop.f32.mrf.mxu0
    %v3443 = vpop.f32.mrf.mxu0
    %v3444 = vpop.f32.mrf.mxu0
    %3445 = vdwg.mxu0
    %3446 = vst [vmem:[#allocation11] sm:$0xff] %v3441
    // Predicated region
    $region54: #{tpu_custom_call.1} parent=1 // pred_check
      _
    $region55: #{tpu_custom_call.1} parent=1 // pred_check_branch
      %3448 = sbr.rel (0) target = $region57
    $region56: #{tpu_custom_call.1} parent=1 // pred_region
      %s3450 = ssub.s32 128, 128
      %3451 = vsyncadd [#allocation4], %s3450
      %s3453 = sshll.u32 [#allocation11], 4
      %s3454 = int_to_ptr.vmem [resolvable:$true] %s3453
      %3456 = dma.vmem_to_hbm [thread:$0]  %s3454, 128, %s8, [#allocation4]
    $region57: #{tpu_custom_call.1} parent=1 // pred_fallthru
      _
    // Predicated region
    $region58: #{tpu_custom_call.1} parent=1 // pred_check
      _
    $region59: #{tpu_custom_call.1} parent=1 // pred_check_branch
      %3458 = sbr.rel (0) target = $region61
    $region60: #{tpu_custom_call.1} parent=1 // pred_region
      %3459 = dma.done [#allocation4], 128
    $region61: #{tpu_custom_call.1} parent=1 // pred_fallthru
      _
    %3460 = vsyncpa [#allocation3], 1
    %3461 = vsyncpa [#allocation6], 1
    %3462 = vsyncpa [#allocation9], 1
    %3463 = vsyncpa [#allocation4], 1

</llo_original>
